<compile_context>
chip_gen: v7x
topology: tpu7x:2x2x1
jax: 0.10.0
libtpu: 0.0.40
codegen_flags: <defaults>
</compile_context>

<pallas_src>
import functools

import jax
import jax.numpy as jnp
from jax.experimental import pallas as pl
from jax.experimental.pallas import tpu as pltpu

BN_EPS = 1e-5


# ------------------------------ fused kernel ---------------------------------
def a2hnet_fused_kernel(adj_ref, x0_ref, mask_ref, seq_ref, a2h_ref,
                        w_ref, b_ref, out_ref, *, gnn_layers, ksize, l_out):
    f32, bf16 = jnp.float32, jnp.bfloat16
    relu = lambda v: jnp.maximum(v, 0.0)

    def dot(a, b):
        return jnp.dot(a.astype(bf16), b, preferred_element_type=f32)

    L = gnn_layers
    # --- static slab layout (must match pack_params) ---
    W1, W2, WLF, WCONV, WPF, WA1, WA2 = 0, L, 2 * L, 2 * L + 1, 2 * L + 2, 2 * L + 3, 2 * L + 4
    WC1, WC2, WO = 2 * L + 5, 2 * L + 11, 2 * L + 13
    B1, B2, BNS, BNH = 0, L, 2 * L, 3 * L
    BLF, BCONV, BPF, BA1, BA2 = 4 * L, 4 * L + 1, 4 * L + 2, 4 * L + 3, 4 * L + 4
    BC1A, BC1B, BC2, BO = 4 * L + 5, 4 * L + 6, 4 * L + 7, 4 * L + 8

    # ---- ligand branch: GIN stack on this graph's node block (block-diagonal).
    adj = adj_ref[0].astype(bf16)                     # (Np, Np)
    x = x0_ref[0]                                     # (Np, H) f32 (lane-padded feats)
    for l in range(L):
        # GINConv(eps=0): h_i = MLP( x_i + sum_{j in N(i)} x_j )
        agg = jnp.dot(adj, x.astype(bf16), preferred_element_type=f32) + x
        h = relu(dot(agg, w_ref[W1 + l]) + b_ref[B1 + l])
        h = dot(h, w_ref[W2 + l]) + b_ref[B2 + l]
        # BatchNorm1d (eval mode) folded to scale/shift, then ReLU.
        x = relu(h * b_ref[BNS + l] + b_ref[BNH + l])

    # global_add_pool inside the graph block (masked sum over nodes) + ligand_fc.
    lig_pool = jnp.sum(x * mask_ref[0], axis=0, keepdims=True)        # (1, H)
    x_lig = relu(dot(lig_pool, w_ref[WLF]) + b_ref[BLF])

    # ---- protein branch: Conv1d(1->C, K) as K shifted tap accumulations on the
    #      VPU (in-kernel im2col), ReLU, AdaptiveMaxPool1d(1) as one sublane max.
    seq = seq_ref[0]                                  # (Lp, 1) f32, positions on sublanes
    wconv = w_ref[WCONV].astype(f32)                  # (128, 128); rows 0..K-1 are taps
    conv = jnp.zeros((l_out, 128), f32)
    for k in range(ksize):
        tap = seq[k:k + l_out, :]                     # (l_out, 1) static sublane slice
        conv = conv + tap * wconv[k, :]               # broadcast -> (l_out, 128)
    conv = relu(conv + b_ref[BCONV])
    prot_pool = jnp.max(conv, axis=0, keepdims=True)  # (1, 128) lane-dense
    x_prot = relu(dot(prot_pool, w_ref[WPF]) + b_ref[BPF])

    # ---- a2h branch: flatten + 2-layer MLP (forward-path a2h_fc1 / a2h_fc2).
    a = a2h_ref[0]                                    # (1, H)
    h = relu(dot(a, w_ref[WA1]) + b_ref[BA1])
    x_a2h = relu(dot(h, w_ref[WA2]) + b_ref[BA2])

    # ---- combined head: cat([x_lig, x_prot, x_a2h]) @ combined_fc1 expressed as
    #      128x128 blocks of the (384, 256) weight, then combined_fc2, output_fc.
    h1a = relu(dot(x_lig, w_ref[WC1 + 0]) + dot(x_prot, w_ref[WC1 + 2]) +
               dot(x_a2h, w_ref[WC1 + 4]) + b_ref[BC1A])
    h1b = relu(dot(x_lig, w_ref[WC1 + 1]) + dot(x_prot, w_ref[WC1 + 3]) +
               dot(x_a2h, w_ref[WC1 + 5]) + b_ref[BC1B])
    h2 = relu(dot(h1a, w_ref[WC2 + 0]) + dot(h1b, w_ref[WC2 + 1]) + b_ref[BC2])
    # Lane-dense (1, 128) store; the real scalar output lives in column 0.
    out_ref[0] = dot(h2, w_ref[WO]) + b_ref[BO]


# ----------------------------- params / packing -------------------------------
def linear_init(key, fan_in, fan_out):
    kw, kb = jax.random.split(key)
    bound = 1.0 / float(fan_in) ** 0.5
    w = jax.random.uniform(kw, (fan_in, fan_out), jnp.float32, -bound, bound)
    b = jax.random.uniform(kb, (1, fan_out), jnp.float32, -bound, bound)
    return w, b


def init_params(key, ligand_input_dim, hidden, cnn_out, ksize, a2h_flat_dim,
                gnn_layers=3):
    keys = jax.random.split(key, 32)
    it = iter(keys)
    params = {"gin": []}
    in_dim = ligand_input_dim
    for _ in range(gnn_layers):
        w1, b1 = linear_init(next(it), in_dim, hidden)
        w2, b2 = linear_init(next(it), hidden, hidden)
        params["gin"].append({
            "w1": w1, "b1": b1, "w2": w2, "b2": b2,
            "gamma": jnp.ones((1, hidden), jnp.float32),
            "beta": jnp.zeros((1, hidden), jnp.float32),
            "mean": jnp.zeros((1, hidden), jnp.float32),
            "var": jnp.ones((1, hidden), jnp.float32),
        })
        in_dim = hidden
    params["wlf"], params["blf"] = linear_init(next(it), hidden, hidden)
    # Conv1d(1, cnn_out, ksize): PyTorch layout (out_channels, in_channels=1, K).
    kcw, kcb = jax.random.split(next(it))
    bound = 1.0 / float(ksize) ** 0.5
    params["wconv"] = jax.random.uniform(kcw, (cnn_out, 1, ksize), jnp.float32, -bound, bound)
    params["bconv"] = jax.random.uniform(kcb, (1, cnn_out), jnp.float32, -bound, bound)
    params["wpf"], params["bpf"] = linear_init(next(it), cnn_out, hidden)
    params["wa1"], params["ba1"] = linear_init(next(it), a2h_flat_dim, hidden)
    params["wa2"], params["ba2"] = linear_init(next(it), hidden, hidden)
    params["wc1"], params["bc1"] = linear_init(next(it), hidden * 3, hidden * 2)
    params["wc2"], params["bc2"] = linear_init(next(it), hidden * 2, hidden)
    params["wo"], params["bo"] = linear_init(next(it), hidden, 1)
    return params


def pack_params(p, hidden):
    """Pack every matmul weight into one (20,128,128) bf16 slab and every
    bias / folded-BN vector into one (21,128) f32 slab (hoisted: call once)."""
    H = hidden
    L = len(p["gin"])
    gin = p["gin"]

    def pad_to(a, rows, cols):
        return jnp.pad(a, ((0, rows - a.shape[0]), (0, cols - a.shape[1])))

    w_entries = []
    w_entries += [pad_to(lp["w1"], H, H) for lp in gin]                 # W1: 0..L-1
    w_entries += [pad_to(lp["w2"], H, H) for lp in gin]                 # W2: L..2L-1
    w_entries.append(p["wlf"])                                          # WLF
    wconv_kc = jnp.transpose(p["wconv"][:, 0, :])                       # (K, cnn_out)
    w_entries.append(pad_to(wconv_kc, H, H))                            # WCONV
    w_entries.append(pad_to(p["wpf"], H, H))                            # WPF
    w_entries.append(pad_to(p["wa1"], H, H))                            # WA1
    w_entries.append(p["wa2"])                                          # WA2
    wc1 = p["wc1"]                                                      # (3H, 2H)
    for r in range(3):
        for c in range(2):
            w_entries.append(wc1[r * H:(r + 1) * H, c * H:(c + 1) * H])  # WC1 .. +5
    wc2 = p["wc2"]                                                      # (2H, H)
    w_entries.append(wc2[:H])                                           # WC2
    w_entries.append(wc2[H:])                                           # WC2+1
    w_entries.append(pad_to(p["wo"], H, H))                             # WO
    wslab = jnp.stack(w_entries).astype(jnp.bfloat16)

    def row(v, width=H):
        v = v.reshape(-1)
        return jnp.pad(v, (0, width - v.shape[0]))

    inv_std = [jax.lax.rsqrt(lp["var"] + BN_EPS) for lp in gin]
    b_rows = []
    b_rows += [row(lp["b1"]) for lp in gin]                             # B1
    b_rows += [row(lp["b2"]) for lp in gin]                             # B2
    b_rows += [row(lp["gamma"] * s) for lp, s in zip(gin, inv_std)]     # BN scale
    b_rows += [row(lp["beta"] - lp["mean"] * lp["gamma"] * s)
               for lp, s in zip(gin, inv_std)]                          # BN shift
    b_rows.append(row(p["blf"]))
    b_rows.append(row(p["bconv"]))
    b_rows.append(row(p["bpf"]))
    b_rows.append(row(p["ba1"]))
    b_rows.append(row(p["ba2"]))
    bc1 = p["bc1"].reshape(-1)
    b_rows.append(bc1[:H])
    b_rows.append(bc1[H:])
    b_rows.append(row(p["bc2"]))
    b_rows.append(row(p["bo"]))
    bslab = jnp.stack(b_rows).astype(jnp.float32)
    assert wslab.shape == (2 * L + 14, H, H) and bslab.shape == (4 * L + 9, H)
    return wslab, bslab


# --------------------------------- forward ------------------------------------
def a2hnet_forward(wslab, bslab, x_ligand, edge_index, batch, protein_seq, a2h,
                   *, num_graphs, max_nodes, gnn_layers, ksize):
    hidden = wslab.shape[-1]
    assert hidden == 128, "hidden_dim must be 128 (lane-dense slab layout)"
    n, f = x_ligand.shape
    assert f <= hidden, "ligand feature dim must fit in the hidden (lane) width"

    # ---- block-diagonal graph batching (nodes contiguous per graph, PyG style).
    counts = jnp.zeros((num_graphs,), jnp.int32).at[batch].add(1)
    offsets = jnp.concatenate([jnp.zeros((1,), jnp.int32),
                               jnp.cumsum(counts)[:-1].astype(jnp.int32)])
    local = jnp.arange(n, dtype=jnp.int32) - offsets[batch]
    x0 = jnp.pad(x_ligand, ((0, 0), (0, hidden - f)))
    x0b = jnp.zeros((num_graphs, max_nodes, hidden), jnp.float32).at[batch, local].set(x0)
    maskb = jnp.zeros((num_graphs, max_nodes, 1), jnp.float32).at[batch, local].set(1.0)
    src, dst = edge_index[0], edge_index[1]
    ge = batch[src]
    adjb = jnp.zeros((num_graphs, max_nodes, max_nodes), jnp.float32
                     ).at[ge, dst - offsets[ge], src - offsets[ge]].add(1.0)

    # ---- protein: pass the raw sequence as a (G, L, 1) column; taps are sliced
    #      in-kernel (no HBM-side im2col expansion).
    seq_col = jnp.transpose(protein_seq, (0, 2, 1)).astype(jnp.float32)
    seq_len = seq_col.shape[1]
    assert seq_len >= ksize, "seq_len must be >= conv kernel size"
    l_out = seq_len - ksize + 1

    # ---- a2h: flatten + lane-pad.
    a2h_flat = a2h.reshape(a2h.shape[0], 1, -1)
    assert a2h_flat.shape[-1] <= hidden
    a2h_flat = jnp.pad(a2h_flat, ((0, 0), (0, 0), (0, hidden - a2h_flat.shape[-1])))

    nw, nb = wslab.shape[0], bslab.shape[0]
    H, Np, G = hidden, max_nodes, num_graphs

    gin_flops = gnn_layers * (2 * Np * Np * H + 4 * Np * H * H)
    head_flops = 2 * H * H * 13 + 2 * l_out * ksize * H
    flops = G * (gin_flops + head_flops)
    bytes_accessed = ((adjb.size + x0b.size + maskb.size + seq_col.size +
                       a2h_flat.size + bslab.size + G * H) * 4 + wslab.size * 2)

    kernel = functools.partial(a2hnet_fused_kernel, gnn_layers=gnn_layers,
                               ksize=ksize, l_out=l_out)
    out = pl.pallas_call(
        kernel,
        out_shape=jax.ShapeDtypeStruct((G, 1, H), jnp.float32),
        grid_spec=pltpu.PrefetchScalarGridSpec(
            num_scalar_prefetch=0,
            grid=(G,),
            in_specs=[
                pl.BlockSpec((1, Np, Np), lambda g: (g, 0, 0)),      # adjacency block
                pl.BlockSpec((1, Np, H), lambda g: (g, 0, 0)),       # node features
                pl.BlockSpec((1, Np, 1), lambda g: (g, 0, 0)),       # node validity mask
                pl.BlockSpec((1, seq_len, 1), lambda g: (g, 0, 0)),  # protein sequence
                pl.BlockSpec((1, 1, H), lambda g: (g, 0, 0)),        # a2h (flattened)
                pl.BlockSpec((nw, H, H), lambda g: (0, 0, 0)),       # weight slab (resident)
                pl.BlockSpec((nb, H), lambda g: (0, 0)),             # bias slab (resident)
            ],
            out_specs=pl.BlockSpec((1, 1, H), lambda g: (g, 0, 0)),
        ),
        compiler_params=pltpu.CompilerParams(
            dimension_semantics=("parallel",),
            vmem_limit_bytes=16 * 1024 * 1024),
        cost_estimate=pl.CostEstimate(flops=int(flops), transcendentals=0,
                                      bytes_accessed=int(bytes_accessed)),
    )(adjb, x0b, maskb, seq_col, a2h_flat, wslab, bslab)
    return out[:, 0, :1]                                             # (num_graphs, 1)


if __name__ == "__main__":
    key = jax.random.PRNGKey(0)
    k_param, k_x, k_seq, k_a2h = jax.random.split(key, 4)

    ligand_input_dim = 8
    hidden = 128                 # module default -> lane-dense activations/weights
    cnn_out = 32                 # module default
    ksize = 8
    seq_len = 32
    a2h_timesteps, a2h_max_atoms, a2h_coord_dim = 4, 6, 3
    num_graphs = 2
    nodes_per_graph = 8
    n_nodes = num_graphs * nodes_per_graph
    gnn_layers = 3

    params = init_params(k_param, ligand_input_dim, hidden, cnn_out, ksize,
                         a2h_timesteps * a2h_max_atoms * a2h_coord_dim, gnn_layers)
    # Parameter packing hoisted out of the per-call path (done once).
    wslab, bslab = pack_params(params, hidden)

    x_ligand = jax.random.normal(k_x, (n_nodes, ligand_input_dim), jnp.float32)

    # Ring graph inside each molecule, both edge directions.
    src_list, dst_list = [], []
    for g in range(num_graphs):
        off = g * nodes_per_graph
        for i in range(nodes_per_graph):
            j = (i + 1) % nodes_per_graph
            src_list += [off + i, off + j]
            dst_list += [off + j, off + i]
    edge_index = jnp.array([src_list, dst_list], dtype=jnp.int32)
    batch = jnp.repeat(jnp.arange(num_graphs, dtype=jnp.int32), nodes_per_graph)

    protein_seq = jax.random.normal(k_seq, (num_graphs, 1, seq_len), jnp.float32)
    a2h = jax.random.normal(
        k_a2h, (num_graphs, a2h_timesteps, a2h_max_atoms, a2h_coord_dim), jnp.float32)

    fwd = jax.jit(functools.partial(a2hnet_forward,
                                    num_graphs=num_graphs,
                                    max_nodes=nodes_per_graph,
                                    gnn_layers=gnn_layers,
                                    ksize=ksize))
    out = fwd(wslab, bslab, x_ligand, edge_index, batch, protein_seq, a2h)
    out = jax.block_until_ready(out)
    assert out.shape == (num_graphs, 1) and out.dtype == jnp.float32
    print("KERNEL_OK")
</pallas_src>

<mosaic_0001>
module attributes {stable_mosaic.version = 11 : i64} {
  func.func private @main(%arg0: i32) attributes {dimension_semantics = [#tpu.dimension_semantics<core_parallel>], iteration_bounds = array<i64: 2>, tpu.core_type = #tpu.core_type<sc_scalar_subcore>, window_params = []} {
    return
  }
}

module attributes {stable_mosaic.version = 11 : i64} {
  func.func private @main(%arg0: i32) attributes {dimension_semantics = [#tpu.dimension_semantics<core_parallel>], iteration_bounds = array<i64: 2>, tpu.core_type = #tpu.core_type<sc_scalar_subcore>, window_params = []} {
    return
  }
}

module attributes {stable_mosaic.version = 11 : i64} {
  func.func @a2hnet_fused_kernel(%arg0: i32, %arg1: memref<1x8x8xf32, #tpu.memory_space<vmem>>, %arg2: memref<1x8x128xf32, #tpu.memory_space<vmem>>, %arg3: memref<1x8x1xf32, #tpu.memory_space<vmem>>, %arg4: memref<1x32x1xf32, #tpu.memory_space<vmem>>, %arg5: memref<1x1x128xf32, #tpu.memory_space<vmem>>, %arg6: memref<20x128x128xbf16, #tpu.memory_space<vmem>>, %arg7: memref<21x128xf32, #tpu.memory_space<vmem>>, %arg8: memref<1x1x128xf32, #tpu.memory_space<vmem>>) attributes {dimension_semantics = [#tpu.dimension_semantics<parallel>], iteration_bounds = array<i64: 2>, scalar_prefetch = 0 : i64, scratch_operands = 0 : i64, tpu.core_type = #tpu.core_type<tc>, window_params = [{transform_indices = @transform_0, window_bounds = array<i64: 1, 8, 8>}, {transform_indices = @transform_1, window_bounds = array<i64: 1, 8, 128>}, {transform_indices = @transform_2, window_bounds = array<i64: 1, 8, 1>}, {transform_indices = @transform_3, window_bounds = array<i64: 1, 32, 1>}, {transform_indices = @transform_4, window_bounds = array<i64: 1, 1, 128>}, {pipeline_mode = #tpu.pipeline_mode<synchronous>, transform_indices = @transform_5, window_bounds = array<i64: 20, 128, 128>}, {pipeline_mode = #tpu.pipeline_mode<synchronous>, transform_indices = @transform_6, window_bounds = array<i64: 21, 128>}, {transform_indices = @transform_7, window_bounds = array<i64: 1, 1, 128>}]} {
    %c0 = arith.constant 0 : index
    %c0_0 = arith.constant 0 : index
    %c0_1 = arith.constant 0 : index
    %0 = vector.load %arg1[%c0, %c0_0, %c0_1] : memref<1x8x8xf32, #tpu.memory_space<vmem>>, vector<1x8x8xf32>
    %1 = vector.shape_cast %0 : vector<1x8x8xf32> to vector<8x8xf32>
    %2 = arith.truncf %1 : vector<8x8xf32> to vector<8x8xbf16>
    %c0_2 = arith.constant 0 : index
    %c0_3 = arith.constant 0 : index
    %c0_4 = arith.constant 0 : index
    %3 = vector.load %arg2[%c0_2, %c0_3, %c0_4] : memref<1x8x128xf32, #tpu.memory_space<vmem>>, vector<1x8x128xf32>
    %4 = vector.shape_cast %3 : vector<1x8x128xf32> to vector<8x128xf32>
    %5 = arith.truncf %4 : vector<8x128xf32> to vector<8x128xbf16>
    %cst = arith.constant dense<0.000000e+00> : vector<8x128xf32>
    %6 = tpu.matmul %2, %5, %cst {dimension_numbers = #tpu.dot_dimension_numbers<[1], [0], [0], [1], [0, 0, 1, 1], [], []>} : vector<8x8xbf16>, vector<8x128xbf16>, vector<8x128xf32> -> vector<8x128xf32>
    %7 = arith.addf %6, %4 : vector<8x128xf32>
    %c0_5 = arith.constant 0 : index
    %c0_6 = arith.constant 0 : index
    %c0_7 = arith.constant 0 : index
    %8 = vector.load %arg6[%c0_5, %c0_6, %c0_7] : memref<20x128x128xbf16, #tpu.memory_space<vmem>>, vector<1x128x128xbf16>
    %9 = vector.shape_cast %8 : vector<1x128x128xbf16> to vector<128x128xbf16>
    %10 = arith.truncf %7 : vector<8x128xf32> to vector<8x128xbf16>
    %cst_8 = arith.constant dense<0.000000e+00> : vector<8x128xf32>
    %11 = tpu.matmul %10, %9, %cst_8 {dimension_numbers = #tpu.dot_dimension_numbers<[1], [0], [0], [1], [0, 0, 1, 1], [], []>} : vector<8x128xbf16>, vector<128x128xbf16>, vector<8x128xf32> -> vector<8x128xf32>
    %c0_9 = arith.constant 0 : index
    %c0_10 = arith.constant 0 : index
    %12 = vector.load %arg7[%c0_9, %c0_10] : memref<21x128xf32, #tpu.memory_space<vmem>>, vector<1x128xf32>
    %13 = vector.shape_cast %12 : vector<1x128xf32> to vector<128xf32>
    %14 = vector.shape_cast %13 : vector<128xf32> to vector<1x128xf32>
    %15 = vector.broadcast %14 : vector<1x128xf32> to vector<8x128xf32>
    %16 = arith.addf %11, %15 : vector<8x128xf32>
    %cst_11 = arith.constant 0.000000e+00 : f32
    %17 = vector.broadcast %cst_11 : f32 to vector<8x128xf32>
    %18 = arith.maximumf %16, %17 : vector<8x128xf32>
    %c3 = arith.constant 3 : index
    %c0_12 = arith.constant 0 : index
    %c0_13 = arith.constant 0 : index
    %19 = vector.load %arg6[%c3, %c0_12, %c0_13] : memref<20x128x128xbf16, #tpu.memory_space<vmem>>, vector<1x128x128xbf16>
    %20 = vector.shape_cast %19 : vector<1x128x128xbf16> to vector<128x128xbf16>
    %21 = arith.truncf %18 : vector<8x128xf32> to vector<8x128xbf16>
    %cst_14 = arith.constant dense<0.000000e+00> : vector<8x128xf32>
    %22 = tpu.matmul %21, %20, %cst_14 {dimension_numbers = #tpu.dot_dimension_numbers<[1], [0], [0], [1], [0, 0, 1, 1], [], []>} : vector<8x128xbf16>, vector<128x128xbf16>, vector<8x128xf32> -> vector<8x128xf32>
    %c3_15 = arith.constant 3 : index
    %c0_16 = arith.constant 0 : index
    %23 = vector.load %arg7[%c3_15, %c0_16] : memref<21x128xf32, #tpu.memory_space<vmem>>, vector<1x128xf32>
    %24 = vector.shape_cast %23 : vector<1x128xf32> to vector<128xf32>
    %25 = vector.shape_cast %24 : vector<128xf32> to vector<1x128xf32>
    %26 = vector.broadcast %25 : vector<1x128xf32> to vector<8x128xf32>
    %27 = arith.addf %22, %26 : vector<8x128xf32>
    %c6 = arith.constant 6 : index
    %c0_17 = arith.constant 0 : index
    %28 = vector.load %arg7[%c6, %c0_17] : memref<21x128xf32, #tpu.memory_space<vmem>>, vector<1x128xf32>
    %29 = vector.shape_cast %28 : vector<1x128xf32> to vector<128xf32>
    %30 = vector.shape_cast %29 : vector<128xf32> to vector<1x128xf32>
    %31 = vector.broadcast %30 : vector<1x128xf32> to vector<8x128xf32>
    %32 = arith.mulf %27, %31 : vector<8x128xf32>
    %c9 = arith.constant 9 : index
    %c0_18 = arith.constant 0 : index
    %33 = vector.load %arg7[%c9, %c0_18] : memref<21x128xf32, #tpu.memory_space<vmem>>, vector<1x128xf32>
    %34 = vector.shape_cast %33 : vector<1x128xf32> to vector<128xf32>
    %35 = vector.shape_cast %34 : vector<128xf32> to vector<1x128xf32>
    %36 = vector.broadcast %35 : vector<1x128xf32> to vector<8x128xf32>
    %37 = arith.addf %32, %36 : vector<8x128xf32>
    %cst_19 = arith.constant 0.000000e+00 : f32
    %38 = vector.broadcast %cst_19 : f32 to vector<8x128xf32>
    %39 = arith.maximumf %37, %38 : vector<8x128xf32>
    %40 = arith.truncf %39 : vector<8x128xf32> to vector<8x128xbf16>
    %cst_20 = arith.constant dense<0.000000e+00> : vector<8x128xf32>
    %41 = tpu.matmul %2, %40, %cst_20 {dimension_numbers = #tpu.dot_dimension_numbers<[1], [0], [0], [1], [0, 0, 1, 1], [], []>} : vector<8x8xbf16>, vector<8x128xbf16>, vector<8x128xf32> -> vector<8x128xf32>
    %42 = arith.addf %41, %39 : vector<8x128xf32>
    %c1 = arith.constant 1 : index
    %c0_21 = arith.constant 0 : index
    %c0_22 = arith.constant 0 : index
    %43 = vector.load %arg6[%c1, %c0_21, %c0_22] : memref<20x128x128xbf16, #tpu.memory_space<vmem>>, vector<1x128x128xbf16>
    %44 = vector.shape_cast %43 : vector<1x128x128xbf16> to vector<128x128xbf16>
    %45 = arith.truncf %42 : vector<8x128xf32> to vector<8x128xbf16>
    %cst_23 = arith.constant dense<0.000000e+00> : vector<8x128xf32>
    %46 = tpu.matmul %45, %44, %cst_23 {dimension_numbers = #tpu.dot_dimension_numbers<[1], [0], [0], [1], [0, 0, 1, 1], [], []>} : vector<8x128xbf16>, vector<128x128xbf16>, vector<8x128xf32> -> vector<8x128xf32>
    %c1_24 = arith.constant 1 : index
    %c0_25 = arith.constant 0 : index
    %47 = vector.load %arg7[%c1_24, %c0_25] : memref<21x128xf32, #tpu.memory_space<vmem>>, vector<1x128xf32>
    %48 = vector.shape_cast %47 : vector<1x128xf32> to vector<128xf32>
    %49 = vector.shape_cast %48 : vector<128xf32> to vector<1x128xf32>
    %50 = vector.broadcast %49 : vector<1x128xf32> to vector<8x128xf32>
    %51 = arith.addf %46, %50 : vector<8x128xf32>
    %cst_26 = arith.constant 0.000000e+00 : f32
    %52 = vector.broadcast %cst_26 : f32 to vector<8x128xf32>
    %53 = arith.maximumf %51, %52 : vector<8x128xf32>
    %c4 = arith.constant 4 : index
    %c0_27 = arith.constant 0 : index
    %c0_28 = arith.constant 0 : index
    %54 = vector.load %arg6[%c4, %c0_27, %c0_28] : memref<20x128x128xbf16, #tpu.memory_space<vmem>>, vector<1x128x128xbf16>
    %55 = vector.shape_cast %54 : vector<1x128x128xbf16> to vector<128x128xbf16>
    %56 = arith.truncf %53 : vector<8x128xf32> to vector<8x128xbf16>
    %cst_29 = arith.constant dense<0.000000e+00> : vector<8x128xf32>
    %57 = tpu.matmul %56, %55, %cst_29 {dimension_numbers = #tpu.dot_dimension_numbers<[1], [0], [0], [1], [0, 0, 1, 1], [], []>} : vector<8x128xbf16>, vector<128x128xbf16>, vector<8x128xf32> -> vector<8x128xf32>
    %c4_30 = arith.constant 4 : index
    %c0_31 = arith.constant 0 : index
    %58 = vector.load %arg7[%c4_30, %c0_31] : memref<21x128xf32, #tpu.memory_space<vmem>>, vector<1x128xf32>
    %59 = vector.shape_cast %58 : vector<1x128xf32> to vector<128xf32>
    %60 = vector.shape_cast %59 : vector<128xf32> to vector<1x128xf32>
    %61 = vector.broadcast %60 : vector<1x128xf32> to vector<8x128xf32>
    %62 = arith.addf %57, %61 : vector<8x128xf32>
    %c7 = arith.constant 7 : index
    %c0_32 = arith.constant 0 : index
    %63 = vector.load %arg7[%c7, %c0_32] : memref<21x128xf32, #tpu.memory_space<vmem>>, vector<1x128xf32>
    %64 = vector.shape_cast %63 : vector<1x128xf32> to vector<128xf32>
    %65 = vector.shape_cast %64 : vector<128xf32> to vector<1x128xf32>
    %66 = vector.broadcast %65 : vector<1x128xf32> to vector<8x128xf32>
    %67 = arith.mulf %62, %66 : vector<8x128xf32>
    %c10 = arith.constant 10 : index
    %c0_33 = arith.constant 0 : index
    %68 = vector.load %arg7[%c10, %c0_33] : memref<21x128xf32, #tpu.memory_space<vmem>>, vector<1x128xf32>
    %69 = vector.shape_cast %68 : vector<1x128xf32> to vector<128xf32>
    %70 = vector.shape_cast %69 : vector<128xf32> to vector<1x128xf32>
    %71 = vector.broadcast %70 : vector<1x128xf32> to vector<8x128xf32>
    %72 = arith.addf %67, %71 : vector<8x128xf32>
    %cst_34 = arith.constant 0.000000e+00 : f32
    %73 = vector.broadcast %cst_34 : f32 to vector<8x128xf32>
    %74 = arith.maximumf %72, %73 : vector<8x128xf32>
    %75 = arith.truncf %74 : vector<8x128xf32> to vector<8x128xbf16>
    %cst_35 = arith.constant dense<0.000000e+00> : vector<8x128xf32>
    %76 = tpu.matmul %2, %75, %cst_35 {dimension_numbers = #tpu.dot_dimension_numbers<[1], [0], [0], [1], [0, 0, 1, 1], [], []>} : vector<8x8xbf16>, vector<8x128xbf16>, vector<8x128xf32> -> vector<8x128xf32>
    %77 = arith.addf %76, %74 : vector<8x128xf32>
    %c2 = arith.constant 2 : index
    %c0_36 = arith.constant 0 : index
    %c0_37 = arith.constant 0 : index
    %78 = vector.load %arg6[%c2, %c0_36, %c0_37] : memref<20x128x128xbf16, #tpu.memory_space<vmem>>, vector<1x128x128xbf16>
    %79 = vector.shape_cast %78 : vector<1x128x128xbf16> to vector<128x128xbf16>
    %80 = arith.truncf %77 : vector<8x128xf32> to vector<8x128xbf16>
    %cst_38 = arith.constant dense<0.000000e+00> : vector<8x128xf32>
    %81 = tpu.matmul %80, %79, %cst_38 {dimension_numbers = #tpu.dot_dimension_numbers<[1], [0], [0], [1], [0, 0, 1, 1], [], []>} : vector<8x128xbf16>, vector<128x128xbf16>, vector<8x128xf32> -> vector<8x128xf32>
    %c2_39 = arith.constant 2 : index
    %c0_40 = arith.constant 0 : index
    %82 = vector.load %arg7[%c2_39, %c0_40] : memref<21x128xf32, #tpu.memory_space<vmem>>, vector<1x128xf32>
    %83 = vector.shape_cast %82 : vector<1x128xf32> to vector<128xf32>
    %84 = vector.shape_cast %83 : vector<128xf32> to vector<1x128xf32>
    %85 = vector.broadcast %84 : vector<1x128xf32> to vector<8x128xf32>
    %86 = arith.addf %81, %85 : vector<8x128xf32>
    %cst_41 = arith.constant 0.000000e+00 : f32
    %87 = vector.broadcast %cst_41 : f32 to vector<8x128xf32>
    %88 = arith.maximumf %86, %87 : vector<8x128xf32>
    %c5 = arith.constant 5 : index
    %c0_42 = arith.constant 0 : index
    %c0_43 = arith.constant 0 : index
    %89 = vector.load %arg6[%c5, %c0_42, %c0_43] : memref<20x128x128xbf16, #tpu.memory_space<vmem>>, vector<1x128x128xbf16>
    %90 = vector.shape_cast %89 : vector<1x128x128xbf16> to vector<128x128xbf16>
    %91 = arith.truncf %88 : vector<8x128xf32> to vector<8x128xbf16>
    %cst_44 = arith.constant dense<0.000000e+00> : vector<8x128xf32>
    %92 = tpu.matmul %91, %90, %cst_44 {dimension_numbers = #tpu.dot_dimension_numbers<[1], [0], [0], [1], [0, 0, 1, 1], [], []>} : vector<8x128xbf16>, vector<128x128xbf16>, vector<8x128xf32> -> vector<8x128xf32>
    %c5_45 = arith.constant 5 : index
    %c0_46 = arith.constant 0 : index
    %93 = vector.load %arg7[%c5_45, %c0_46] : memref<21x128xf32, #tpu.memory_space<vmem>>, vector<1x128xf32>
    %94 = vector.shape_cast %93 : vector<1x128xf32> to vector<128xf32>
    %95 = vector.shape_cast %94 : vector<128xf32> to vector<1x128xf32>
    %96 = vector.broadcast %95 : vector<1x128xf32> to vector<8x128xf32>
    %97 = arith.addf %92, %96 : vector<8x128xf32>
    %c8 = arith.constant 8 : index
    %c0_47 = arith.constant 0 : index
    %98 = vector.load %arg7[%c8, %c0_47] : memref<21x128xf32, #tpu.memory_space<vmem>>, vector<1x128xf32>
    %99 = vector.shape_cast %98 : vector<1x128xf32> to vector<128xf32>
    %100 = vector.shape_cast %99 : vector<128xf32> to vector<1x128xf32>
    %101 = vector.broadcast %100 : vector<1x128xf32> to vector<8x128xf32>
    %102 = arith.mulf %97, %101 : vector<8x128xf32>
    %c11 = arith.constant 11 : index
    %c0_48 = arith.constant 0 : index
    %103 = vector.load %arg7[%c11, %c0_48] : memref<21x128xf32, #tpu.memory_space<vmem>>, vector<1x128xf32>
    %104 = vector.shape_cast %103 : vector<1x128xf32> to vector<128xf32>
    %105 = vector.shape_cast %104 : vector<128xf32> to vector<1x128xf32>
    %106 = vector.broadcast %105 : vector<1x128xf32> to vector<8x128xf32>
    %107 = arith.addf %102, %106 : vector<8x128xf32>
    %cst_49 = arith.constant 0.000000e+00 : f32
    %108 = vector.broadcast %cst_49 : f32 to vector<8x128xf32>
    %109 = arith.maximumf %107, %108 : vector<8x128xf32>
    %c0_50 = arith.constant 0 : index
    %c0_51 = arith.constant 0 : index
    %c0_52 = arith.constant 0 : index
    %110 = vector.load %arg3[%c0_50, %c0_51, %c0_52] : memref<1x8x1xf32, #tpu.memory_space<vmem>>, vector<1x8x1xf32>
    %111 = vector.shape_cast %110 : vector<1x8x1xf32> to vector<8x1xf32>
    %112 = vector.broadcast %111 : vector<8x1xf32> to vector<8x128xf32>
    %113 = arith.mulf %109, %112 : vector<8x128xf32>
    %cst_53 = arith.constant dense<0.000000e+00> : vector<128xf32>
    %114 = vector.multi_reduction <add>, %113, %cst_53 [0] : vector<8x128xf32> to vector<128xf32>
    %115 = vector.shape_cast %114 : vector<128xf32> to vector<1x128xf32>
    %c6_54 = arith.constant 6 : index
    %c0_55 = arith.constant 0 : index
    %c0_56 = arith.constant 0 : index
    %116 = vector.load %arg6[%c6_54, %c0_55, %c0_56] : memref<20x128x128xbf16, #tpu.memory_space<vmem>>, vector<1x128x128xbf16>
    %117 = vector.shape_cast %116 : vector<1x128x128xbf16> to vector<128x128xbf16>
    %118 = arith.truncf %115 : vector<1x128xf32> to vector<1x128xbf16>
    %cst_57 = arith.constant dense<0.000000e+00> : vector<1x128xf32>
    %119 = tpu.matmul %118, %117, %cst_57 {dimension_numbers = #tpu.dot_dimension_numbers<[1], [0], [0], [1], [0, 0, 1, 1], [], []>} : vector<1x128xbf16>, vector<128x128xbf16>, vector<1x128xf32> -> vector<1x128xf32>
    %c12 = arith.constant 12 : index
    %c0_58 = arith.constant 0 : index
    %120 = vector.load %arg7[%c12, %c0_58] : memref<21x128xf32, #tpu.memory_space<vmem>>, vector<1x128xf32>
    %121 = vector.shape_cast %120 : vector<1x128xf32> to vector<128xf32>
    %122 = vector.shape_cast %121 : vector<128xf32> to vector<1x128xf32>
    %123 = arith.addf %119, %122 : vector<1x128xf32>
    %cst_59 = arith.constant 0.000000e+00 : f32
    %124 = vector.broadcast %cst_59 : f32 to vector<1x128xf32>
    %125 = arith.maximumf %123, %124 : vector<1x128xf32>
    %c0_60 = arith.constant 0 : index
    %c0_61 = arith.constant 0 : index
    %c0_62 = arith.constant 0 : index
    %126 = vector.load %arg4[%c0_60, %c0_61, %c0_62] : memref<1x32x1xf32, #tpu.memory_space<vmem>>, vector<1x32x1xf32>
    %127 = vector.shape_cast %126 : vector<1x32x1xf32> to vector<32x1xf32>
    %c7_63 = arith.constant 7 : index
    %c0_64 = arith.constant 0 : index
    %c0_65 = arith.constant 0 : index
    %128 = vector.load %arg6[%c7_63, %c0_64, %c0_65] : memref<20x128x128xbf16, #tpu.memory_space<vmem>>, vector<1x128x128xbf16>
    %129 = vector.shape_cast %128 : vector<1x128x128xbf16> to vector<128x128xbf16>
    %130 = arith.extf %129 : vector<128x128xbf16> to vector<128x128xf32>
    %cst_66 = arith.constant 0.000000e+00 : f32
    %131 = vector.broadcast %cst_66 : f32 to vector<25x128xf32>
    %132 = vector.extract_strided_slice %127 {offsets = [0, 0], sizes = [25, 1], strides = [1, 1]} : vector<32x1xf32> to vector<25x1xf32>
    %133 = vector.extract_strided_slice %130 {offsets = [0, 0], sizes = [1, 128], strides = [1, 1]} : vector<128x128xf32> to vector<1x128xf32>
    %134 = vector.shape_cast %133 : vector<1x128xf32> to vector<128xf32>
    %135 = vector.shape_cast %134 : vector<128xf32> to vector<1x128xf32>
    %136 = vector.broadcast %132 : vector<25x1xf32> to vector<25x128xf32>
    %137 = vector.broadcast %135 : vector<1x128xf32> to vector<25x128xf32>
    %138 = arith.mulf %136, %137 : vector<25x128xf32>
    %139 = arith.addf %131, %138 : vector<25x128xf32>
    %140 = vector.extract_strided_slice %127 {offsets = [1, 0], sizes = [25, 1], strides = [1, 1]} : vector<32x1xf32> to vector<25x1xf32>
    %141 = vector.extract_strided_slice %130 {offsets = [1, 0], sizes = [1, 128], strides = [1, 1]} : vector<128x128xf32> to vector<1x128xf32>
    %142 = vector.shape_cast %141 : vector<1x128xf32> to vector<128xf32>
    %143 = vector.shape_cast %142 : vector<128xf32> to vector<1x128xf32>
    %144 = vector.broadcast %140 : vector<25x1xf32> to vector<25x128xf32>
    %145 = vector.broadcast %143 : vector<1x128xf32> to vector<25x128xf32>
    %146 = arith.mulf %144, %145 : vector<25x128xf32>
    %147 = arith.addf %139, %146 : vector<25x128xf32>
    %148 = vector.extract_strided_slice %127 {offsets = [2, 0], sizes = [25, 1], strides = [1, 1]} : vector<32x1xf32> to vector<25x1xf32>
    %149 = vector.extract_strided_slice %130 {offsets = [2, 0], sizes = [1, 128], strides = [1, 1]} : vector<128x128xf32> to vector<1x128xf32>
    %150 = vector.shape_cast %149 : vector<1x128xf32> to vector<128xf32>
    %151 = vector.shape_cast %150 : vector<128xf32> to vector<1x128xf32>
    %152 = vector.broadcast %148 : vector<25x1xf32> to vector<25x128xf32>
    %153 = vector.broadcast %151 : vector<1x128xf32> to vector<25x128xf32>
    %154 = arith.mulf %152, %153 : vector<25x128xf32>
    %155 = arith.addf %147, %154 : vector<25x128xf32>
    %156 = vector.extract_strided_slice %127 {offsets = [3, 0], sizes = [25, 1], strides = [1, 1]} : vector<32x1xf32> to vector<25x1xf32>
    %157 = vector.extract_strided_slice %130 {offsets = [3, 0], sizes = [1, 128], strides = [1, 1]} : vector<128x128xf32> to vector<1x128xf32>
    %158 = vector.shape_cast %157 : vector<1x128xf32> to vector<128xf32>
    %159 = vector.shape_cast %158 : vector<128xf32> to vector<1x128xf32>
    %160 = vector.broadcast %156 : vector<25x1xf32> to vector<25x128xf32>
    %161 = vector.broadcast %159 : vector<1x128xf32> to vector<25x128xf32>
    %162 = arith.mulf %160, %161 : vector<25x128xf32>
    %163 = arith.addf %155, %162 : vector<25x128xf32>
    %164 = vector.extract_strided_slice %127 {offsets = [4, 0], sizes = [25, 1], strides = [1, 1]} : vector<32x1xf32> to vector<25x1xf32>
    %165 = vector.extract_strided_slice %130 {offsets = [4, 0], sizes = [1, 128], strides = [1, 1]} : vector<128x128xf32> to vector<1x128xf32>
    %166 = vector.shape_cast %165 : vector<1x128xf32> to vector<128xf32>
    %167 = vector.shape_cast %166 : vector<128xf32> to vector<1x128xf32>
    %168 = vector.broadcast %164 : vector<25x1xf32> to vector<25x128xf32>
    %169 = vector.broadcast %167 : vector<1x128xf32> to vector<25x128xf32>
    %170 = arith.mulf %168, %169 : vector<25x128xf32>
    %171 = arith.addf %163, %170 : vector<25x128xf32>
    %172 = vector.extract_strided_slice %127 {offsets = [5, 0], sizes = [25, 1], strides = [1, 1]} : vector<32x1xf32> to vector<25x1xf32>
    %173 = vector.extract_strided_slice %130 {offsets = [5, 0], sizes = [1, 128], strides = [1, 1]} : vector<128x128xf32> to vector<1x128xf32>
    %174 = vector.shape_cast %173 : vector<1x128xf32> to vector<128xf32>
    %175 = vector.shape_cast %174 : vector<128xf32> to vector<1x128xf32>
    %176 = vector.broadcast %172 : vector<25x1xf32> to vector<25x128xf32>
    %177 = vector.broadcast %175 : vector<1x128xf32> to vector<25x128xf32>
    %178 = arith.mulf %176, %177 : vector<25x128xf32>
    %179 = arith.addf %171, %178 : vector<25x128xf32>
    %180 = vector.extract_strided_slice %127 {offsets = [6, 0], sizes = [25, 1], strides = [1, 1]} : vector<32x1xf32> to vector<25x1xf32>
    %181 = vector.extract_strided_slice %130 {offsets = [6, 0], sizes = [1, 128], strides = [1, 1]} : vector<128x128xf32> to vector<1x128xf32>
    %182 = vector.shape_cast %181 : vector<1x128xf32> to vector<128xf32>
    %183 = vector.shape_cast %182 : vector<128xf32> to vector<1x128xf32>
    %184 = vector.broadcast %180 : vector<25x1xf32> to vector<25x128xf32>
    %185 = vector.broadcast %183 : vector<1x128xf32> to vector<25x128xf32>
    %186 = arith.mulf %184, %185 : vector<25x128xf32>
    %187 = arith.addf %179, %186 : vector<25x128xf32>
    %188 = vector.extract_strided_slice %127 {offsets = [7, 0], sizes = [25, 1], strides = [1, 1]} : vector<32x1xf32> to vector<25x1xf32>
    %189 = vector.extract_strided_slice %130 {offsets = [7, 0], sizes = [1, 128], strides = [1, 1]} : vector<128x128xf32> to vector<1x128xf32>
    %190 = vector.shape_cast %189 : vector<1x128xf32> to vector<128xf32>
    %191 = vector.shape_cast %190 : vector<128xf32> to vector<1x128xf32>
    %192 = vector.broadcast %188 : vector<25x1xf32> to vector<25x128xf32>
    %193 = vector.broadcast %191 : vector<1x128xf32> to vector<25x128xf32>
    %194 = arith.mulf %192, %193 : vector<25x128xf32>
    %195 = arith.addf %187, %194 : vector<25x128xf32>
    %c13 = arith.constant 13 : index
    %c0_67 = arith.constant 0 : index
    %196 = vector.load %arg7[%c13, %c0_67] : memref<21x128xf32, #tpu.memory_space<vmem>>, vector<1x128xf32>
    %197 = vector.shape_cast %196 : vector<1x128xf32> to vector<128xf32>
    %198 = vector.shape_cast %197 : vector<128xf32> to vector<1x128xf32>
    %199 = vector.broadcast %198 : vector<1x128xf32> to vector<25x128xf32>
    %200 = arith.addf %195, %199 : vector<25x128xf32>
    %cst_68 = arith.constant 0.000000e+00 : f32
    %201 = vector.broadcast %cst_68 : f32 to vector<25x128xf32>
    %202 = arith.maximumf %200, %201 : vector<25x128xf32>
    %cst_69 = arith.constant dense<0xFF800000> : vector<128xf32>
    %203 = vector.multi_reduction <maximumf>, %202, %cst_69 [0] : vector<25x128xf32> to vector<128xf32>
    %204 = vector.shape_cast %203 : vector<128xf32> to vector<1x128xf32>
    %c8_70 = arith.constant 8 : index
    %c0_71 = arith.constant 0 : index
    %c0_72 = arith.constant 0 : index
    %205 = vector.load %arg6[%c8_70, %c0_71, %c0_72] : memref<20x128x128xbf16, #tpu.memory_space<vmem>>, vector<1x128x128xbf16>
    %206 = vector.shape_cast %205 : vector<1x128x128xbf16> to vector<128x128xbf16>
    %207 = arith.truncf %204 : vector<1x128xf32> to vector<1x128xbf16>
    %cst_73 = arith.constant dense<0.000000e+00> : vector<1x128xf32>
    %208 = tpu.matmul %207, %206, %cst_73 {dimension_numbers = #tpu.dot_dimension_numbers<[1], [0], [0], [1], [0, 0, 1, 1], [], []>} : vector<1x128xbf16>, vector<128x128xbf16>, vector<1x128xf32> -> vector<1x128xf32>
    %c14 = arith.constant 14 : index
    %c0_74 = arith.constant 0 : index
    %209 = vector.load %arg7[%c14, %c0_74] : memref<21x128xf32, #tpu.memory_space<vmem>>, vector<1x128xf32>
    %210 = vector.shape_cast %209 : vector<1x128xf32> to vector<128xf32>
    %211 = vector.shape_cast %210 : vector<128xf32> to vector<1x128xf32>
    %212 = arith.addf %208, %211 : vector<1x128xf32>
    %cst_75 = arith.constant 0.000000e+00 : f32
    %213 = vector.broadcast %cst_75 : f32 to vector<1x128xf32>
    %214 = arith.maximumf %212, %213 : vector<1x128xf32>
    %c0_76 = arith.constant 0 : index
    %c0_77 = arith.constant 0 : index
    %c0_78 = arith.constant 0 : index
    %215 = vector.load %arg5[%c0_76, %c0_77, %c0_78] : memref<1x1x128xf32, #tpu.memory_space<vmem>>, vector<1x1x128xf32>
    %216 = vector.shape_cast %215 : vector<1x1x128xf32> to vector<1x128xf32>
    %c9_79 = arith.constant 9 : index
    %c0_80 = arith.constant 0 : index
    %c0_81 = arith.constant 0 : index
    %217 = vector.load %arg6[%c9_79, %c0_80, %c0_81] : memref<20x128x128xbf16, #tpu.memory_space<vmem>>, vector<1x128x128xbf16>
    %218 = vector.shape_cast %217 : vector<1x128x128xbf16> to vector<128x128xbf16>
    %219 = arith.truncf %216 : vector<1x128xf32> to vector<1x128xbf16>
    %cst_82 = arith.constant dense<0.000000e+00> : vector<1x128xf32>
    %220 = tpu.matmul %219, %218, %cst_82 {dimension_numbers = #tpu.dot_dimension_numbers<[1], [0], [0], [1], [0, 0, 1, 1], [], []>} : vector<1x128xbf16>, vector<128x128xbf16>, vector<1x128xf32> -> vector<1x128xf32>
    %c15 = arith.constant 15 : index
    %c0_83 = arith.constant 0 : index
    %221 = vector.load %arg7[%c15, %c0_83] : memref<21x128xf32, #tpu.memory_space<vmem>>, vector<1x128xf32>
    %222 = vector.shape_cast %221 : vector<1x128xf32> to vector<128xf32>
    %223 = vector.shape_cast %222 : vector<128xf32> to vector<1x128xf32>
    %224 = arith.addf %220, %223 : vector<1x128xf32>
    %cst_84 = arith.constant 0.000000e+00 : f32
    %225 = vector.broadcast %cst_84 : f32 to vector<1x128xf32>
    %226 = arith.maximumf %224, %225 : vector<1x128xf32>
    %c10_85 = arith.constant 10 : index
    %c0_86 = arith.constant 0 : index
    %c0_87 = arith.constant 0 : index
    %227 = vector.load %arg6[%c10_85, %c0_86, %c0_87] : memref<20x128x128xbf16, #tpu.memory_space<vmem>>, vector<1x128x128xbf16>
    %228 = vector.shape_cast %227 : vector<1x128x128xbf16> to vector<128x128xbf16>
    %229 = arith.truncf %226 : vector<1x128xf32> to vector<1x128xbf16>
    %cst_88 = arith.constant dense<0.000000e+00> : vector<1x128xf32>
    %230 = tpu.matmul %229, %228, %cst_88 {dimension_numbers = #tpu.dot_dimension_numbers<[1], [0], [0], [1], [0, 0, 1, 1], [], []>} : vector<1x128xbf16>, vector<128x128xbf16>, vector<1x128xf32> -> vector<1x128xf32>
    %c16 = arith.constant 16 : index
    %c0_89 = arith.constant 0 : index
    %231 = vector.load %arg7[%c16, %c0_89] : memref<21x128xf32, #tpu.memory_space<vmem>>, vector<1x128xf32>
    %232 = vector.shape_cast %231 : vector<1x128xf32> to vector<128xf32>
    %233 = vector.shape_cast %232 : vector<128xf32> to vector<1x128xf32>
    %234 = arith.addf %230, %233 : vector<1x128xf32>
    %cst_90 = arith.constant 0.000000e+00 : f32
    %235 = vector.broadcast %cst_90 : f32 to vector<1x128xf32>
    %236 = arith.maximumf %234, %235 : vector<1x128xf32>
    %c11_91 = arith.constant 11 : index
    %c0_92 = arith.constant 0 : index
    %c0_93 = arith.constant 0 : index
    %237 = vector.load %arg6[%c11_91, %c0_92, %c0_93] : memref<20x128x128xbf16, #tpu.memory_space<vmem>>, vector<1x128x128xbf16>
    %238 = vector.shape_cast %237 : vector<1x128x128xbf16> to vector<128x128xbf16>
    %239 = arith.truncf %125 : vector<1x128xf32> to vector<1x128xbf16>
    %cst_94 = arith.constant dense<0.000000e+00> : vector<1x128xf32>
    %240 = tpu.matmul %239, %238, %cst_94 {dimension_numbers = #tpu.dot_dimension_numbers<[1], [0], [0], [1], [0, 0, 1, 1], [], []>} : vector<1x128xbf16>, vector<128x128xbf16>, vector<1x128xf32> -> vector<1x128xf32>
    %c13_95 = arith.constant 13 : index
    %c0_96 = arith.constant 0 : index
    %c0_97 = arith.constant 0 : index
    %241 = vector.load %arg6[%c13_95, %c0_96, %c0_97] : memref<20x128x128xbf16, #tpu.memory_space<vmem>>, vector<1x128x128xbf16>
    %242 = vector.shape_cast %241 : vector<1x128x128xbf16> to vector<128x128xbf16>
    %243 = arith.truncf %214 : vector<1x128xf32> to vector<1x128xbf16>
    %cst_98 = arith.constant dense<0.000000e+00> : vector<1x128xf32>
    %244 = tpu.matmul %243, %242, %cst_98 {dimension_numbers = #tpu.dot_dimension_numbers<[1], [0], [0], [1], [0, 0, 1, 1], [], []>} : vector<1x128xbf16>, vector<128x128xbf16>, vector<1x128xf32> -> vector<1x128xf32>
    %245 = arith.addf %240, %244 : vector<1x128xf32>
    %c15_99 = arith.constant 15 : index
    %c0_100 = arith.constant 0 : index
    %c0_101 = arith.constant 0 : index
    %246 = vector.load %arg6[%c15_99, %c0_100, %c0_101] : memref<20x128x128xbf16, #tpu.memory_space<vmem>>, vector<1x128x128xbf16>
    %247 = vector.shape_cast %246 : vector<1x128x128xbf16> to vector<128x128xbf16>
    %248 = arith.truncf %236 : vector<1x128xf32> to vector<1x128xbf16>
    %cst_102 = arith.constant dense<0.000000e+00> : vector<1x128xf32>
    %249 = tpu.matmul %248, %247, %cst_102 {dimension_numbers = #tpu.dot_dimension_numbers<[1], [0], [0], [1], [0, 0, 1, 1], [], []>} : vector<1x128xbf16>, vector<128x128xbf16>, vector<1x128xf32> -> vector<1x128xf32>
    %250 = arith.addf %245, %249 : vector<1x128xf32>
    %c17 = arith.constant 17 : index
    %c0_103 = arith.constant 0 : index
    %251 = vector.load %arg7[%c17, %c0_103] : memref<21x128xf32, #tpu.memory_space<vmem>>, vector<1x128xf32>
    %252 = vector.shape_cast %251 : vector<1x128xf32> to vector<128xf32>
    %253 = vector.shape_cast %252 : vector<128xf32> to vector<1x128xf32>
    %254 = arith.addf %250, %253 : vector<1x128xf32>
    %cst_104 = arith.constant 0.000000e+00 : f32
    %255 = vector.broadcast %cst_104 : f32 to vector<1x128xf32>
    %256 = arith.maximumf %254, %255 : vector<1x128xf32>
    %c12_105 = arith.constant 12 : index
    %c0_106 = arith.constant 0 : index
    %c0_107 = arith.constant 0 : index
    %257 = vector.load %arg6[%c12_105, %c0_106, %c0_107] : memref<20x128x128xbf16, #tpu.memory_space<vmem>>, vector<1x128x128xbf16>
    %258 = vector.shape_cast %257 : vector<1x128x128xbf16> to vector<128x128xbf16>
    %259 = arith.truncf %125 : vector<1x128xf32> to vector<1x128xbf16>
    %cst_108 = arith.constant dense<0.000000e+00> : vector<1x128xf32>
    %260 = tpu.matmul %259, %258, %cst_108 {dimension_numbers = #tpu.dot_dimension_numbers<[1], [0], [0], [1], [0, 0, 1, 1], [], []>} : vector<1x128xbf16>, vector<128x128xbf16>, vector<1x128xf32> -> vector<1x128xf32>
    %c14_109 = arith.constant 14 : index
    %c0_110 = arith.constant 0 : index
    %c0_111 = arith.constant 0 : index
    %261 = vector.load %arg6[%c14_109, %c0_110, %c0_111] : memref<20x128x128xbf16, #tpu.memory_space<vmem>>, vector<1x128x128xbf16>
    %262 = vector.shape_cast %261 : vector<1x128x128xbf16> to vector<128x128xbf16>
    %263 = arith.truncf %214 : vector<1x128xf32> to vector<1x128xbf16>
    %cst_112 = arith.constant dense<0.000000e+00> : vector<1x128xf32>
    %264 = tpu.matmul %263, %262, %cst_112 {dimension_numbers = #tpu.dot_dimension_numbers<[1], [0], [0], [1], [0, 0, 1, 1], [], []>} : vector<1x128xbf16>, vector<128x128xbf16>, vector<1x128xf32> -> vector<1x128xf32>
    %265 = arith.addf %260, %264 : vector<1x128xf32>
    %c16_113 = arith.constant 16 : index
    %c0_114 = arith.constant 0 : index
    %c0_115 = arith.constant 0 : index
    %266 = vector.load %arg6[%c16_113, %c0_114, %c0_115] : memref<20x128x128xbf16, #tpu.memory_space<vmem>>, vector<1x128x128xbf16>
    %267 = vector.shape_cast %266 : vector<1x128x128xbf16> to vector<128x128xbf16>
    %268 = arith.truncf %236 : vector<1x128xf32> to vector<1x128xbf16>
    %cst_116 = arith.constant dense<0.000000e+00> : vector<1x128xf32>
    %269 = tpu.matmul %268, %267, %cst_116 {dimension_numbers = #tpu.dot_dimension_numbers<[1], [0], [0], [1], [0, 0, 1, 1], [], []>} : vector<1x128xbf16>, vector<128x128xbf16>, vector<1x128xf32> -> vector<1x128xf32>
    %270 = arith.addf %265, %269 : vector<1x128xf32>
    %c18 = arith.constant 18 : index
    %c0_117 = arith.constant 0 : index
    %271 = vector.load %arg7[%c18, %c0_117] : memref<21x128xf32, #tpu.memory_space<vmem>>, vector<1x128xf32>
    %272 = vector.shape_cast %271 : vector<1x128xf32> to vector<128xf32>
    %273 = vector.shape_cast %272 : vector<128xf32> to vector<1x128xf32>
    %274 = arith.addf %270, %273 : vector<1x128xf32>
    %cst_118 = arith.constant 0.000000e+00 : f32
    %275 = vector.broadcast %cst_118 : f32 to vector<1x128xf32>
    %276 = arith.maximumf %274, %275 : vector<1x128xf32>
    %c17_119 = arith.constant 17 : index
    %c0_120 = arith.constant 0 : index
    %c0_121 = arith.constant 0 : index
    %277 = vector.load %arg6[%c17_119, %c0_120, %c0_121] : memref<20x128x128xbf16, #tpu.memory_space<vmem>>, vector<1x128x128xbf16>
    %278 = vector.shape_cast %277 : vector<1x128x128xbf16> to vector<128x128xbf16>
    %279 = arith.truncf %256 : vector<1x128xf32> to vector<1x128xbf16>
    %cst_122 = arith.constant dense<0.000000e+00> : vector<1x128xf32>
    %280 = tpu.matmul %279, %278, %cst_122 {dimension_numbers = #tpu.dot_dimension_numbers<[1], [0], [0], [1], [0, 0, 1, 1], [], []>} : vector<1x128xbf16>, vector<128x128xbf16>, vector<1x128xf32> -> vector<1x128xf32>
    %c18_123 = arith.constant 18 : index
    %c0_124 = arith.constant 0 : index
    %c0_125 = arith.constant 0 : index
    %281 = vector.load %arg6[%c18_123, %c0_124, %c0_125] : memref<20x128x128xbf16, #tpu.memory_space<vmem>>, vector<1x128x128xbf16>
    %282 = vector.shape_cast %281 : vector<1x128x128xbf16> to vector<128x128xbf16>
    %283 = arith.truncf %276 : vector<1x128xf32> to vector<1x128xbf16>
    %cst_126 = arith.constant dense<0.000000e+00> : vector<1x128xf32>
    %284 = tpu.matmul %283, %282, %cst_126 {dimension_numbers = #tpu.dot_dimension_numbers<[1], [0], [0], [1], [0, 0, 1, 1], [], []>} : vector<1x128xbf16>, vector<128x128xbf16>, vector<1x128xf32> -> vector<1x128xf32>
    %285 = arith.addf %280, %284 : vector<1x128xf32>
    %c19 = arith.constant 19 : index
    %c0_127 = arith.constant 0 : index
    %286 = vector.load %arg7[%c19, %c0_127] : memref<21x128xf32, #tpu.memory_space<vmem>>, vector<1x128xf32>
    %287 = vector.shape_cast %286 : vector<1x128xf32> to vector<128xf32>
    %288 = vector.shape_cast %287 : vector<128xf32> to vector<1x128xf32>
    %289 = arith.addf %285, %288 : vector<1x128xf32>
    %cst_128 = arith.constant 0.000000e+00 : f32
    %290 = vector.broadcast %cst_128 : f32 to vector<1x128xf32>
    %291 = arith.maximumf %289, %290 : vector<1x128xf32>
    %c19_129 = arith.constant 19 : index
    %c0_130 = arith.constant 0 : index
    %c0_131 = arith.constant 0 : index
    %292 = vector.load %arg6[%c19_129, %c0_130, %c0_131] : memref<20x128x128xbf16, #tpu.memory_space<vmem>>, vector<1x128x128xbf16>
    %293 = vector.shape_cast %292 : vector<1x128x128xbf16> to vector<128x128xbf16>
    %294 = arith.truncf %291 : vector<1x128xf32> to vector<1x128xbf16>
    %cst_132 = arith.constant dense<0.000000e+00> : vector<1x128xf32>
    %295 = tpu.matmul %294, %293, %cst_132 {dimension_numbers = #tpu.dot_dimension_numbers<[1], [0], [0], [1], [0, 0, 1, 1], [], []>} : vector<1x128xbf16>, vector<128x128xbf16>, vector<1x128xf32> -> vector<1x128xf32>
    %c20 = arith.constant 20 : index
    %c0_133 = arith.constant 0 : index
    %296 = vector.load %arg7[%c20, %c0_133] : memref<21x128xf32, #tpu.memory_space<vmem>>, vector<1x128xf32>
    %297 = vector.shape_cast %296 : vector<1x128xf32> to vector<128xf32>
    %298 = vector.shape_cast %297 : vector<128xf32> to vector<1x128xf32>
    %299 = arith.addf %295, %298 : vector<1x128xf32>
    %c0_134 = arith.constant 0 : index
    %c0_135 = arith.constant 0 : index
    %c0_136 = arith.constant 0 : index
    %300 = vector.load %arg8[%c0_134, %c0_135, %c0_136] : memref<1x1x128xf32, #tpu.memory_space<vmem>>, vector<1x1x128xf32>
    %301 = vector.shape_cast %300 : vector<1x1x128xf32> to vector<1x128xf32>
    %302 = vector.shape_cast %299 : vector<1x128xf32> to vector<1x1x128xf32>
    tpu.vector_store %arg8[%c0_134, %c0_135, %c0_136], %302 {strides = array<i32>} : memref<1x1x128xf32, #tpu.memory_space<vmem>>, vector<1x1x128xf32>,
    return
  }
  func.func @transform_0(%arg0: i32) -> (i32, i32, i32) {
    %c0_i32 = arith.constant 0 : i32
    %c0_i32_0 = arith.constant 0 : i32
    %c0_i32_1 = arith.constant 0 : i32
    return %arg0, %c0_i32, %c0_i32_0 : i32, i32, i32
  }
  func.func @transform_1(%arg0: i32) -> (i32, i32, i32) {
    %c0_i32 = arith.constant 0 : i32
    %c0_i32_0 = arith.constant 0 : i32
    %c0_i32_1 = arith.constant 0 : i32
    return %arg0, %c0_i32, %c0_i32_0 : i32, i32, i32
  }
  func.func @transform_2(%arg0: i32) -> (i32, i32, i32) {
    %c0_i32 = arith.constant 0 : i32
    %c0_i32_0 = arith.constant 0 : i32
    %c0_i32_1 = arith.constant 0 : i32
    return %arg0, %c0_i32, %c0_i32_0 : i32, i32, i32
  }
  func.func @transform_3(%arg0: i32) -> (i32, i32, i32) {
    %c0_i32 = arith.constant 0 : i32
    %c0_i32_0 = arith.constant 0 : i32
    %c0_i32_1 = arith.constant 0 : i32
    return %arg0, %c0_i32, %c0_i32_0 : i32, i32, i32
  }
  func.func @transform_4(%arg0: i32) -> (i32, i32, i32) {
    %c0_i32 = arith.constant 0 : i32
    %c0_i32_0 = arith.constant 0 : i32
    %c0_i32_1 = arith.constant 0 : i32
    return %arg0, %c0_i32, %c0_i32_0 : i32, i32, i32
  }
  func.func @transform_5(%arg0: i32) -> (i32, i32, i32) {
    %c0_i32 = arith.constant 0 : i32
    %c0_i32_0 = arith.constant 0 : i32
    %c0_i32_1 = arith.constant 0 : i32
    %c0_i32_2 = arith.constant 0 : i32
    return %c0_i32, %c0_i32_0, %c0_i32_1 : i32, i32, i32
  }
  func.func @transform_6(%arg0: i32) -> (i32, i32) {
    %c0_i32 = arith.constant 0 : i32
    %c0_i32_0 = arith.constant 0 : i32
    %c0_i32_1 = arith.constant 0 : i32
    return %c0_i32, %c0_i32_0 : i32, i32
  }
  func.func @transform_7(%arg0: i32) -> (i32, i32, i32) {
    %c0_i32 = arith.constant 0 : i32
    %c0_i32_0 = arith.constant 0 : i32
    %c0_i32_1 = arith.constant 0 : i32
    return %arg0, %c0_i32, %c0_i32_0 : i32, i32, i32
  }
}

</mosaic_0001>

<llo_original>
// kernel: a2hnet_forward.1
$region0: #{a2hnet_forward.1}
  #allocation0 [shape = 'u32[]', space=smem, size = 0x4, offset = 0x4, fixed_abs, tag = 'smem constant byte address 0x4 - core index']
  #allocation1 [shape = 'u32[144,128]{1,0:T(1,128)}', space=vmem, size = 0x12000, scoped, tag = 'internal scratch']
  %s0 = inlined_call_operand.hbm [shape: f32[2,8,8], index: 0, kind: input, shape index: {}]
  %s1 = inlined_call_operand.vmem [shape: f32[2,8,128], index: 1, kind: input, shape index: {}]
  %s2 = inlined_call_operand.vmem [shape: f32[2,8,1], index: 2, kind: input, shape index: {}]
  %s3 = inlined_call_operand.vmem [shape: f32[2,32,1], index: 3, kind: input, shape index: {}]
  %s4 = inlined_call_operand.vmem [shape: f32[2,1,128], index: 4, kind: input, shape index: {}]
  %s5 = inlined_call_operand.vmem [shape: bf16[20,128,128], index: 5, kind: input, shape index: {}]
  %s6 = inlined_call_operand.vmem [shape: f32[21,128], index: 6, kind: input, shape index: {}]
  %s7 = inlined_call_operand.vmem [shape: f32[2,1,128], index: 7, kind: output, shape index: {}]
  %s8 = sld [smem:[#allocation0]]
  $region65: #{a2hnet_forward.1} parent=0
    _
  %s10 = ssub.s32 1, %s8
  %s11 = scalar_select 0, %s10, %s8
  $region1: #{a2hnet_forward.1} parent=0
    #allocation2 [shape = 'u8[8192]{0}', space=vmem, size = 0x2000, scoped, tag = 'input window, operand 0']
    #allocation3 [shape = 's32[2]{0}', space=sflag, size = 0x8, scoped, tag = 'scoped memory for a2hnet_forward.1']
    %12 = vsyncpa [#allocation3], 0
    %s13 = scalar_lea.sflag [#allocation3], 1
    %14 = vsyncpa %s13, 0
    loop: start=0, step=1, limit=4
    $region2: #{a2hnet_forward.1} parent=1 // loop_pre_header
      _
    $region3: #{a2hnet_forward.1} parent=1 // loop_header
      %s16 = sphi 0, %s20
      %p17 = scmp.ge.s32.totalorder %s16, 4
      %s26 = sphi 0, %s28
      %s29 = sphi 0, %s26
      %s30 = sphi 0, %s29
      %s46 = sphi 0, %s30
      %s52 = sphi 0, %s54
      %s55 = sphi 0, %s52
      %s56 = sphi 0, %s55
      %s72 = sphi 0, %s56
      %s78 = sphi 0, %s80
      %s81 = sphi 0, %s78
      %s82 = sphi 0, %s81
      %s98 = sphi 0, %s82
      %s104 = sphi 0, %s106
      %s107 = sphi 0, %s104
      %s108 = sphi 0, %s107
      %s124 = sphi 0, %s108
      %s130 = sphi 0, %s132
      %s133 = sphi 0, %s130
      %s134 = sphi 0, %s133
      %s150 = sphi 0, %s134
      %s154 = sphi 0, %s154
      %s156 = sphi 0, %s154
      %s157 = sphi 0, %s156
      %s171 = sphi 0, %s157
      %s175 = sphi 0, %s175
      %s177 = sphi 0, %s175
      %s178 = sphi 0, %s177
      %s192 = sphi 0, %s178
      %s198 = sphi 0, %s200
      %s201 = sphi 0, %s198
      %s202 = sphi 0, %s201
      %s218 = sphi 0, %s202
    $region4: #{a2hnet_forward.1} parent=1 // loop_header_branch
      %19 = sbr.rel (%p17) target = $region8
    $region5: #{a2hnet_forward.1} parent=1 // loop_body
      %s21 = ssub.s32 %s16, 1
      %s22 = ssub.s32 %s16, 2
      %s23 = sadd.s32 %s16, 1
      %s24 = ssub.s32 %s16, %s23
      %p25 = scmp.eq.s32.totalorder %s24, 0
      %s27 = sadd.s32 %s26, 1
      %s28 = scalar_select %p25, %s26, %s27
      %p31 = pneg %p25
      %p32 = scmp.eq.s32.totalorder %s16, 1
      %p33 = por %p31, %p32
      %p34 = scmp.ne.s32.totalorder %s26, %s29
      %p35 = scmp.eq.s32.totalorder %s16, 0
      %p36 = por %p34, %p35
      %p37 = scmp.ne.s32.totalorder %s26, %s29
      %p38 = scmp.eq.s32.totalorder %s21, 1
      %p39 = por %p37, %p38
      %p40 = scmp.ne.s32.totalorder %s29, %s30
      %p41 = scmp.eq.s32.totalorder %s21, 0
      %p42 = por %p40, %p41
      %p43 = scmp.ne.s32.totalorder %s29, %s30
      %p44 = scmp.eq.s32.totalorder %s22, 1
      %p45 = por %p43, %p44
      %p47 = scmp.ne.s32.totalorder %s30, %s46
      %p48 = scmp.eq.s32.totalorder %s22, 0
      %p49 = por %p47, %p48
      %s50 = ssub.s32 %s16, %s23
      %p51 = scmp.eq.s32.totalorder %s50, 0
      %s53 = sadd.s32 %s52, 1
      %s54 = scalar_select %p51, %s52, %s53
      %p57 = pneg %p51
      %p58 = scmp.eq.s32.totalorder %s16, 1
      %p59 = por %p57, %p58
      %p60 = scmp.ne.s32.totalorder %s52, %s55
      %p61 = scmp.eq.s32.totalorder %s16, 0
      %p62 = por %p60, %p61
      %p63 = scmp.ne.s32.totalorder %s52, %s55
      %p64 = scmp.eq.s32.totalorder %s21, 1
      %p65 = por %p63, %p64
      %p66 = scmp.ne.s32.totalorder %s55, %s56
      %p67 = scmp.eq.s32.totalorder %s21, 0
      %p68 = por %p66, %p67
      %p69 = scmp.ne.s32.totalorder %s55, %s56
      %p70 = scmp.eq.s32.totalorder %s22, 1
      %p71 = por %p69, %p70
      %p73 = scmp.ne.s32.totalorder %s56, %s72
      %p74 = scmp.eq.s32.totalorder %s22, 0
      %p75 = por %p73, %p74
      %s76 = ssub.s32 %s16, %s23
      %p77 = scmp.eq.s32.totalorder %s76, 0
      %s79 = sadd.s32 %s78, 1
      %s80 = scalar_select %p77, %s78, %s79
      %p83 = pneg %p77
      %p84 = scmp.eq.s32.totalorder %s16, 1
      %p85 = por %p83, %p84
      %p86 = scmp.ne.s32.totalorder %s78, %s81
      %p87 = scmp.eq.s32.totalorder %s16, 0
      %p88 = por %p86, %p87
      %p89 = scmp.ne.s32.totalorder %s78, %s81
      %p90 = scmp.eq.s32.totalorder %s21, 1
      %p91 = por %p89, %p90
      %p92 = scmp.ne.s32.totalorder %s81, %s82
      %p93 = scmp.eq.s32.totalorder %s21, 0
      %p94 = por %p92, %p93
      %p95 = scmp.ne.s32.totalorder %s81, %s82
      %p96 = scmp.eq.s32.totalorder %s22, 1
      %p97 = por %p95, %p96
      %p99 = scmp.ne.s32.totalorder %s82, %s98
      %p100 = scmp.eq.s32.totalorder %s22, 0
      %p101 = por %p99, %p100
      %s102 = ssub.s32 %s16, %s23
      %p103 = scmp.eq.s32.totalorder %s102, 0
      %s105 = sadd.s32 %s104, 1
      %s106 = scalar_select %p103, %s104, %s105
      %p109 = pneg %p103
      %p110 = scmp.eq.s32.totalorder %s16, 1
      %p111 = por %p109, %p110
      %p112 = scmp.ne.s32.totalorder %s104, %s107
      %p113 = scmp.eq.s32.totalorder %s16, 0
      %p114 = por %p112, %p113
      %p115 = scmp.ne.s32.totalorder %s104, %s107
      %p116 = scmp.eq.s32.totalorder %s21, 1
      %p117 = por %p115, %p116
      %p118 = scmp.ne.s32.totalorder %s107, %s108
      %p119 = scmp.eq.s32.totalorder %s21, 0
      %p120 = por %p118, %p119
      %p121 = scmp.ne.s32.totalorder %s107, %s108
      %p122 = scmp.eq.s32.totalorder %s22, 1
      %p123 = por %p121, %p122
      %p125 = scmp.ne.s32.totalorder %s108, %s124
      %p126 = scmp.eq.s32.totalorder %s22, 0
      %p127 = por %p125, %p126
      %s128 = ssub.s32 %s16, %s23
      %p129 = scmp.eq.s32.totalorder %s128, 0
      %s131 = sadd.s32 %s130, 1
      %s132 = scalar_select %p129, %s130, %s131
      %p135 = pneg %p129
      %p136 = scmp.eq.s32.totalorder %s16, 1
      %p137 = por %p135, %p136
      %p138 = scmp.ne.s32.totalorder %s130, %s133
      %p139 = scmp.eq.s32.totalorder %s16, 0
      %p140 = por %p138, %p139
      %p141 = scmp.ne.s32.totalorder %s130, %s133
      %p142 = scmp.eq.s32.totalorder %s21, 1
      %p143 = por %p141, %p142
      %p144 = scmp.ne.s32.totalorder %s133, %s134
      %p145 = scmp.eq.s32.totalorder %s21, 0
      %p146 = por %p144, %p145
      %p147 = scmp.ne.s32.totalorder %s133, %s134
      %p148 = scmp.eq.s32.totalorder %s22, 1
      %p149 = por %p147, %p148
      %p151 = scmp.ne.s32.totalorder %s134, %s150
      %p152 = scmp.eq.s32.totalorder %s22, 0
      %p153 = por %p151, %p152
      %s155 = sadd.s32 %s154, 1
      %p158 = scmp.eq.s32.totalorder %s16, 1
      %p159 = scmp.ne.s32.totalorder %s154, %s156
      %p160 = scmp.eq.s32.totalorder %s16, 0
      %p161 = por %p159, %p160
      %p162 = scmp.ne.s32.totalorder %s154, %s156
      %p163 = scmp.eq.s32.totalorder %s21, 1
      %p164 = por %p162, %p163
      %p165 = scmp.ne.s32.totalorder %s156, %s157
      %p166 = scmp.eq.s32.totalorder %s21, 0
      %p167 = por %p165, %p166
      %p168 = scmp.ne.s32.totalorder %s156, %s157
      %p169 = scmp.eq.s32.totalorder %s22, 1
      %p170 = por %p168, %p169
      %p172 = scmp.ne.s32.totalorder %s157, %s171
      %p173 = scmp.eq.s32.totalorder %s22, 0
      %p174 = por %p172, %p173
      %s176 = sadd.s32 %s175, 1
      %p179 = scmp.eq.s32.totalorder %s16, 1
      %p180 = scmp.ne.s32.totalorder %s175, %s177
      %p181 = scmp.eq.s32.totalorder %s16, 0
      %p182 = por %p180, %p181
      %p183 = scmp.ne.s32.totalorder %s175, %s177
      %p184 = scmp.eq.s32.totalorder %s21, 1
      %p185 = por %p183, %p184
      %p186 = scmp.ne.s32.totalorder %s177, %s178
      %p187 = scmp.eq.s32.totalorder %s21, 0
      %p188 = por %p186, %p187
      %p189 = scmp.ne.s32.totalorder %s177, %s178
      %p190 = scmp.eq.s32.totalorder %s22, 1
      %p191 = por %p189, %p190
      %p193 = scmp.ne.s32.totalorder %s178, %s192
      %p194 = scmp.eq.s32.totalorder %s22, 0
      %p195 = por %p193, %p194
      %s196 = ssub.s32 %s16, %s23
      %p197 = scmp.eq.s32.totalorder %s196, 0
      %s199 = sadd.s32 %s198, 1
      %s200 = scalar_select %p197, %s198, %s199
      %p203 = pneg %p197
      %p204 = scmp.eq.s32.totalorder %s16, 1
      %p205 = por %p203, %p204
      %p206 = scmp.ne.s32.totalorder %s198, %s201
      %p207 = scmp.eq.s32.totalorder %s16, 0
      %p208 = por %p206, %p207
      %p209 = scmp.ne.s32.totalorder %s198, %s201
      %p210 = scmp.eq.s32.totalorder %s21, 1
      %p211 = por %p209, %p210
      %p212 = scmp.ne.s32.totalorder %s201, %s202
      %p213 = scmp.eq.s32.totalorder %s21, 0
      %p214 = por %p212, %p213
      %p215 = scmp.ne.s32.totalorder %s201, %s202
      %p216 = scmp.eq.s32.totalorder %s22, 1
      %p217 = por %p215, %p216
      %p219 = scmp.ne.s32.totalorder %s202, %s218
      %p220 = scmp.eq.s32.totalorder %s22, 0
      %p221 = por %p219, %p220
      %p222 = scmp.le.s32.totalorder 1, %s16
      %p223 = scmp.lt.s32.totalorder %s16, 3
      %p224 = pnand %p222, %p223
      %p225 = pneg %p224
      // Predicated region
      $region9: #{a2hnet_forward.1} parent=5 // pred_check
        _
      $region10: #{a2hnet_forward.1} parent=5 // pred_check_branch
        %227 = sbr.rel (%p224) target = $region12
      $region11: #{a2hnet_forward.1} parent=5 // pred_region
        %s228 = ssub.s32 %s16, 1
        // Predicated region
        $region13: #{a2hnet_forward.1} parent=11 // pred_check
          %p229 = pneg %p167
        $region14: #{a2hnet_forward.1} parent=11 // pred_check_branch
          %231 = sbr.rel (%p229) target = $region16
        $region15: #{a2hnet_forward.1} parent=11 // pred_region
          _
        $region16: #{a2hnet_forward.1} parent=11 // pred_fallthru
          _
        // Predicated region
        $region17: #{a2hnet_forward.1} parent=11 // pred_check
          %p232 = pneg %p188
        $region18: #{a2hnet_forward.1} parent=11 // pred_check_branch
          %234 = sbr.rel (%p232) target = $region20
        $region19: #{a2hnet_forward.1} parent=11 // pred_region
          _
        $region20: #{a2hnet_forward.1} parent=11 // pred_fallthru
          _
      $region12: #{a2hnet_forward.1} parent=5 // pred_fallthru
        _
      %p235 = scmp.lt.s32.totalorder %s16, 2
      // Predicated region
      $region21: #{a2hnet_forward.1} parent=5 // pred_check
        %p236 = pneg %p235
      $region22: #{a2hnet_forward.1} parent=5 // pred_check_branch
        %238 = sbr.rel (%p236) target = $region24
      $region23: #{a2hnet_forward.1} parent=5 // pred_region
        // Predicated region
        $region25: #{a2hnet_forward.1} parent=23 // pred_check
          %p239 = pneg %p36
        $region26: #{a2hnet_forward.1} parent=23 // pred_check_branch
          %241 = sbr.rel (%p239) target = $region28
        $region27: #{a2hnet_forward.1} parent=23 // pred_region
          %s242 = sand.u32 %s26, 1
          %s243 = scalar_lea.sflag [#allocation3], %s242
          %s244 = sand.u32 %s26, 1
          %s245 = smul.addr %s244, 8
          %s246 = scalar_lea.vmem [#allocation2], %s245
          %s248 = ssub.s32 128, 128
          %249 = vsyncadd %s243, %s248
          %s250 = smul.addr %s16, 128
          %s251 = scalar_lea.hbm %s0, %s250
          %s253 = sshll.u32 %s246, 4
          %s254 = int_to_ptr.vmem [resolvable:$true] %s253
          %256 = dma.hbm_to_vmem [thread:$0]  %s251, 128, %s254, %s243
        $region28: #{a2hnet_forward.1} parent=23 // pred_fallthru
          _
        // Predicated region
        $region29: #{a2hnet_forward.1} parent=23 // pred_check
          %p257 = pneg %p62
        $region30: #{a2hnet_forward.1} parent=23 // pred_check_branch
          %259 = sbr.rel (%p257) target = $region32
        $region31: #{a2hnet_forward.1} parent=23 // pred_region
          %p260 = scmp.lt.s32.totalorder %s16, 1
          %s261 = scalar_select %p260, %s16, 1
          %s262 = smul.addr %s261, 8
          %s263 = scalar_lea.vmem %s1, %s262
        $region32: #{a2hnet_forward.1} parent=23 // pred_fallthru
          _
        // Predicated region
        $region33: #{a2hnet_forward.1} parent=23 // pred_check
          %p264 = pneg %p88
        $region34: #{a2hnet_forward.1} parent=23 // pred_check_branch
          %266 = sbr.rel (%p264) target = $region36
        $region35: #{a2hnet_forward.1} parent=23 // pred_region
          %p267 = scmp.lt.s32.totalorder %s16, 1
          %s268 = scalar_select %p267, %s16, 1
          %s269 = smul.addr %s268, 8
          %s270 = scalar_lea.vmem %s2, %s269
        $region36: #{a2hnet_forward.1} parent=23 // pred_fallthru
          _
        // Predicated region
        $region37: #{a2hnet_forward.1} parent=23 // pred_check
          %p271 = pneg %p114
        $region38: #{a2hnet_forward.1} parent=23 // pred_check_branch
          %273 = sbr.rel (%p271) target = $region40
        $region39: #{a2hnet_forward.1} parent=23 // pred_region
          %p274 = scmp.lt.s32.totalorder %s16, 1
          %s275 = scalar_select %p274, %s16, 1
          %s276 = smul.addr %s275, 4
          %s277 = smul.addr %s276, 8
          %s278 = scalar_lea.vmem %s3, %s277
        $region40: #{a2hnet_forward.1} parent=23 // pred_fallthru
          _
        // Predicated region
        $region41: #{a2hnet_forward.1} parent=23 // pred_check
          %p279 = pneg %p140
        $region42: #{a2hnet_forward.1} parent=23 // pred_check_branch
          %281 = sbr.rel (%p279) target = $region44
        $region43: #{a2hnet_forward.1} parent=23 // pred_region
          %p282 = scmp.lt.s32.totalorder %s16, 1
          %s283 = scalar_select %p282, %s16, 1
          %s284 = scalar_lea.vmem %s4, %s283
        $region44: #{a2hnet_forward.1} parent=23 // pred_fallthru
          _
      $region24: #{a2hnet_forward.1} parent=5 // pred_fallthru
        _
      %p285 = scmp.le.s32.totalorder 1, %s16
      %p286 = scmp.lt.s32.totalorder %s16, 3
      %p287 = pnand %p285, %p286
      %p288 = pneg %p287
      // Predicated region
      $region45: #{a2hnet_forward.1} parent=5 // pred_check
        _
      $region46: #{a2hnet_forward.1} parent=5 // pred_check_branch
        %290 = sbr.rel (%p287) target = $region48
      $region47: #{a2hnet_forward.1} parent=5 // pred_region
        %s291 = ssub.s32 %s16, 1
        %s292 = sand.u32 %s29, 1
        %s293 = scalar_lea.sflag [#allocation3], %s292
        %s294 = sand.u32 %s29, 1
        %s295 = smul.addr %s294, 8
        %s296 = scalar_lea.vmem [#allocation2], %s295
        // Predicated region
        $region49: #{a2hnet_forward.1} parent=47 // pred_check
          %p297 = pneg %p42
        $region50: #{a2hnet_forward.1} parent=47 // pred_check_branch
          %299 = sbr.rel (%p297) target = $region52
        $region51: #{a2hnet_forward.1} parent=47 // pred_region
          %300 = dma.done %s293, 128
        $region52: #{a2hnet_forward.1} parent=47 // pred_fallthru
          _
        %s301 = sand.u32 %s29, 1
        %s302 = scalar_lea.sflag [#allocation3], %s301
        %s303 = sand.u32 %s29, 1
        %s304 = smul.addr %s303, 8
        %s305 = scalar_lea.vmem [#allocation2], %s304
        %p306 = pneg %p42
        %p307 = pneg %p39
        %p308 = scmp.lt.s32.totalorder %s21, 1
        %s309 = scalar_select %p308, %s21, 1
        %s310 = smul.addr %s309, 8
        %s311 = scalar_lea.vmem %s1, %s310
        %p312 = pneg %p68
        %p313 = pneg %p65
        %p314 = scmp.lt.s32.totalorder %s21, 1
        %s315 = scalar_select %p314, %s21, 1
        %s316 = smul.addr %s315, 8
        %s317 = scalar_lea.vmem %s2, %s316
        %p318 = pneg %p94
        %p319 = pneg %p91
        %p320 = scmp.lt.s32.totalorder %s21, 1
        %s321 = scalar_select %p320, %s21, 1
        %s322 = smul.addr %s321, 4
        %s323 = smul.addr %s322, 8
        %s324 = scalar_lea.vmem %s3, %s323
        %p325 = pneg %p120
        %p326 = pneg %p117
        %p327 = scmp.lt.s32.totalorder %s21, 1
        %s328 = scalar_select %p327, %s21, 1
        %s329 = scalar_lea.vmem %s4, %s328
        %p330 = pneg %p146
        %p331 = pneg %p143
        %p332 = pneg %p167
        %p333 = pneg %p164
        %p334 = pneg %p188
        %p335 = pneg %p185
        %p336 = pneg %p214
        %p337 = pneg %p211
        %p338 = scmp.lt.s32.totalorder %s21, 1
        %s339 = scalar_select %p338, %s21, 1
        %s340 = scalar_lea.vmem %s7, %s339
        %p341 = scmp.lt.s32.totalorder %s21, 1
        %s342 = scalar_select %p341, %s21, 1
        %s343 = smul.addr %s342, 8
        %s344 = scalar_lea.vmem %s1, %s343
        %p345 = scmp.lt.s32.totalorder %s21, 1
        %s346 = scalar_select %p345, %s21, 1
        %s347 = smul.addr %s346, 8
        %s348 = scalar_lea.vmem %s2, %s347
        %p349 = scmp.lt.s32.totalorder %s21, 1
        %s350 = scalar_select %p349, %s21, 1
        %s351 = smul.addr %s350, 4
        %s352 = smul.addr %s351, 8
        %s353 = scalar_lea.vmem %s3, %s352
        %p354 = scmp.lt.s32.totalorder %s21, 1
        %s355 = scalar_select %p354, %s21, 1
        %s356 = scalar_lea.vmem %s4, %s355
        %p357 = scmp.lt.s32.totalorder %s21, 1
        %s358 = scalar_select %p357, %s21, 1
        %s359 = scalar_lea.vmem %s7, %s358
        %v361 = vld [vmem:[%s296] sm:$0xff]
        %v362 = vpack.c.bf16 %v361, %v361
        %v363 = vld [vmem:[%s344] sm:$0xff]
        %v364 = vpack.c.bf16 %v363, %v363
        %vm365 = vcmask 64512
        %v367 = vsel %vm365, %v362, 0
        %vm369 = vcmask 1043456
        %v371 = vsel %vm369, %v364, 0
        %373 = vmatprep.subr.bf16.mxu0 0
        %374 = vmatpush1.bf16.msra.mxu0 %v371
        %375 = vmatprep.subr.bf16.mxu0 0
        %376 = vmatpush1.bf16.msra.mxu0 0
        %377 = vmatprep.subr.bf16.mxu0 0
        %378 = vmatpush1.bf16.msra.mxu0 0
        %379 = vmatprep.subr.bf16.mxu0 0
        %380 = vmatpush1.bf16.msra.mxu0 0
        %381 = vmatprep.subr.bf16.mxu0 0
        %382 = vmatpush1.bf16.msra.mxu0 0
        %383 = vmatprep.subr.bf16.mxu0 0
        %384 = vmatpush1.bf16.msra.mxu0 0
        %385 = vmatprep.subr.bf16.mxu0 0
        %386 = vmatpush1.bf16.msra.mxu0 0
        %387 = vmatprep.subr.bf16.mxu0 0
        %388 = vmatpush1.bf16.msra.mxu0 0
        %389 = vmatprep.subr.bf16.mxu0 0
        %390 = vmatpush1.bf16.msra.mxu0 0
        %391 = vmatprep.subr.bf16.mxu0 0
        %392 = vmatpush1.bf16.msra.mxu0 0
        %393 = vmatprep.subr.bf16.mxu0 0
        %394 = vmatpush1.bf16.msra.mxu0 0
        %395 = vmatprep.subr.bf16.mxu0 0
        %396 = vmatpush1.bf16.msra.mxu0 0
        %397 = vmatprep.subr.bf16.mxu0 0
        %398 = vmatpush1.bf16.msra.mxu0 0
        %399 = vmatprep.subr.bf16.mxu0 0
        %400 = vmatpush1.bf16.msra.mxu0 0
        %401 = vmatprep.subr.bf16.mxu0 0
        %402 = vmatpush1.bf16.msra.mxu0 0
        %403 = vmatprep.subr.bf16.mxu0 0
        %404 = vmatpush1.bf16.msra.mxu0 0
        %405 = vmatprep.mubr.bf16.mxu0 0
        %406 = vmatmul.mubr.bf16.gmra.mrb[0].mxu0 %v367
        %v407 = vpop.f32.mrb[0].mxu0
        %v408 = vadd.f32 %v363, %v407
        %v409 = vpop.f32.mrb[0].mxu0
        %v410 = vpop.f32.mrb[0].mxu0
        %v411 = vpop.f32.mrb[0].mxu0
        %412 = vdwg.mxu0
        %v413 = vld [vmem:[%s5] sm:$0xf]
        %v414 = vld [vmem:[%s5 + $0x4] sm:$0xf]
        %v415 = vld [vmem:[%s5 + $0x8] sm:$0xf]
        %v416 = vld [vmem:[%s5 + $0xc] sm:$0xf]
        %v417 = vld [vmem:[%s5 + $0x10] sm:$0xf]
        %v418 = vld [vmem:[%s5 + $0x14] sm:$0xf]
        %v419 = vld [vmem:[%s5 + $0x18] sm:$0xf]
        %v420 = vld [vmem:[%s5 + $0x1c] sm:$0xf]
        %v421 = vld [vmem:[%s5 + $0x20] sm:$0xf]
        %v422 = vld [vmem:[%s5 + $0x24] sm:$0xf]
        %v423 = vld [vmem:[%s5 + $0x28] sm:$0xf]
        %v424 = vld [vmem:[%s5 + $0x2c] sm:$0xf]
        %v425 = vld [vmem:[%s5 + $0x30] sm:$0xf]
        %v426 = vld [vmem:[%s5 + $0x34] sm:$0xf]
        %v427 = vld [vmem:[%s5 + $0x38] sm:$0xf]
        %v428 = vld [vmem:[%s5 + $0x3c] sm:$0xf]
        %v429 = vpack.c.bf16 %v408, %v408
        %v430 = vld [vmem:[%s6] sm:$0x1]
        %v431 = vlaneseq
        %v432 = vshrl.u32 %v431, 7
        %v433 = vsub.s32 0, %v432
        %v434 = vrot.slane %v430, %v433
        %v451 = vunpack.c.l.b16 %v413
        %v452 = vunpack.c.l.b16 %v414
        %v453 = vunpack.c.l.b16 %v415
        %v454 = vunpack.c.l.b16 %v416
        %v455 = vunpack.c.l.b16 %v417
        %v456 = vunpack.c.l.b16 %v418
        %v457 = vunpack.c.l.b16 %v419
        %v458 = vunpack.c.l.b16 %v420
        %v459 = vunpack.c.l.b16 %v421
        %v460 = vunpack.c.l.b16 %v422
        %v461 = vunpack.c.l.b16 %v423
        %v462 = vunpack.c.l.b16 %v424
        %v463 = vunpack.c.l.b16 %v425
        %v464 = vunpack.c.l.b16 %v426
        %v465 = vunpack.c.l.b16 %v427
        %v466 = vunpack.c.l.b16 %v428
        %v467 = vpack.c.b16 %v452, %v451
        %v468 = vpack.c.b16 %v454, %v453
        %v469 = vpack.c.b16 %v456, %v455
        %v470 = vpack.c.b16 %v458, %v457
        %v471 = vpack.c.b16 %v460, %v459
        %v472 = vpack.c.b16 %v462, %v461
        %v473 = vpack.c.b16 %v464, %v463
        %v474 = vpack.c.b16 %v466, %v465
        %483 = vmatprep.subr.bf16.mxu0 0
        %484 = vmatpush1.bf16.msra.mxu0 %v467
        %485 = vmatprep.subr.bf16.mxu0 0
        %486 = vmatpush1.bf16.msra.mxu0 %v468
        %487 = vmatprep.subr.bf16.mxu0 0
        %488 = vmatpush1.bf16.msra.mxu0 %v469
        %489 = vmatprep.subr.bf16.mxu0 0
        %490 = vmatpush1.bf16.msra.mxu0 %v470
        %491 = vmatprep.subr.bf16.mxu0 0
        %492 = vmatpush1.bf16.msra.mxu0 %v471
        %493 = vmatprep.subr.bf16.mxu0 0
        %494 = vmatpush1.bf16.msra.mxu0 %v472
        %495 = vmatprep.subr.bf16.mxu0 0
        %496 = vmatpush1.bf16.msra.mxu0 %v473
        %497 = vmatprep.subr.bf16.mxu0 0
        %498 = vmatpush1.bf16.msra.mxu0 %v474
        %499 = vmatprep.subr.bf16.mxu0 0
        %500 = vmatpush1.bf16.msra.mxu0 0
        %501 = vmatprep.subr.bf16.mxu0 0
        %502 = vmatpush1.bf16.msra.mxu0 0
        %503 = vmatprep.subr.bf16.mxu0 0
        %504 = vmatpush1.bf16.msra.mxu0 0
        %505 = vmatprep.subr.bf16.mxu0 0
        %506 = vmatpush1.bf16.msra.mxu0 0
        %507 = vmatprep.subr.bf16.mxu0 0
        %508 = vmatpush1.bf16.msra.mxu0 0
        %509 = vmatprep.subr.bf16.mxu0 0
        %510 = vmatpush1.bf16.msra.mxu0 0
        %511 = vmatprep.subr.bf16.mxu0 0
        %512 = vmatpush1.bf16.msra.mxu0 0
        %513 = vmatprep.subr.bf16.mxu0 0
        %514 = vmatpush1.bf16.msra.mxu0 0
        %515 = vmatprep.mubr.bf16.mxu0 0
        %516 = vmatmul.mubr.bf16.gmra.mrb[0].mxu0 %v429
        %v517 = vpop.f32.mrb[0].mxu0
        %v518 = vadd.f32 %v434, %v517
        %v519 = vpop.f32.mrb[0].mxu0
        %v520 = vpop.f32.mrb[0].mxu0
        %v521 = vpop.f32.mrb[0].mxu0
        %522 = vdwg.mxu0
        %v523 = vmax.f32 %v518, 0.0
        %s524 = scalar_lea.vmem %s5, 192
        %v525 = vld [vmem:[%s524] sm:$0xf]
        %v526 = vld [vmem:[%s524 + $0x4] sm:$0xf]
        %v527 = vld [vmem:[%s524 + $0x8] sm:$0xf]
        %v528 = vld [vmem:[%s524 + $0xc] sm:$0xf]
        %v529 = vld [vmem:[%s524 + $0x10] sm:$0xf]
        %v530 = vld [vmem:[%s524 + $0x14] sm:$0xf]
        %v531 = vld [vmem:[%s524 + $0x18] sm:$0xf]
        %v532 = vld [vmem:[%s524 + $0x1c] sm:$0xf]
        %v533 = vld [vmem:[%s524 + $0x20] sm:$0xf]
        %v534 = vld [vmem:[%s524 + $0x24] sm:$0xf]
        %v535 = vld [vmem:[%s524 + $0x28] sm:$0xf]
        %v536 = vld [vmem:[%s524 + $0x2c] sm:$0xf]
        %v537 = vld [vmem:[%s524 + $0x30] sm:$0xf]
        %v538 = vld [vmem:[%s524 + $0x34] sm:$0xf]
        %v539 = vld [vmem:[%s524 + $0x38] sm:$0xf]
        %v540 = vld [vmem:[%s524 + $0x3c] sm:$0xf]
        %v541 = vpack.c.bf16 %v523, %v523
        %v542 = vld [vmem:[%s6 + $0x3] sm:$0x1]
        %v543 = vlaneseq
        %v544 = vshrl.u32 %v543, 7
        %v545 = vsub.s32 0, %v544
        %v546 = vrot.slane %v542, %v545
        %v563 = vunpack.c.l.b16 %v525
        %v564 = vunpack.c.l.b16 %v526
        %v565 = vunpack.c.l.b16 %v527
        %v566 = vunpack.c.l.b16 %v528
        %v567 = vunpack.c.l.b16 %v529
        %v568 = vunpack.c.l.b16 %v530
        %v569 = vunpack.c.l.b16 %v531
        %v570 = vunpack.c.l.b16 %v532
        %v571 = vunpack.c.l.b16 %v533
        %v572 = vunpack.c.l.b16 %v534
        %v573 = vunpack.c.l.b16 %v535
        %v574 = vunpack.c.l.b16 %v536
        %v575 = vunpack.c.l.b16 %v537
        %v576 = vunpack.c.l.b16 %v538
        %v577 = vunpack.c.l.b16 %v539
        %v578 = vunpack.c.l.b16 %v540
        %v579 = vpack.c.b16 %v564, %v563
        %v580 = vpack.c.b16 %v566, %v565
        %v581 = vpack.c.b16 %v568, %v567
        %v582 = vpack.c.b16 %v570, %v569
        %v583 = vpack.c.b16 %v572, %v571
        %v584 = vpack.c.b16 %v574, %v573
        %v585 = vpack.c.b16 %v576, %v575
        %v586 = vpack.c.b16 %v578, %v577
        %595 = vmatprep.subr.bf16.mxu0 0
        %596 = vmatpush1.bf16.msra.mxu0 %v579
        %597 = vmatprep.subr.bf16.mxu0 0
        %598 = vmatpush1.bf16.msra.mxu0 %v580
        %599 = vmatprep.subr.bf16.mxu0 0
        %600 = vmatpush1.bf16.msra.mxu0 %v581
        %601 = vmatprep.subr.bf16.mxu0 0
        %602 = vmatpush1.bf16.msra.mxu0 %v582
        %603 = vmatprep.subr.bf16.mxu0 0
        %604 = vmatpush1.bf16.msra.mxu0 %v583
        %605 = vmatprep.subr.bf16.mxu0 0
        %606 = vmatpush1.bf16.msra.mxu0 %v584
        %607 = vmatprep.subr.bf16.mxu0 0
        %608 = vmatpush1.bf16.msra.mxu0 %v585
        %609 = vmatprep.subr.bf16.mxu0 0
        %610 = vmatpush1.bf16.msra.mxu0 %v586
        %611 = vmatprep.subr.bf16.mxu0 0
        %612 = vmatpush1.bf16.msra.mxu0 0
        %613 = vmatprep.subr.bf16.mxu0 0
        %614 = vmatpush1.bf16.msra.mxu0 0
        %615 = vmatprep.subr.bf16.mxu0 0
        %616 = vmatpush1.bf16.msra.mxu0 0
        %617 = vmatprep.subr.bf16.mxu0 0
        %618 = vmatpush1.bf16.msra.mxu0 0
        %619 = vmatprep.subr.bf16.mxu0 0
        %620 = vmatpush1.bf16.msra.mxu0 0
        %621 = vmatprep.subr.bf16.mxu0 0
        %622 = vmatpush1.bf16.msra.mxu0 0
        %623 = vmatprep.subr.bf16.mxu0 0
        %624 = vmatpush1.bf16.msra.mxu0 0
        %625 = vmatprep.subr.bf16.mxu0 0
        %626 = vmatpush1.bf16.msra.mxu0 0
        %627 = vmatprep.mubr.bf16.mxu0 0
        %628 = vmatmul.mubr.bf16.gmra.mrb[0].mxu0 %v541
        %v629 = vpop.f32.mrb[0].mxu0
        %v630 = vadd.f32 %v546, %v629
        %v631 = vpop.f32.mrb[0].mxu0
        %v632 = vpop.f32.mrb[0].mxu0
        %v633 = vpop.f32.mrb[0].mxu0
        %634 = vdwg.mxu0
        %v635 = vld [vmem:[%s6 + $0x6] sm:$0x1]
        %v636 = vlaneseq
        %v637 = vshrl.u32 %v636, 7
        %v638 = vsub.s32 0, %v637
        %v639 = vrot.slane %v635, %v638
        %v640 = vmul.f32 %v630, %v639
        %v641 = vld [vmem:[%s6 + $0x9] sm:$0x1]
        %v642 = vlaneseq
        %v643 = vshrl.u32 %v642, 7
        %v644 = vsub.s32 0, %v643
        %v645 = vrot.slane %v641, %v644
        %v646 = vadd.f32 %v640, %v645
        %v647 = vmax.f32 %v646, 0.0
        %v648 = vpack.c.bf16 %v647, %v647
        %v650 = vsel %vm369, %v648, 0
        %652 = vmatprep.subr.bf16.mxu0 0
        %653 = vmatpush1.bf16.msra.mxu0 %v650
        %654 = vmatprep.subr.bf16.mxu0 0
        %655 = vmatpush1.bf16.msra.mxu0 0
        %656 = vmatprep.subr.bf16.mxu0 0
        %657 = vmatpush1.bf16.msra.mxu0 0
        %658 = vmatprep.subr.bf16.mxu0 0
        %659 = vmatpush1.bf16.msra.mxu0 0
        %660 = vmatprep.subr.bf16.mxu0 0
        %661 = vmatpush1.bf16.msra.mxu0 0
        %662 = vmatprep.subr.bf16.mxu0 0
        %663 = vmatpush1.bf16.msra.mxu0 0
        %664 = vmatprep.subr.bf16.mxu0 0
        %665 = vmatpush1.bf16.msra.mxu0 0
        %666 = vmatprep.subr.bf16.mxu0 0
        %667 = vmatpush1.bf16.msra.mxu0 0
        %668 = vmatprep.subr.bf16.mxu0 0
        %669 = vmatpush1.bf16.msra.mxu0 0
        %670 = vmatprep.subr.bf16.mxu0 0
        %671 = vmatpush1.bf16.msra.mxu0 0
        %672 = vmatprep.subr.bf16.mxu0 0
        %673 = vmatpush1.bf16.msra.mxu0 0
        %674 = vmatprep.subr.bf16.mxu0 0
        %675 = vmatpush1.bf16.msra.mxu0 0
        %676 = vmatprep.subr.bf16.mxu0 0
        %677 = vmatpush1.bf16.msra.mxu0 0
        %678 = vmatprep.subr.bf16.mxu0 0
        %679 = vmatpush1.bf16.msra.mxu0 0
        %680 = vmatprep.subr.bf16.mxu0 0
        %681 = vmatpush1.bf16.msra.mxu0 0
        %682 = vmatprep.subr.bf16.mxu0 0
        %683 = vmatpush1.bf16.msra.mxu0 0
        %684 = vmatprep.mubr.bf16.mxu0 0
        %685 = vmatmul.mubr.bf16.gmra.mrb[0].mxu0 %v367
        %v686 = vpop.f32.mrb[0].mxu0
        %v687 = vadd.f32 %v647, %v686
        %v688 = vpop.f32.mrb[0].mxu0
        %v689 = vpop.f32.mrb[0].mxu0
        %v690 = vpop.f32.mrb[0].mxu0
        %691 = vdwg.mxu0
        %s692 = scalar_lea.vmem %s5, 64
        %v693 = vld [vmem:[%s692] sm:$0xf]
        %v694 = vld [vmem:[%s692 + $0x4] sm:$0xf]
        %v695 = vld [vmem:[%s692 + $0x8] sm:$0xf]
        %v696 = vld [vmem:[%s692 + $0xc] sm:$0xf]
        %v697 = vld [vmem:[%s692 + $0x10] sm:$0xf]
        %v698 = vld [vmem:[%s692 + $0x14] sm:$0xf]
        %v699 = vld [vmem:[%s692 + $0x18] sm:$0xf]
        %v700 = vld [vmem:[%s692 + $0x1c] sm:$0xf]
        %v701 = vld [vmem:[%s692 + $0x20] sm:$0xf]
        %v702 = vld [vmem:[%s692 + $0x24] sm:$0xf]
        %v703 = vld [vmem:[%s692 + $0x28] sm:$0xf]
        %v704 = vld [vmem:[%s692 + $0x2c] sm:$0xf]
        %v705 = vld [vmem:[%s692 + $0x30] sm:$0xf]
        %v706 = vld [vmem:[%s692 + $0x34] sm:$0xf]
        %v707 = vld [vmem:[%s692 + $0x38] sm:$0xf]
        %v708 = vld [vmem:[%s692 + $0x3c] sm:$0xf]
        %v709 = vpack.c.bf16 %v687, %v687
        %v710 = vld [vmem:[%s6 + $0x1] sm:$0x1]
        %v711 = vlaneseq
        %v712 = vshrl.u32 %v711, 7
        %v713 = vsub.s32 0, %v712
        %v714 = vrot.slane %v710, %v713
        %v731 = vunpack.c.l.b16 %v693
        %v732 = vunpack.c.l.b16 %v694
        %v733 = vunpack.c.l.b16 %v695
        %v734 = vunpack.c.l.b16 %v696
        %v735 = vunpack.c.l.b16 %v697
        %v736 = vunpack.c.l.b16 %v698
        %v737 = vunpack.c.l.b16 %v699
        %v738 = vunpack.c.l.b16 %v700
        %v739 = vunpack.c.l.b16 %v701
        %v740 = vunpack.c.l.b16 %v702
        %v741 = vunpack.c.l.b16 %v703
        %v742 = vunpack.c.l.b16 %v704
        %v743 = vunpack.c.l.b16 %v705
        %v744 = vunpack.c.l.b16 %v706
        %v745 = vunpack.c.l.b16 %v707
        %v746 = vunpack.c.l.b16 %v708
        %v747 = vpack.c.b16 %v732, %v731
        %v748 = vpack.c.b16 %v734, %v733
        %v749 = vpack.c.b16 %v736, %v735
        %v750 = vpack.c.b16 %v738, %v737
        %v751 = vpack.c.b16 %v740, %v739
        %v752 = vpack.c.b16 %v742, %v741
        %v753 = vpack.c.b16 %v744, %v743
        %v754 = vpack.c.b16 %v746, %v745
        %763 = vmatprep.subr.bf16.mxu0 0
        %764 = vmatpush1.bf16.msra.mxu0 %v747
        %765 = vmatprep.subr.bf16.mxu0 0
        %766 = vmatpush1.bf16.msra.mxu0 %v748
        %767 = vmatprep.subr.bf16.mxu0 0
        %768 = vmatpush1.bf16.msra.mxu0 %v749
        %769 = vmatprep.subr.bf16.mxu0 0
        %770 = vmatpush1.bf16.msra.mxu0 %v750
        %771 = vmatprep.subr.bf16.mxu0 0
        %772 = vmatpush1.bf16.msra.mxu0 %v751
        %773 = vmatprep.subr.bf16.mxu0 0
        %774 = vmatpush1.bf16.msra.mxu0 %v752
        %775 = vmatprep.subr.bf16.mxu0 0
        %776 = vmatpush1.bf16.msra.mxu0 %v753
        %777 = vmatprep.subr.bf16.mxu0 0
        %778 = vmatpush1.bf16.msra.mxu0 %v754
        %779 = vmatprep.subr.bf16.mxu0 0
        %780 = vmatpush1.bf16.msra.mxu0 0
        %781 = vmatprep.subr.bf16.mxu0 0
        %782 = vmatpush1.bf16.msra.mxu0 0
        %783 = vmatprep.subr.bf16.mxu0 0
        %784 = vmatpush1.bf16.msra.mxu0 0
        %785 = vmatprep.subr.bf16.mxu0 0
        %786 = vmatpush1.bf16.msra.mxu0 0
        %787 = vmatprep.subr.bf16.mxu0 0
        %788 = vmatpush1.bf16.msra.mxu0 0
        %789 = vmatprep.subr.bf16.mxu0 0
        %790 = vmatpush1.bf16.msra.mxu0 0
        %791 = vmatprep.subr.bf16.mxu0 0
        %792 = vmatpush1.bf16.msra.mxu0 0
        %793 = vmatprep.subr.bf16.mxu0 0
        %794 = vmatpush1.bf16.msra.mxu0 0
        %795 = vmatprep.mubr.bf16.mxu0 0
        %796 = vmatmul.mubr.bf16.gmra.mrb[0].mxu0 %v709
        %v797 = vpop.f32.mrb[0].mxu0
        %v798 = vadd.f32 %v714, %v797
        %v799 = vpop.f32.mrb[0].mxu0
        %v800 = vpop.f32.mrb[0].mxu0
        %v801 = vpop.f32.mrb[0].mxu0
        %802 = vdwg.mxu0
        %v803 = vmax.f32 %v798, 0.0
        %s804 = scalar_lea.vmem %s5, 256
        %v805 = vld [vmem:[%s804] sm:$0xf]
        %v806 = vld [vmem:[%s804 + $0x4] sm:$0xf]
        %v807 = vld [vmem:[%s804 + $0x8] sm:$0xf]
        %v808 = vld [vmem:[%s804 + $0xc] sm:$0xf]
        %v809 = vld [vmem:[%s804 + $0x10] sm:$0xf]
        %v810 = vld [vmem:[%s804 + $0x14] sm:$0xf]
        %v811 = vld [vmem:[%s804 + $0x18] sm:$0xf]
        %v812 = vld [vmem:[%s804 + $0x1c] sm:$0xf]
        %v813 = vld [vmem:[%s804 + $0x20] sm:$0xf]
        %v814 = vld [vmem:[%s804 + $0x24] sm:$0xf]
        %v815 = vld [vmem:[%s804 + $0x28] sm:$0xf]
        %v816 = vld [vmem:[%s804 + $0x2c] sm:$0xf]
        %v817 = vld [vmem:[%s804 + $0x30] sm:$0xf]
        %v818 = vld [vmem:[%s804 + $0x34] sm:$0xf]
        %v819 = vld [vmem:[%s804 + $0x38] sm:$0xf]
        %v820 = vld [vmem:[%s804 + $0x3c] sm:$0xf]
        %v821 = vpack.c.bf16 %v803, %v803
        %v822 = vld [vmem:[%s6 + $0x4] sm:$0x1]
        %v823 = vlaneseq
        %v824 = vshrl.u32 %v823, 7
        %v825 = vsub.s32 0, %v824
        %v826 = vrot.slane %v822, %v825
        %v843 = vunpack.c.l.b16 %v805
        %v844 = vunpack.c.l.b16 %v806
        %v845 = vunpack.c.l.b16 %v807
        %v846 = vunpack.c.l.b16 %v808
        %v847 = vunpack.c.l.b16 %v809
        %v848 = vunpack.c.l.b16 %v810
        %v849 = vunpack.c.l.b16 %v811
        %v850 = vunpack.c.l.b16 %v812
        %v851 = vunpack.c.l.b16 %v813
        %v852 = vunpack.c.l.b16 %v814
        %v853 = vunpack.c.l.b16 %v815
        %v854 = vunpack.c.l.b16 %v816
        %v855 = vunpack.c.l.b16 %v817
        %v856 = vunpack.c.l.b16 %v818
        %v857 = vunpack.c.l.b16 %v819
        %v858 = vunpack.c.l.b16 %v820
        %v859 = vpack.c.b16 %v844, %v843
        %v860 = vpack.c.b16 %v846, %v845
        %v861 = vpack.c.b16 %v848, %v847
        %v862 = vpack.c.b16 %v850, %v849
        %v863 = vpack.c.b16 %v852, %v851
        %v864 = vpack.c.b16 %v854, %v853
        %v865 = vpack.c.b16 %v856, %v855
        %v866 = vpack.c.b16 %v858, %v857
        %875 = vmatprep.subr.bf16.mxu0 0
        %876 = vmatpush1.bf16.msra.mxu0 %v859
        %877 = vmatprep.subr.bf16.mxu0 0
        %878 = vmatpush1.bf16.msra.mxu0 %v860
        %879 = vmatprep.subr.bf16.mxu0 0
        %880 = vmatpush1.bf16.msra.mxu0 %v861
        %881 = vmatprep.subr.bf16.mxu0 0
        %882 = vmatpush1.bf16.msra.mxu0 %v862
        %883 = vmatprep.subr.bf16.mxu0 0
        %884 = vmatpush1.bf16.msra.mxu0 %v863
        %885 = vmatprep.subr.bf16.mxu0 0
        %886 = vmatpush1.bf16.msra.mxu0 %v864
        %887 = vmatprep.subr.bf16.mxu0 0
        %888 = vmatpush1.bf16.msra.mxu0 %v865
        %889 = vmatprep.subr.bf16.mxu0 0
        %890 = vmatpush1.bf16.msra.mxu0 %v866
        %891 = vmatprep.subr.bf16.mxu0 0
        %892 = vmatpush1.bf16.msra.mxu0 0
        %893 = vmatprep.subr.bf16.mxu0 0
        %894 = vmatpush1.bf16.msra.mxu0 0
        %895 = vmatprep.subr.bf16.mxu0 0
        %896 = vmatpush1.bf16.msra.mxu0 0
        %897 = vmatprep.subr.bf16.mxu0 0
        %898 = vmatpush1.bf16.msra.mxu0 0
        %899 = vmatprep.subr.bf16.mxu0 0
        %900 = vmatpush1.bf16.msra.mxu0 0
        %901 = vmatprep.subr.bf16.mxu0 0
        %902 = vmatpush1.bf16.msra.mxu0 0
        %903 = vmatprep.subr.bf16.mxu0 0
        %904 = vmatpush1.bf16.msra.mxu0 0
        %905 = vmatprep.subr.bf16.mxu0 0
        %906 = vmatpush1.bf16.msra.mxu0 0
        %907 = vmatprep.mubr.bf16.mxu0 0
        %908 = vmatmul.mubr.bf16.gmra.mrb[0].mxu0 %v821
        %v909 = vpop.f32.mrb[0].mxu0
        %v910 = vadd.f32 %v826, %v909
        %v911 = vpop.f32.mrb[0].mxu0
        %v912 = vpop.f32.mrb[0].mxu0
        %v913 = vpop.f32.mrb[0].mxu0
        %914 = vdwg.mxu0
        %v915 = vld [vmem:[%s6 + $0x7] sm:$0x1]
        %v916 = vlaneseq
        %v917 = vshrl.u32 %v916, 7
        %v918 = vsub.s32 0, %v917
        %v919 = vrot.slane %v915, %v918
        %v920 = vmul.f32 %v910, %v919
        %v921 = vld [vmem:[%s6 + $0xa] sm:$0x1]
        %v922 = vlaneseq
        %v923 = vshrl.u32 %v922, 7
        %v924 = vsub.s32 0, %v923
        %v925 = vrot.slane %v921, %v924
        %v926 = vadd.f32 %v920, %v925
        %v927 = vmax.f32 %v926, 0.0
        %v928 = vpack.c.bf16 %v927, %v927
        %v930 = vsel %vm369, %v928, 0
        %932 = vmatprep.subr.bf16.mxu0 0
        %933 = vmatpush1.bf16.msra.mxu0 %v930
        %934 = vmatprep.subr.bf16.mxu0 0
        %935 = vmatpush1.bf16.msra.mxu0 0
        %936 = vmatprep.subr.bf16.mxu0 0
        %937 = vmatpush1.bf16.msra.mxu0 0
        %938 = vmatprep.subr.bf16.mxu0 0
        %939 = vmatpush1.bf16.msra.mxu0 0
        %940 = vmatprep.subr.bf16.mxu0 0
        %941 = vmatpush1.bf16.msra.mxu0 0
        %942 = vmatprep.subr.bf16.mxu0 0
        %943 = vmatpush1.bf16.msra.mxu0 0
        %944 = vmatprep.subr.bf16.mxu0 0
        %945 = vmatpush1.bf16.msra.mxu0 0
        %946 = vmatprep.subr.bf16.mxu0 0
        %947 = vmatpush1.bf16.msra.mxu0 0
        %948 = vmatprep.subr.bf16.mxu0 0
        %949 = vmatpush1.bf16.msra.mxu0 0
        %950 = vmatprep.subr.bf16.mxu0 0
        %951 = vmatpush1.bf16.msra.mxu0 0
        %952 = vmatprep.subr.bf16.mxu0 0
        %953 = vmatpush1.bf16.msra.mxu0 0
        %954 = vmatprep.subr.bf16.mxu0 0
        %955 = vmatpush1.bf16.msra.mxu0 0
        %956 = vmatprep.subr.bf16.mxu0 0
        %957 = vmatpush1.bf16.msra.mxu0 0
        %958 = vmatprep.subr.bf16.mxu0 0
        %959 = vmatpush1.bf16.msra.mxu0 0
        %960 = vmatprep.subr.bf16.mxu0 0
        %961 = vmatpush1.bf16.msra.mxu0 0
        %962 = vmatprep.subr.bf16.mxu0 0
        %963 = vmatpush1.bf16.msra.mxu0 0
        %964 = vmatprep.mubr.bf16.mxu0 0
        %965 = vmatmul.mubr.bf16.gmra.mrb[0].mxu0 %v367
        %v966 = vpop.f32.mrb[0].mxu0
        %v967 = vadd.f32 %v927, %v966
        %v968 = vpop.f32.mrb[0].mxu0
        %v969 = vpop.f32.mrb[0].mxu0
        %v970 = vpop.f32.mrb[0].mxu0
        %971 = vdwg.mxu0
        %s972 = scalar_lea.vmem %s5, 128
        %v973 = vld [vmem:[%s972] sm:$0xf]
        %v974 = vld [vmem:[%s972 + $0x4] sm:$0xf]
        %v975 = vld [vmem:[%s972 + $0x8] sm:$0xf]
        %v976 = vld [vmem:[%s972 + $0xc] sm:$0xf]
        %v977 = vld [vmem:[%s972 + $0x10] sm:$0xf]
        %v978 = vld [vmem:[%s972 + $0x14] sm:$0xf]
        %v979 = vld [vmem:[%s972 + $0x18] sm:$0xf]
        %v980 = vld [vmem:[%s972 + $0x1c] sm:$0xf]
        %v981 = vld [vmem:[%s972 + $0x20] sm:$0xf]
        %v982 = vld [vmem:[%s972 + $0x24] sm:$0xf]
        %v983 = vld [vmem:[%s972 + $0x28] sm:$0xf]
        %v984 = vld [vmem:[%s972 + $0x2c] sm:$0xf]
        %v985 = vld [vmem:[%s972 + $0x30] sm:$0xf]
        %v986 = vld [vmem:[%s972 + $0x34] sm:$0xf]
        %v987 = vld [vmem:[%s972 + $0x38] sm:$0xf]
        %v988 = vld [vmem:[%s972 + $0x3c] sm:$0xf]
        %v989 = vpack.c.bf16 %v967, %v967
        %v990 = vld [vmem:[%s6 + $0x2] sm:$0x1]
        %v991 = vlaneseq
        %v992 = vshrl.u32 %v991, 7
        %v993 = vsub.s32 0, %v992
        %v994 = vrot.slane %v990, %v993
        %v1011 = vunpack.c.l.b16 %v973
        %v1012 = vunpack.c.l.b16 %v974
        %v1013 = vunpack.c.l.b16 %v975
        %v1014 = vunpack.c.l.b16 %v976
        %v1015 = vunpack.c.l.b16 %v977
        %v1016 = vunpack.c.l.b16 %v978
        %v1017 = vunpack.c.l.b16 %v979
        %v1018 = vunpack.c.l.b16 %v980
        %v1019 = vunpack.c.l.b16 %v981
        %v1020 = vunpack.c.l.b16 %v982
        %v1021 = vunpack.c.l.b16 %v983
        %v1022 = vunpack.c.l.b16 %v984
        %v1023 = vunpack.c.l.b16 %v985
        %v1024 = vunpack.c.l.b16 %v986
        %v1025 = vunpack.c.l.b16 %v987
        %v1026 = vunpack.c.l.b16 %v988
        %v1027 = vpack.c.b16 %v1012, %v1011
        %v1028 = vpack.c.b16 %v1014, %v1013
        %v1029 = vpack.c.b16 %v1016, %v1015
        %v1030 = vpack.c.b16 %v1018, %v1017
        %v1031 = vpack.c.b16 %v1020, %v1019
        %v1032 = vpack.c.b16 %v1022, %v1021
        %v1033 = vpack.c.b16 %v1024, %v1023
        %v1034 = vpack.c.b16 %v1026, %v1025
        %1043 = vmatprep.subr.bf16.mxu0 0
        %1044 = vmatpush1.bf16.msra.mxu0 %v1027
        %1045 = vmatprep.subr.bf16.mxu0 0
        %1046 = vmatpush1.bf16.msra.mxu0 %v1028
        %1047 = vmatprep.subr.bf16.mxu0 0
        %1048 = vmatpush1.bf16.msra.mxu0 %v1029
        %1049 = vmatprep.subr.bf16.mxu0 0
        %1050 = vmatpush1.bf16.msra.mxu0 %v1030
        %1051 = vmatprep.subr.bf16.mxu0 0
        %1052 = vmatpush1.bf16.msra.mxu0 %v1031
        %1053 = vmatprep.subr.bf16.mxu0 0
        %1054 = vmatpush1.bf16.msra.mxu0 %v1032
        %1055 = vmatprep.subr.bf16.mxu0 0
        %1056 = vmatpush1.bf16.msra.mxu0 %v1033
        %1057 = vmatprep.subr.bf16.mxu0 0
        %1058 = vmatpush1.bf16.msra.mxu0 %v1034
        %1059 = vmatprep.subr.bf16.mxu0 0
        %1060 = vmatpush1.bf16.msra.mxu0 0
        %1061 = vmatprep.subr.bf16.mxu0 0
        %1062 = vmatpush1.bf16.msra.mxu0 0
        %1063 = vmatprep.subr.bf16.mxu0 0
        %1064 = vmatpush1.bf16.msra.mxu0 0
        %1065 = vmatprep.subr.bf16.mxu0 0
        %1066 = vmatpush1.bf16.msra.mxu0 0
        %1067 = vmatprep.subr.bf16.mxu0 0
        %1068 = vmatpush1.bf16.msra.mxu0 0
        %1069 = vmatprep.subr.bf16.mxu0 0
        %1070 = vmatpush1.bf16.msra.mxu0 0
        %1071 = vmatprep.subr.bf16.mxu0 0
        %1072 = vmatpush1.bf16.msra.mxu0 0
        %1073 = vmatprep.subr.bf16.mxu0 0
        %1074 = vmatpush1.bf16.msra.mxu0 0
        %1075 = vmatprep.mubr.bf16.mxu0 0
        %1076 = vmatmul.mubr.bf16.gmra.mrb[0].mxu0 %v989
        %v1077 = vpop.f32.mrb[0].mxu0
        %v1078 = vadd.f32 %v994, %v1077
        %v1079 = vpop.f32.mrb[0].mxu0
        %v1080 = vpop.f32.mrb[0].mxu0
        %v1081 = vpop.f32.mrb[0].mxu0
        %1082 = vdwg.mxu0
        %v1083 = vmax.f32 %v1078, 0.0
        %s1084 = scalar_lea.vmem %s5, 320
        %v1085 = vld [vmem:[%s1084] sm:$0xf]
        %v1086 = vld [vmem:[%s1084 + $0x4] sm:$0xf]
        %v1087 = vld [vmem:[%s1084 + $0x8] sm:$0xf]
        %v1088 = vld [vmem:[%s1084 + $0xc] sm:$0xf]
        %v1089 = vld [vmem:[%s1084 + $0x10] sm:$0xf]
        %v1090 = vld [vmem:[%s1084 + $0x14] sm:$0xf]
        %v1091 = vld [vmem:[%s1084 + $0x18] sm:$0xf]
        %v1092 = vld [vmem:[%s1084 + $0x1c] sm:$0xf]
        %v1093 = vld [vmem:[%s1084 + $0x20] sm:$0xf]
        %v1094 = vld [vmem:[%s1084 + $0x24] sm:$0xf]
        %v1095 = vld [vmem:[%s1084 + $0x28] sm:$0xf]
        %v1096 = vld [vmem:[%s1084 + $0x2c] sm:$0xf]
        %v1097 = vld [vmem:[%s1084 + $0x30] sm:$0xf]
        %v1098 = vld [vmem:[%s1084 + $0x34] sm:$0xf]
        %v1099 = vld [vmem:[%s1084 + $0x38] sm:$0xf]
        %v1100 = vld [vmem:[%s1084 + $0x3c] sm:$0xf]
        %v1101 = vpack.c.bf16 %v1083, %v1083
        %v1102 = vld [vmem:[%s6 + $0x5] sm:$0x1]
        %v1103 = vlaneseq
        %v1104 = vshrl.u32 %v1103, 7
        %v1105 = vsub.s32 0, %v1104
        %v1106 = vrot.slane %v1102, %v1105
        %v1123 = vunpack.c.l.b16 %v1085
        %v1124 = vunpack.c.l.b16 %v1086
        %v1125 = vunpack.c.l.b16 %v1087
        %v1126 = vunpack.c.l.b16 %v1088
        %v1127 = vunpack.c.l.b16 %v1089
        %v1128 = vunpack.c.l.b16 %v1090
        %v1129 = vunpack.c.l.b16 %v1091
        %v1130 = vunpack.c.l.b16 %v1092
        %v1131 = vunpack.c.l.b16 %v1093
        %v1132 = vunpack.c.l.b16 %v1094
        %v1133 = vunpack.c.l.b16 %v1095
        %v1134 = vunpack.c.l.b16 %v1096
        %v1135 = vunpack.c.l.b16 %v1097
        %v1136 = vunpack.c.l.b16 %v1098
        %v1137 = vunpack.c.l.b16 %v1099
        %v1138 = vunpack.c.l.b16 %v1100
        %v1139 = vpack.c.b16 %v1124, %v1123
        %v1140 = vpack.c.b16 %v1126, %v1125
        %v1141 = vpack.c.b16 %v1128, %v1127
        %v1142 = vpack.c.b16 %v1130, %v1129
        %v1143 = vpack.c.b16 %v1132, %v1131
        %v1144 = vpack.c.b16 %v1134, %v1133
        %v1145 = vpack.c.b16 %v1136, %v1135
        %v1146 = vpack.c.b16 %v1138, %v1137
        %1155 = vmatprep.subr.bf16.mxu0 0
        %1156 = vmatpush1.bf16.msra.mxu0 %v1139
        %1157 = vmatprep.subr.bf16.mxu0 0
        %1158 = vmatpush1.bf16.msra.mxu0 %v1140
        %1159 = vmatprep.subr.bf16.mxu0 0
        %1160 = vmatpush1.bf16.msra.mxu0 %v1141
        %1161 = vmatprep.subr.bf16.mxu0 0
        %1162 = vmatpush1.bf16.msra.mxu0 %v1142
        %1163 = vmatprep.subr.bf16.mxu0 0
        %1164 = vmatpush1.bf16.msra.mxu0 %v1143
        %1165 = vmatprep.subr.bf16.mxu0 0
        %1166 = vmatpush1.bf16.msra.mxu0 %v1144
        %1167 = vmatprep.subr.bf16.mxu0 0
        %1168 = vmatpush1.bf16.msra.mxu0 %v1145
        %1169 = vmatprep.subr.bf16.mxu0 0
        %1170 = vmatpush1.bf16.msra.mxu0 %v1146
        %1171 = vmatprep.subr.bf16.mxu0 0
        %1172 = vmatpush1.bf16.msra.mxu0 0
        %1173 = vmatprep.subr.bf16.mxu0 0
        %1174 = vmatpush1.bf16.msra.mxu0 0
        %1175 = vmatprep.subr.bf16.mxu0 0
        %1176 = vmatpush1.bf16.msra.mxu0 0
        %1177 = vmatprep.subr.bf16.mxu0 0
        %1178 = vmatpush1.bf16.msra.mxu0 0
        %1179 = vmatprep.subr.bf16.mxu0 0
        %1180 = vmatpush1.bf16.msra.mxu0 0
        %1181 = vmatprep.subr.bf16.mxu0 0
        %1182 = vmatpush1.bf16.msra.mxu0 0
        %1183 = vmatprep.subr.bf16.mxu0 0
        %1184 = vmatpush1.bf16.msra.mxu0 0
        %1185 = vmatprep.subr.bf16.mxu0 0
        %1186 = vmatpush1.bf16.msra.mxu0 0
        %1187 = vmatprep.mubr.bf16.mxu0 0
        %1188 = vmatmul.mubr.bf16.gmra.mrb[0].mxu0 %v1101
        %v1189 = vpop.f32.mrb[0].mxu0
        %v1190 = vadd.f32 %v1106, %v1189
        %v1191 = vpop.f32.mrb[0].mxu0
        %v1192 = vpop.f32.mrb[0].mxu0
        %v1193 = vpop.f32.mrb[0].mxu0
        %1194 = vdwg.mxu0
        %v1195 = vld [vmem:[%s6 + $0x8] sm:$0x1]
        %v1196 = vlaneseq
        %v1197 = vshrl.u32 %v1196, 7
        %v1198 = vsub.s32 0, %v1197
        %v1199 = vrot.slane %v1195, %v1198
        %v1200 = vmul.f32 %v1190, %v1199
        %v1201 = vld [vmem:[%s6 + $0xb] sm:$0x1]
        %v1202 = vlaneseq
        %v1203 = vshrl.u32 %v1202, 7
        %v1204 = vsub.s32 0, %v1203
        %v1205 = vrot.slane %v1201, %v1204
        %v1206 = vadd.f32 %v1200, %v1205
        %v1207 = vmax.f32 %v1206, 0.0
        %v1208 = vld [vmem:[%s348] sm:$0xff]
        %1210 = vset.pattern.permute.xlu0 0
        %1211 = vperm.xlu0 %1210, %v1208
        %v1212 = vpop.permute.xlu0 %1211
        %v1214 = vmul.f32 %v1207, %v1212
        %v1215 = vrot.slane %v1214, 4
        %v1216 = vadd.f32 %v1214, %v1215
        %v1217 = vrot.slane %v1216, 2
        %v1218 = vadd.f32 %v1216, %v1217
        %v1219 = vrot.slane %v1218, 1
        %v1220 = vadd.f32 %v1218, %v1219
        %s1221 = scalar_lea.vmem %s5, 384
        %v1222 = vld [vmem:[%s1221] sm:$0xf]
        %v1223 = vld [vmem:[%s1221 + $0x4] sm:$0xf]
        %v1224 = vld [vmem:[%s1221 + $0x8] sm:$0xf]
        %v1225 = vld [vmem:[%s1221 + $0xc] sm:$0xf]
        %v1226 = vld [vmem:[%s1221 + $0x10] sm:$0xf]
        %v1227 = vld [vmem:[%s1221 + $0x14] sm:$0xf]
        %v1228 = vld [vmem:[%s1221 + $0x18] sm:$0xf]
        %v1229 = vld [vmem:[%s1221 + $0x1c] sm:$0xf]
        %v1230 = vld [vmem:[%s1221 + $0x20] sm:$0xf]
        %v1231 = vld [vmem:[%s1221 + $0x24] sm:$0xf]
        %v1232 = vld [vmem:[%s1221 + $0x28] sm:$0xf]
        %v1233 = vld [vmem:[%s1221 + $0x2c] sm:$0xf]
        %v1234 = vld [vmem:[%s1221 + $0x30] sm:$0xf]
        %v1235 = vld [vmem:[%s1221 + $0x34] sm:$0xf]
        %v1236 = vld [vmem:[%s1221 + $0x38] sm:$0xf]
        %v1237 = vld [vmem:[%s1221 + $0x3c] sm:$0xf]
        %v1238 = vpack.c.bf16 %v1220, %v1220
        %v1239 = vld [vmem:[%s6 + $0xc] sm:$0x1]
        %v1256 = vunpack.c.l.b16 %v1222
        %v1257 = vunpack.c.l.b16 %v1223
        %v1258 = vunpack.c.l.b16 %v1224
        %v1259 = vunpack.c.l.b16 %v1225
        %v1260 = vunpack.c.l.b16 %v1226
        %v1261 = vunpack.c.l.b16 %v1227
        %v1262 = vunpack.c.l.b16 %v1228
        %v1263 = vunpack.c.l.b16 %v1229
        %v1264 = vunpack.c.l.b16 %v1230
        %v1265 = vunpack.c.l.b16 %v1231
        %v1266 = vunpack.c.l.b16 %v1232
        %v1267 = vunpack.c.l.b16 %v1233
        %v1268 = vunpack.c.l.b16 %v1234
        %v1269 = vunpack.c.l.b16 %v1235
        %v1270 = vunpack.c.l.b16 %v1236
        %v1271 = vunpack.c.l.b16 %v1237
        %v1272 = vpack.c.b16 %v1257, %v1256
        %v1273 = vpack.c.b16 %v1259, %v1258
        %v1274 = vpack.c.b16 %v1261, %v1260
        %v1275 = vpack.c.b16 %v1263, %v1262
        %v1276 = vpack.c.b16 %v1265, %v1264
        %v1277 = vpack.c.b16 %v1267, %v1266
        %v1278 = vpack.c.b16 %v1269, %v1268
        %v1279 = vpack.c.b16 %v1271, %v1270
        %1288 = vmatprep.subr.bf16.mxu0 0
        %1289 = vmatpush1.bf16.msra.mxu0 %v1272
        %1290 = vmatprep.subr.bf16.mxu0 0
        %1291 = vmatpush1.bf16.msra.mxu0 %v1273
        %1292 = vmatprep.subr.bf16.mxu0 0
        %1293 = vmatpush1.bf16.msra.mxu0 %v1274
        %1294 = vmatprep.subr.bf16.mxu0 0
        %1295 = vmatpush1.bf16.msra.mxu0 %v1275
        %1296 = vmatprep.subr.bf16.mxu0 0
        %1297 = vmatpush1.bf16.msra.mxu0 %v1276
        %1298 = vmatprep.subr.bf16.mxu0 0
        %1299 = vmatpush1.bf16.msra.mxu0 %v1277
        %1300 = vmatprep.subr.bf16.mxu0 0
        %1301 = vmatpush1.bf16.msra.mxu0 %v1278
        %1302 = vmatprep.subr.bf16.mxu0 0
        %1303 = vmatpush1.bf16.msra.mxu0 %v1279
        %1304 = vmatprep.subr.bf16.mxu0 0
        %1305 = vmatpush1.bf16.msra.mxu0 0
        %1306 = vmatprep.subr.bf16.mxu0 0
        %1307 = vmatpush1.bf16.msra.mxu0 0
        %1308 = vmatprep.subr.bf16.mxu0 0
        %1309 = vmatpush1.bf16.msra.mxu0 0
        %1310 = vmatprep.subr.bf16.mxu0 0
        %1311 = vmatpush1.bf16.msra.mxu0 0
        %1312 = vmatprep.subr.bf16.mxu0 0
        %1313 = vmatpush1.bf16.msra.mxu0 0
        %1314 = vmatprep.subr.bf16.mxu0 0
        %1315 = vmatpush1.bf16.msra.mxu0 0
        %1316 = vmatprep.subr.bf16.mxu0 0
        %1317 = vmatpush1.bf16.msra.mxu0 0
        %1318 = vmatprep.subr.bf16.mxu0 0
        %1319 = vmatpush1.bf16.msra.mxu0 0
        %1320 = vmatprep.mubr.bf16.mxu0 0
        %1321 = vmatmul.mubr.bf16.gmra.mrb[0].mxu0 %v1238
        %v1322 = vpop.f32.mrb[0].mxu0
        %v1323 = vadd.f32 %v1239, %v1322
        %v1324 = vpop.f32.mrb[0].mxu0
        %v1325 = vpop.f32.mrb[0].mxu0
        %v1326 = vpop.f32.mrb[0].mxu0
        %1327 = vdwg.mxu0
        %v1328 = vmax.f32 %v1323, 0.0
        %v1329 = vld [vmem:[%s353] sm:$0xff]
        %v1330 = vld [vmem:[%s353 + $0x8] sm:$0xff]
        %v1331 = vld [vmem:[%s353 + $0x10] sm:$0xff]
        %v1332 = vld [vmem:[%s353 + $0x18] sm:$0xff]
        %s1333 = scalar_lea.vmem %s5, 448
        %v1334 = vld [vmem:[%s1333] sm:$0xf]
        %v1335 = vunpack.c.l.bf16 %v1334
        %1337 = vset.pattern.permute.xlu0 0
        %1338 = vperm.xlu0 %1337, %v1329
        %v1339 = vpop.permute.xlu0 %1338
        %1342 = vset.pattern.permute.xlu0 0
        %1343 = vperm.xlu0 %1342, %v1330
        %v1344 = vpop.permute.xlu0 %1343
        %1347 = vset.pattern.permute.xlu0 0
        %1348 = vperm.xlu0 %1347, %v1331
        %v1349 = vpop.permute.xlu0 %1348
        %1352 = vset.pattern.permute.xlu0 0
        %1353 = vperm.xlu0 %1352, %v1332
        %v1354 = vpop.permute.xlu0 %1353
        %v1356 = vlaneseq
        %v1357 = vshrl.u32 %v1356, 7
        %v1358 = vsub.s32 0, %v1357
        %v1359 = vrot.slane %v1335, %v1358
        %v1360 = vmul.f32 %v1339, %v1359
        %v1361 = vmul.f32 %v1344, %v1359
        %v1362 = vmul.f32 %v1349, %v1359
        %v1363 = vmul.f32 %v1354, %v1359
        %v1364 = vadd.f32 %v1360, 0.0
        %v1365 = vadd.f32 %v1361, 0.0
        %v1366 = vadd.f32 %v1362, 0.0
        %v1367 = vadd.f32 %v1363, 0.0
        %v1368 = vlaneseq
        %v1369 = vshrl.u32 %v1368, 7
        %v1370 = vsub.s32 1, %v1369
        %v1371 = vrot.slane %v1335, %v1370
        %v1372 = vmul.f32 %v1339, %v1371
        %v1373 = vmul.f32 %v1344, %v1371
        %v1374 = vmul.f32 %v1349, %v1371
        %v1375 = vmul.f32 %v1354, %v1371
        %vm1380 = vcmask 1046528
        %v1381 = vrot.slane %v1372, 1
        %v1382 = vrot.slane %v1373, 1
        %v1383 = vsel %vm1380, %v1381, %v1382
        %v1384 = vrot.slane %v1374, 1
        %v1385 = vsel %vm1380, %v1382, %v1384
        %v1386 = vrot.slane %v1375, 1
        %v1387 = vsel %vm1380, %v1384, %v1386
        %v1392 = vadd.f32 %v1364, %v1383
        %v1393 = vadd.f32 %v1365, %v1385
        %v1394 = vadd.f32 %v1366, %v1387
        %v1395 = vadd.f32 %v1367, %v1386
        %v1396 = vlaneseq
        %v1397 = vshrl.u32 %v1396, 7
        %v1398 = vsub.s32 2, %v1397
        %v1399 = vrot.slane %v1335, %v1398
        %v1400 = vmul.f32 %v1339, %v1399
        %v1401 = vmul.f32 %v1344, %v1399
        %v1402 = vmul.f32 %v1349, %v1399
        %v1403 = vmul.f32 %v1354, %v1399
        %vm1408 = vcmask 1045504
        %v1409 = vrot.slane %v1400, 2
        %v1410 = vrot.slane %v1401, 2
        %v1411 = vsel %vm1408, %v1409, %v1410
        %v1412 = vrot.slane %v1402, 2
        %v1413 = vsel %vm1408, %v1410, %v1412
        %v1414 = vrot.slane %v1403, 2
        %v1415 = vsel %vm1408, %v1412, %v1414
        %v1420 = vadd.f32 %v1392, %v1411
        %v1421 = vadd.f32 %v1393, %v1413
        %v1422 = vadd.f32 %v1394, %v1415
        %v1423 = vadd.f32 %v1395, %v1414
        %v1424 = vlaneseq
        %v1425 = vshrl.u32 %v1424, 7
        %v1426 = vsub.s32 3, %v1425
        %v1427 = vrot.slane %v1335, %v1426
        %v1428 = vmul.f32 %v1339, %v1427
        %v1429 = vmul.f32 %v1344, %v1427
        %v1430 = vmul.f32 %v1349, %v1427
        %v1431 = vmul.f32 %v1354, %v1427
        %vm1436 = vcmask 1044480
        %v1437 = vrot.slane %v1428, 3
        %v1438 = vrot.slane %v1429, 3
        %v1439 = vsel %vm1436, %v1437, %v1438
        %v1440 = vrot.slane %v1430, 3
        %v1441 = vsel %vm1436, %v1438, %v1440
        %v1442 = vrot.slane %v1431, 3
        %v1443 = vsel %vm1436, %v1440, %v1442
        %v1448 = vadd.f32 %v1420, %v1439
        %v1449 = vadd.f32 %v1421, %v1441
        %v1450 = vadd.f32 %v1422, %v1443
        %v1451 = vadd.f32 %v1423, %v1442
        %v1452 = vlaneseq
        %v1453 = vshrl.u32 %v1452, 7
        %v1454 = vsub.s32 4, %v1453
        %v1455 = vrot.slane %v1335, %v1454
        %v1456 = vmul.f32 %v1339, %v1455
        %v1457 = vmul.f32 %v1344, %v1455
        %v1458 = vmul.f32 %v1349, %v1455
        %v1459 = vmul.f32 %v1354, %v1455
        %v1464 = vrot.slane %v1456, 4
        %v1465 = vrot.slane %v1457, 4
        %v1466 = vsel %vm369, %v1464, %v1465
        %v1467 = vrot.slane %v1458, 4
        %v1468 = vsel %vm369, %v1465, %v1467
        %v1469 = vrot.slane %v1459, 4
        %v1470 = vsel %vm369, %v1467, %v1469
        %v1475 = vadd.f32 %v1448, %v1466
        %v1476 = vadd.f32 %v1449, %v1468
        %v1477 = vadd.f32 %v1450, %v1470
        %v1478 = vadd.f32 %v1451, %v1469
        %v1479 = vlaneseq
        %v1480 = vshrl.u32 %v1479, 7
        %v1481 = vsub.s32 5, %v1480
        %v1482 = vrot.slane %v1335, %v1481
        %v1483 = vmul.f32 %v1339, %v1482
        %v1484 = vmul.f32 %v1344, %v1482
        %v1485 = vmul.f32 %v1349, %v1482
        %v1486 = vmul.f32 %v1354, %v1482
        %vm1491 = vcmask 1042432
        %v1492 = vrot.slane %v1483, 5
        %v1493 = vrot.slane %v1484, 5
        %v1494 = vsel %vm1491, %v1492, %v1493
        %v1495 = vrot.slane %v1485, 5
        %v1496 = vsel %vm1491, %v1493, %v1495
        %v1497 = vrot.slane %v1486, 5
        %v1498 = vsel %vm1491, %v1495, %v1497
        %v1503 = vadd.f32 %v1475, %v1494
        %v1504 = vadd.f32 %v1476, %v1496
        %v1505 = vadd.f32 %v1477, %v1498
        %v1506 = vadd.f32 %v1478, %v1497
        %v1507 = vlaneseq
        %v1508 = vshrl.u32 %v1507, 7
        %v1509 = vsub.s32 6, %v1508
        %v1510 = vrot.slane %v1335, %v1509
        %v1511 = vmul.f32 %v1339, %v1510
        %v1512 = vmul.f32 %v1344, %v1510
        %v1513 = vmul.f32 %v1349, %v1510
        %v1514 = vmul.f32 %v1354, %v1510
        %vm1519 = vcmask 1041408
        %v1520 = vrot.slane %v1511, 6
        %v1521 = vrot.slane %v1512, 6
        %v1522 = vsel %vm1519, %v1520, %v1521
        %v1523 = vrot.slane %v1513, 6
        %v1524 = vsel %vm1519, %v1521, %v1523
        %v1525 = vrot.slane %v1514, 6
        %v1526 = vsel %vm1519, %v1523, %v1525
        %v1531 = vadd.f32 %v1503, %v1522
        %v1532 = vadd.f32 %v1504, %v1524
        %v1533 = vadd.f32 %v1505, %v1526
        %v1534 = vadd.f32 %v1506, %v1525
        %v1535 = vlaneseq
        %v1536 = vshrl.u32 %v1535, 7
        %v1537 = vsub.s32 7, %v1536
        %v1538 = vrot.slane %v1335, %v1537
        %v1539 = vmul.f32 %v1339, %v1538
        %v1540 = vmul.f32 %v1344, %v1538
        %v1541 = vmul.f32 %v1349, %v1538
        %v1542 = vmul.f32 %v1354, %v1538
        %vm1547 = vcmask 1040384
        %v1548 = vrot.slane %v1539, 7
        %v1549 = vrot.slane %v1540, 7
        %v1550 = vsel %vm1547, %v1548, %v1549
        %v1551 = vrot.slane %v1541, 7
        %v1552 = vsel %vm1547, %v1549, %v1551
        %v1553 = vrot.slane %v1542, 7
        %v1554 = vsel %vm1547, %v1551, %v1553
        %v1559 = vadd.f32 %v1531, %v1550
        %v1560 = vadd.f32 %v1532, %v1552
        %v1561 = vadd.f32 %v1533, %v1554
        %v1562 = vadd.f32 %v1534, %v1553
        %v1563 = vld [vmem:[%s6 + $0xd] sm:$0x1]
        %v1564 = vlaneseq
        %v1565 = vshrl.u32 %v1564, 7
        %v1566 = vsub.s32 0, %v1565
        %v1567 = vrot.slane %v1563, %v1566
        %v1568 = vadd.f32 %v1559, %v1567
        %v1569 = vadd.f32 %v1560, %v1567
        %v1570 = vadd.f32 %v1561, %v1567
        %v1571 = vadd.f32 %v1562, %v1567
        %v1572 = vmax.f32 %v1568, 0.0
        %v1573 = vmax.f32 %v1569, 0.0
        %v1574 = vmax.f32 %v1570, 0.0
        %v1575 = vmax.f32 %v1571, 0.0
        %v1576 = vsel %vm1547, %v1575, -inf
        %v1577 = vmax.f32 %v1572, %v1573
        %v1578 = vmax.f32 %v1574, %v1576
        %v1579 = vmax.f32 %v1577, %v1578
        %v1580 = vrot.slane %v1579, 4
        %v1581 = vmax.f32 %v1579, %v1580
        %v1582 = vrot.slane %v1581, 2
        %v1583 = vmax.f32 %v1581, %v1582
        %v1584 = vrot.slane %v1583, 1
        %v1585 = vmax.f32 %v1583, %v1584
        %s1586 = scalar_lea.vmem %s5, 512
        %v1587 = vld [vmem:[%s1586] sm:$0xf]
        %v1588 = vld [vmem:[%s1586 + $0x4] sm:$0xf]
        %v1589 = vld [vmem:[%s1586 + $0x8] sm:$0xf]
        %v1590 = vld [vmem:[%s1586 + $0xc] sm:$0xf]
        %v1591 = vld [vmem:[%s1586 + $0x10] sm:$0xf]
        %v1592 = vld [vmem:[%s1586 + $0x14] sm:$0xf]
        %v1593 = vld [vmem:[%s1586 + $0x18] sm:$0xf]
        %v1594 = vld [vmem:[%s1586 + $0x1c] sm:$0xf]
        %v1595 = vld [vmem:[%s1586 + $0x20] sm:$0xf]
        %v1596 = vld [vmem:[%s1586 + $0x24] sm:$0xf]
        %v1597 = vld [vmem:[%s1586 + $0x28] sm:$0xf]
        %v1598 = vld [vmem:[%s1586 + $0x2c] sm:$0xf]
        %v1599 = vld [vmem:[%s1586 + $0x30] sm:$0xf]
        %v1600 = vld [vmem:[%s1586 + $0x34] sm:$0xf]
        %v1601 = vld [vmem:[%s1586 + $0x38] sm:$0xf]
        %v1602 = vld [vmem:[%s1586 + $0x3c] sm:$0xf]
        %v1603 = vpack.c.bf16 %v1585, %v1585
        %v1604 = vld [vmem:[%s6 + $0xe] sm:$0x1]
        %v1621 = vunpack.c.l.b16 %v1587
        %v1622 = vunpack.c.l.b16 %v1588
        %v1623 = vunpack.c.l.b16 %v1589
        %v1624 = vunpack.c.l.b16 %v1590
        %v1625 = vunpack.c.l.b16 %v1591
        %v1626 = vunpack.c.l.b16 %v1592
        %v1627 = vunpack.c.l.b16 %v1593
        %v1628 = vunpack.c.l.b16 %v1594
        %v1629 = vunpack.c.l.b16 %v1595
        %v1630 = vunpack.c.l.b16 %v1596
        %v1631 = vunpack.c.l.b16 %v1597
        %v1632 = vunpack.c.l.b16 %v1598
        %v1633 = vunpack.c.l.b16 %v1599
        %v1634 = vunpack.c.l.b16 %v1600
        %v1635 = vunpack.c.l.b16 %v1601
        %v1636 = vunpack.c.l.b16 %v1602
        %v1637 = vpack.c.b16 %v1622, %v1621
        %v1638 = vpack.c.b16 %v1624, %v1623
        %v1639 = vpack.c.b16 %v1626, %v1625
        %v1640 = vpack.c.b16 %v1628, %v1627
        %v1641 = vpack.c.b16 %v1630, %v1629
        %v1642 = vpack.c.b16 %v1632, %v1631
        %v1643 = vpack.c.b16 %v1634, %v1633
        %v1644 = vpack.c.b16 %v1636, %v1635
        %1653 = vmatprep.subr.bf16.mxu0 0
        %1654 = vmatpush1.bf16.msra.mxu0 %v1637
        %1655 = vmatprep.subr.bf16.mxu0 0
        %1656 = vmatpush1.bf16.msra.mxu0 %v1638
        %1657 = vmatprep.subr.bf16.mxu0 0
        %1658 = vmatpush1.bf16.msra.mxu0 %v1639
        %1659 = vmatprep.subr.bf16.mxu0 0
        %1660 = vmatpush1.bf16.msra.mxu0 %v1640
        %1661 = vmatprep.subr.bf16.mxu0 0
        %1662 = vmatpush1.bf16.msra.mxu0 %v1641
        %1663 = vmatprep.subr.bf16.mxu0 0
        %1664 = vmatpush1.bf16.msra.mxu0 %v1642
        %1665 = vmatprep.subr.bf16.mxu0 0
        %1666 = vmatpush1.bf16.msra.mxu0 %v1643
        %1667 = vmatprep.subr.bf16.mxu0 0
        %1668 = vmatpush1.bf16.msra.mxu0 %v1644
        %1669 = vmatprep.subr.bf16.mxu0 0
        %1670 = vmatpush1.bf16.msra.mxu0 0
        %1671 = vmatprep.subr.bf16.mxu0 0
        %1672 = vmatpush1.bf16.msra.mxu0 0
        %1673 = vmatprep.subr.bf16.mxu0 0
        %1674 = vmatpush1.bf16.msra.mxu0 0
        %1675 = vmatprep.subr.bf16.mxu0 0
        %1676 = vmatpush1.bf16.msra.mxu0 0
        %1677 = vmatprep.subr.bf16.mxu0 0
        %1678 = vmatpush1.bf16.msra.mxu0 0
        %1679 = vmatprep.subr.bf16.mxu0 0
        %1680 = vmatpush1.bf16.msra.mxu0 0
        %1681 = vmatprep.subr.bf16.mxu0 0
        %1682 = vmatpush1.bf16.msra.mxu0 0
        %1683 = vmatprep.subr.bf16.mxu0 0
        %1684 = vmatpush1.bf16.msra.mxu0 0
        %1685 = vmatprep.mubr.bf16.mxu0 0
        %1686 = vmatmul.mubr.bf16.gmra.mrb[0].mxu0 %v1603
        %v1687 = vpop.f32.mrb[0].mxu0
        %v1688 = vadd.f32 %v1604, %v1687
        %v1689 = vpop.f32.mrb[0].mxu0
        %v1690 = vpop.f32.mrb[0].mxu0
        %v1691 = vpop.f32.mrb[0].mxu0
        %1692 = vdwg.mxu0
        %v1693 = vmax.f32 %v1688, 0.0
        %v1694 = vld [vmem:[%s356] sm:$0x1]
        %s1695 = scalar_lea.vmem %s5, 576
        %v1696 = vld [vmem:[%s1695] sm:$0xf]
        %v1697 = vld [vmem:[%s1695 + $0x4] sm:$0xf]
        %v1698 = vld [vmem:[%s1695 + $0x8] sm:$0xf]
        %v1699 = vld [vmem:[%s1695 + $0xc] sm:$0xf]
        %v1700 = vld [vmem:[%s1695 + $0x10] sm:$0xf]
        %v1701 = vld [vmem:[%s1695 + $0x14] sm:$0xf]
        %v1702 = vld [vmem:[%s1695 + $0x18] sm:$0xf]
        %v1703 = vld [vmem:[%s1695 + $0x1c] sm:$0xf]
        %v1704 = vld [vmem:[%s1695 + $0x20] sm:$0xf]
        %v1705 = vld [vmem:[%s1695 + $0x24] sm:$0xf]
        %v1706 = vld [vmem:[%s1695 + $0x28] sm:$0xf]
        %v1707 = vld [vmem:[%s1695 + $0x2c] sm:$0xf]
        %v1708 = vld [vmem:[%s1695 + $0x30] sm:$0xf]
        %v1709 = vld [vmem:[%s1695 + $0x34] sm:$0xf]
        %v1710 = vld [vmem:[%s1695 + $0x38] sm:$0xf]
        %v1711 = vld [vmem:[%s1695 + $0x3c] sm:$0xf]
        %v1712 = vpack.c.bf16 %v1694, %v1694
        %v1713 = vld [vmem:[%s6 + $0xf] sm:$0x1]
        %v1730 = vunpack.c.l.b16 %v1696
        %v1731 = vunpack.c.l.b16 %v1697
        %v1732 = vunpack.c.l.b16 %v1698
        %v1733 = vunpack.c.l.b16 %v1699
        %v1734 = vunpack.c.l.b16 %v1700
        %v1735 = vunpack.c.l.b16 %v1701
        %v1736 = vunpack.c.l.b16 %v1702
        %v1737 = vunpack.c.l.b16 %v1703
        %v1738 = vunpack.c.l.b16 %v1704
        %v1739 = vunpack.c.l.b16 %v1705
        %v1740 = vunpack.c.l.b16 %v1706
        %v1741 = vunpack.c.l.b16 %v1707
        %v1742 = vunpack.c.l.b16 %v1708
        %v1743 = vunpack.c.l.b16 %v1709
        %v1744 = vunpack.c.l.b16 %v1710
        %v1745 = vunpack.c.l.b16 %v1711
        %v1746 = vpack.c.b16 %v1731, %v1730
        %v1747 = vpack.c.b16 %v1733, %v1732
        %v1748 = vpack.c.b16 %v1735, %v1734
        %v1749 = vpack.c.b16 %v1737, %v1736
        %v1750 = vpack.c.b16 %v1739, %v1738
        %v1751 = vpack.c.b16 %v1741, %v1740
        %v1752 = vpack.c.b16 %v1743, %v1742
        %v1753 = vpack.c.b16 %v1745, %v1744
        %1762 = vmatprep.subr.bf16.mxu0 0
        %1763 = vmatpush1.bf16.msra.mxu0 %v1746
        %1764 = vmatprep.subr.bf16.mxu0 0
        %1765 = vmatpush1.bf16.msra.mxu0 %v1747
        %1766 = vmatprep.subr.bf16.mxu0 0
        %1767 = vmatpush1.bf16.msra.mxu0 %v1748
        %1768 = vmatprep.subr.bf16.mxu0 0
        %1769 = vmatpush1.bf16.msra.mxu0 %v1749
        %1770 = vmatprep.subr.bf16.mxu0 0
        %1771 = vmatpush1.bf16.msra.mxu0 %v1750
        %1772 = vmatprep.subr.bf16.mxu0 0
        %1773 = vmatpush1.bf16.msra.mxu0 %v1751
        %1774 = vmatprep.subr.bf16.mxu0 0
        %1775 = vmatpush1.bf16.msra.mxu0 %v1752
        %1776 = vmatprep.subr.bf16.mxu0 0
        %1777 = vmatpush1.bf16.msra.mxu0 %v1753
        %1778 = vmatprep.subr.bf16.mxu0 0
        %1779 = vmatpush1.bf16.msra.mxu0 0
        %1780 = vmatprep.subr.bf16.mxu0 0
        %1781 = vmatpush1.bf16.msra.mxu0 0
        %1782 = vmatprep.subr.bf16.mxu0 0
        %1783 = vmatpush1.bf16.msra.mxu0 0
        %1784 = vmatprep.subr.bf16.mxu0 0
        %1785 = vmatpush1.bf16.msra.mxu0 0
        %1786 = vmatprep.subr.bf16.mxu0 0
        %1787 = vmatpush1.bf16.msra.mxu0 0
        %1788 = vmatprep.subr.bf16.mxu0 0
        %1789 = vmatpush1.bf16.msra.mxu0 0
        %1790 = vmatprep.subr.bf16.mxu0 0
        %1791 = vmatpush1.bf16.msra.mxu0 0
        %1792 = vmatprep.subr.bf16.mxu0 0
        %1793 = vmatpush1.bf16.msra.mxu0 0
        %1794 = vmatprep.mubr.bf16.mxu0 0
        %1795 = vmatmul.mubr.bf16.gmra.mrb[0].mxu0 %v1712
        %v1796 = vpop.f32.mrb[0].mxu0
        %v1797 = vadd.f32 %v1713, %v1796
        %v1798 = vpop.f32.mrb[0].mxu0
        %v1799 = vpop.f32.mrb[0].mxu0
        %v1800 = vpop.f32.mrb[0].mxu0
        %1801 = vdwg.mxu0
        %v1802 = vmax.f32 %v1797, 0.0
        %s1803 = scalar_lea.vmem %s5, 640
        %v1804 = vld [vmem:[%s1803] sm:$0xf]
        %v1805 = vld [vmem:[%s1803 + $0x4] sm:$0xf]
        %v1806 = vld [vmem:[%s1803 + $0x8] sm:$0xf]
        %v1807 = vld [vmem:[%s1803 + $0xc] sm:$0xf]
        %v1808 = vld [vmem:[%s1803 + $0x10] sm:$0xf]
        %v1809 = vld [vmem:[%s1803 + $0x14] sm:$0xf]
        %v1810 = vld [vmem:[%s1803 + $0x18] sm:$0xf]
        %v1811 = vld [vmem:[%s1803 + $0x1c] sm:$0xf]
        %v1812 = vld [vmem:[%s1803 + $0x20] sm:$0xf]
        %v1813 = vld [vmem:[%s1803 + $0x24] sm:$0xf]
        %v1814 = vld [vmem:[%s1803 + $0x28] sm:$0xf]
        %v1815 = vld [vmem:[%s1803 + $0x2c] sm:$0xf]
        %v1816 = vld [vmem:[%s1803 + $0x30] sm:$0xf]
        %v1817 = vld [vmem:[%s1803 + $0x34] sm:$0xf]
        %v1818 = vld [vmem:[%s1803 + $0x38] sm:$0xf]
        %v1819 = vld [vmem:[%s1803 + $0x3c] sm:$0xf]
        %v1820 = vpack.c.bf16 %v1802, %v1802
        %v1821 = vld [vmem:[%s6 + $0x10] sm:$0x1]
        %v1838 = vunpack.c.l.b16 %v1804
        %v1839 = vunpack.c.l.b16 %v1805
        %v1840 = vunpack.c.l.b16 %v1806
        %v1841 = vunpack.c.l.b16 %v1807
        %v1842 = vunpack.c.l.b16 %v1808
        %v1843 = vunpack.c.l.b16 %v1809
        %v1844 = vunpack.c.l.b16 %v1810
        %v1845 = vunpack.c.l.b16 %v1811
        %v1846 = vunpack.c.l.b16 %v1812
        %v1847 = vunpack.c.l.b16 %v1813
        %v1848 = vunpack.c.l.b16 %v1814
        %v1849 = vunpack.c.l.b16 %v1815
        %v1850 = vunpack.c.l.b16 %v1816
        %v1851 = vunpack.c.l.b16 %v1817
        %v1852 = vunpack.c.l.b16 %v1818
        %v1853 = vunpack.c.l.b16 %v1819
        %v1854 = vpack.c.b16 %v1839, %v1838
        %v1855 = vpack.c.b16 %v1841, %v1840
        %v1856 = vpack.c.b16 %v1843, %v1842
        %v1857 = vpack.c.b16 %v1845, %v1844
        %v1858 = vpack.c.b16 %v1847, %v1846
        %v1859 = vpack.c.b16 %v1849, %v1848
        %v1860 = vpack.c.b16 %v1851, %v1850
        %v1861 = vpack.c.b16 %v1853, %v1852
        %1870 = vmatprep.subr.bf16.mxu0 0
        %1871 = vmatpush1.bf16.msra.mxu0 %v1854
        %1872 = vmatprep.subr.bf16.mxu0 0
        %1873 = vmatpush1.bf16.msra.mxu0 %v1855
        %1874 = vmatprep.subr.bf16.mxu0 0
        %1875 = vmatpush1.bf16.msra.mxu0 %v1856
        %1876 = vmatprep.subr.bf16.mxu0 0
        %1877 = vmatpush1.bf16.msra.mxu0 %v1857
        %1878 = vmatprep.subr.bf16.mxu0 0
        %1879 = vmatpush1.bf16.msra.mxu0 %v1858
        %1880 = vmatprep.subr.bf16.mxu0 0
        %1881 = vmatpush1.bf16.msra.mxu0 %v1859
        %1882 = vmatprep.subr.bf16.mxu0 0
        %1883 = vmatpush1.bf16.msra.mxu0 %v1860
        %1884 = vmatprep.subr.bf16.mxu0 0
        %1885 = vmatpush1.bf16.msra.mxu0 %v1861
        %1886 = vmatprep.subr.bf16.mxu0 0
        %1887 = vmatpush1.bf16.msra.mxu0 0
        %1888 = vmatprep.subr.bf16.mxu0 0
        %1889 = vmatpush1.bf16.msra.mxu0 0
        %1890 = vmatprep.subr.bf16.mxu0 0
        %1891 = vmatpush1.bf16.msra.mxu0 0
        %1892 = vmatprep.subr.bf16.mxu0 0
        %1893 = vmatpush1.bf16.msra.mxu0 0
        %1894 = vmatprep.subr.bf16.mxu0 0
        %1895 = vmatpush1.bf16.msra.mxu0 0
        %1896 = vmatprep.subr.bf16.mxu0 0
        %1897 = vmatpush1.bf16.msra.mxu0 0
        %1898 = vmatprep.subr.bf16.mxu0 0
        %1899 = vmatpush1.bf16.msra.mxu0 0
        %1900 = vmatprep.subr.bf16.mxu0 0
        %1901 = vmatpush1.bf16.msra.mxu0 0
        %1902 = vmatprep.mubr.bf16.mxu0 0
        %1903 = vmatmul.mubr.bf16.gmra.mrb[0].mxu0 %v1820
        %v1904 = vpop.f32.mrb[0].mxu0
        %v1905 = vadd.f32 %v1821, %v1904
        %v1906 = vpop.f32.mrb[0].mxu0
        %v1907 = vpop.f32.mrb[0].mxu0
        %v1908 = vpop.f32.mrb[0].mxu0
        %1909 = vdwg.mxu0
        %v1910 = vmax.f32 %v1905, 0.0
        %s1911 = scalar_lea.vmem %s5, 704
        %v1912 = vld [vmem:[%s1911] sm:$0xf]
        %v1913 = vld [vmem:[%s1911 + $0x4] sm:$0xf]
        %v1914 = vld [vmem:[%s1911 + $0x8] sm:$0xf]
        %v1915 = vld [vmem:[%s1911 + $0xc] sm:$0xf]
        %v1916 = vld [vmem:[%s1911 + $0x10] sm:$0xf]
        %v1917 = vld [vmem:[%s1911 + $0x14] sm:$0xf]
        %v1918 = vld [vmem:[%s1911 + $0x18] sm:$0xf]
        %v1919 = vld [vmem:[%s1911 + $0x1c] sm:$0xf]
        %v1920 = vld [vmem:[%s1911 + $0x20] sm:$0xf]
        %v1921 = vld [vmem:[%s1911 + $0x24] sm:$0xf]
        %v1922 = vld [vmem:[%s1911 + $0x28] sm:$0xf]
        %v1923 = vld [vmem:[%s1911 + $0x2c] sm:$0xf]
        %v1924 = vld [vmem:[%s1911 + $0x30] sm:$0xf]
        %v1925 = vld [vmem:[%s1911 + $0x34] sm:$0xf]
        %v1926 = vld [vmem:[%s1911 + $0x38] sm:$0xf]
        %v1927 = vld [vmem:[%s1911 + $0x3c] sm:$0xf]
        %v1928 = vpack.c.bf16 %v1328, %v1328
        %s1929 = scalar_lea.vmem %s5, 832
        %v1930 = vld [vmem:[%s1929] sm:$0xf]
        %v1931 = vld [vmem:[%s1929 + $0x4] sm:$0xf]
        %v1932 = vld [vmem:[%s1929 + $0x8] sm:$0xf]
        %v1933 = vld [vmem:[%s1929 + $0xc] sm:$0xf]
        %v1934 = vld [vmem:[%s1929 + $0x10] sm:$0xf]
        %v1935 = vld [vmem:[%s1929 + $0x14] sm:$0xf]
        %v1936 = vld [vmem:[%s1929 + $0x18] sm:$0xf]
        %v1937 = vld [vmem:[%s1929 + $0x1c] sm:$0xf]
        %v1938 = vld [vmem:[%s1929 + $0x20] sm:$0xf]
        %v1939 = vld [vmem:[%s1929 + $0x24] sm:$0xf]
        %v1940 = vld [vmem:[%s1929 + $0x28] sm:$0xf]
        %v1941 = vld [vmem:[%s1929 + $0x2c] sm:$0xf]
        %v1942 = vld [vmem:[%s1929 + $0x30] sm:$0xf]
        %v1943 = vld [vmem:[%s1929 + $0x34] sm:$0xf]
        %v1944 = vld [vmem:[%s1929 + $0x38] sm:$0xf]
        %v1945 = vld [vmem:[%s1929 + $0x3c] sm:$0xf]
        %v1946 = vpack.c.bf16 %v1693, %v1693
        %v1963 = vunpack.c.l.b16 %v1930
        %v1964 = vunpack.c.l.b16 %v1931
        %v1965 = vunpack.c.l.b16 %v1932
        %v1966 = vunpack.c.l.b16 %v1933
        %v1967 = vunpack.c.l.b16 %v1934
        %v1968 = vunpack.c.l.b16 %v1935
        %v1969 = vunpack.c.l.b16 %v1936
        %v1970 = vunpack.c.l.b16 %v1937
        %v1971 = vunpack.c.l.b16 %v1938
        %v1972 = vunpack.c.l.b16 %v1939
        %v1973 = vunpack.c.l.b16 %v1940
        %v1974 = vunpack.c.l.b16 %v1941
        %v1975 = vunpack.c.l.b16 %v1942
        %v1976 = vunpack.c.l.b16 %v1943
        %v1977 = vunpack.c.l.b16 %v1944
        %v1978 = vunpack.c.l.b16 %v1945
        %v1979 = vpack.c.b16 %v1964, %v1963
        %v1980 = vpack.c.b16 %v1966, %v1965
        %v1981 = vpack.c.b16 %v1968, %v1967
        %v1982 = vpack.c.b16 %v1970, %v1969
        %v1983 = vpack.c.b16 %v1972, %v1971
        %v1984 = vpack.c.b16 %v1974, %v1973
        %v1985 = vpack.c.b16 %v1976, %v1975
        %v1986 = vpack.c.b16 %v1978, %v1977
        %1995 = vmatprep.subr.bf16.mxu0 0
        %1996 = vmatpush1.bf16.msra.mxu0 %v1979
        %1997 = vmatprep.subr.bf16.mxu0 0
        %1998 = vmatpush1.bf16.msra.mxu0 %v1980
        %1999 = vmatprep.subr.bf16.mxu0 0
        %2000 = vmatpush1.bf16.msra.mxu0 %v1981
        %2001 = vmatprep.subr.bf16.mxu0 0
        %2002 = vmatpush1.bf16.msra.mxu0 %v1982
        %2003 = vmatprep.subr.bf16.mxu0 0
        %2004 = vmatpush1.bf16.msra.mxu0 %v1983
        %2005 = vmatprep.subr.bf16.mxu0 0
        %2006 = vmatpush1.bf16.msra.mxu0 %v1984
        %2007 = vmatprep.subr.bf16.mxu0 0
        %2008 = vmatpush1.bf16.msra.mxu0 %v1985
        %2009 = vmatprep.subr.bf16.mxu0 0
        %2010 = vmatpush1.bf16.msra.mxu0 %v1986
        %2011 = vmatprep.subr.bf16.mxu0 0
        %2012 = vmatpush1.bf16.msra.mxu0 0
        %2013 = vmatprep.subr.bf16.mxu0 0
        %2014 = vmatpush1.bf16.msra.mxu0 0
        %2015 = vmatprep.subr.bf16.mxu0 0
        %2016 = vmatpush1.bf16.msra.mxu0 0
        %2017 = vmatprep.subr.bf16.mxu0 0
        %2018 = vmatpush1.bf16.msra.mxu0 0
        %2019 = vmatprep.subr.bf16.mxu0 0
        %2020 = vmatpush1.bf16.msra.mxu0 0
        %2021 = vmatprep.subr.bf16.mxu0 0
        %2022 = vmatpush1.bf16.msra.mxu0 0
        %2023 = vmatprep.subr.bf16.mxu0 0
        %2024 = vmatpush1.bf16.msra.mxu0 0
        %2025 = vmatprep.subr.bf16.mxu0 0
        %2026 = vmatpush1.bf16.msra.mxu0 0
        %2027 = vmatprep.mubr.bf16.mxu0 0
        %2028 = vmatmul.mubr.bf16.gmra.mrb[0].mxu0 %v1946
        %v2029 = vpop.f32.mrb[0].mxu0
        %v2030 = vadd.f32 0.0, %v2029
        %v2031 = vpop.f32.mrb[0].mxu0
        %v2032 = vpop.f32.mrb[0].mxu0
        %v2033 = vpop.f32.mrb[0].mxu0
        %2034 = vdwg.mxu0
        %v2051 = vunpack.c.l.b16 %v1912
        %v2052 = vunpack.c.l.b16 %v1913
        %v2053 = vunpack.c.l.b16 %v1914
        %v2054 = vunpack.c.l.b16 %v1915
        %v2055 = vunpack.c.l.b16 %v1916
        %v2056 = vunpack.c.l.b16 %v1917
        %v2057 = vunpack.c.l.b16 %v1918
        %v2058 = vunpack.c.l.b16 %v1919
        %v2059 = vunpack.c.l.b16 %v1920
        %v2060 = vunpack.c.l.b16 %v1921
        %v2061 = vunpack.c.l.b16 %v1922
        %v2062 = vunpack.c.l.b16 %v1923
        %v2063 = vunpack.c.l.b16 %v1924
        %v2064 = vunpack.c.l.b16 %v1925
        %v2065 = vunpack.c.l.b16 %v1926
        %v2066 = vunpack.c.l.b16 %v1927
        %v2067 = vpack.c.b16 %v2052, %v2051
        %v2068 = vpack.c.b16 %v2054, %v2053
        %v2069 = vpack.c.b16 %v2056, %v2055
        %v2070 = vpack.c.b16 %v2058, %v2057
        %v2071 = vpack.c.b16 %v2060, %v2059
        %v2072 = vpack.c.b16 %v2062, %v2061
        %v2073 = vpack.c.b16 %v2064, %v2063
        %v2074 = vpack.c.b16 %v2066, %v2065
        %2083 = vmatprep.subr.bf16.mxu0 0
        %2084 = vmatpush1.bf16.msra.mxu0 %v2067
        %2085 = vmatprep.subr.bf16.mxu0 0
        %2086 = vmatpush1.bf16.msra.mxu0 %v2068
        %2087 = vmatprep.subr.bf16.mxu0 0
        %2088 = vmatpush1.bf16.msra.mxu0 %v2069
        %2089 = vmatprep.subr.bf16.mxu0 0
        %2090 = vmatpush1.bf16.msra.mxu0 %v2070
        %2091 = vmatprep.subr.bf16.mxu0 0
        %2092 = vmatpush1.bf16.msra.mxu0 %v2071
        %2093 = vmatprep.subr.bf16.mxu0 0
        %2094 = vmatpush1.bf16.msra.mxu0 %v2072
        %2095 = vmatprep.subr.bf16.mxu0 0
        %2096 = vmatpush1.bf16.msra.mxu0 %v2073
        %2097 = vmatprep.subr.bf16.mxu0 0
        %2098 = vmatpush1.bf16.msra.mxu0 %v2074
        %2099 = vmatprep.subr.bf16.mxu0 0
        %2100 = vmatpush1.bf16.msra.mxu0 0
        %2101 = vmatprep.subr.bf16.mxu0 0
        %2102 = vmatpush1.bf16.msra.mxu0 0
        %2103 = vmatprep.subr.bf16.mxu0 0
        %2104 = vmatpush1.bf16.msra.mxu0 0
        %2105 = vmatprep.subr.bf16.mxu0 0
        %2106 = vmatpush1.bf16.msra.mxu0 0
        %2107 = vmatprep.subr.bf16.mxu0 0
        %2108 = vmatpush1.bf16.msra.mxu0 0
        %2109 = vmatprep.subr.bf16.mxu0 0
        %2110 = vmatpush1.bf16.msra.mxu0 0
        %2111 = vmatprep.subr.bf16.mxu0 0
        %2112 = vmatpush1.bf16.msra.mxu0 0
        %2113 = vmatprep.subr.bf16.mxu0 0
        %2114 = vmatpush1.bf16.msra.mxu0 0
        %2115 = vmatprep.mubr.bf16.mxu0 0
        %2116 = vmatmul.mubr.bf16.gmra.mrb[0].mxu0 %v1928
        %v2117 = vpop.f32.mrb[0].mxu0
        %v2118 = vadd.f32 %v2030, %v2117
        %v2119 = vpop.f32.mrb[0].mxu0
        %v2120 = vpop.f32.mrb[0].mxu0
        %v2121 = vpop.f32.mrb[0].mxu0
        %2122 = vdwg.mxu0
        %s2123 = scalar_lea.vmem %s5, 960
        %v2124 = vld [vmem:[%s2123] sm:$0xf]
        %v2125 = vld [vmem:[%s2123 + $0x4] sm:$0xf]
        %v2126 = vld [vmem:[%s2123 + $0x8] sm:$0xf]
        %v2127 = vld [vmem:[%s2123 + $0xc] sm:$0xf]
        %v2128 = vld [vmem:[%s2123 + $0x10] sm:$0xf]
        %v2129 = vld [vmem:[%s2123 + $0x14] sm:$0xf]
        %v2130 = vld [vmem:[%s2123 + $0x18] sm:$0xf]
        %v2131 = vld [vmem:[%s2123 + $0x1c] sm:$0xf]
        %v2132 = vld [vmem:[%s2123 + $0x20] sm:$0xf]
        %v2133 = vld [vmem:[%s2123 + $0x24] sm:$0xf]
        %v2134 = vld [vmem:[%s2123 + $0x28] sm:$0xf]
        %v2135 = vld [vmem:[%s2123 + $0x2c] sm:$0xf]
        %v2136 = vld [vmem:[%s2123 + $0x30] sm:$0xf]
        %v2137 = vld [vmem:[%s2123 + $0x34] sm:$0xf]
        %v2138 = vld [vmem:[%s2123 + $0x38] sm:$0xf]
        %v2139 = vld [vmem:[%s2123 + $0x3c] sm:$0xf]
        %v2140 = vpack.c.bf16 %v1910, %v1910
        %v2157 = vunpack.c.l.b16 %v2124
        %v2158 = vunpack.c.l.b16 %v2125
        %v2159 = vunpack.c.l.b16 %v2126
        %v2160 = vunpack.c.l.b16 %v2127
        %v2161 = vunpack.c.l.b16 %v2128
        %v2162 = vunpack.c.l.b16 %v2129
        %v2163 = vunpack.c.l.b16 %v2130
        %v2164 = vunpack.c.l.b16 %v2131
        %v2165 = vunpack.c.l.b16 %v2132
        %v2166 = vunpack.c.l.b16 %v2133
        %v2167 = vunpack.c.l.b16 %v2134
        %v2168 = vunpack.c.l.b16 %v2135
        %v2169 = vunpack.c.l.b16 %v2136
        %v2170 = vunpack.c.l.b16 %v2137
        %v2171 = vunpack.c.l.b16 %v2138
        %v2172 = vunpack.c.l.b16 %v2139
        %v2173 = vpack.c.b16 %v2158, %v2157
        %v2174 = vpack.c.b16 %v2160, %v2159
        %v2175 = vpack.c.b16 %v2162, %v2161
        %v2176 = vpack.c.b16 %v2164, %v2163
        %v2177 = vpack.c.b16 %v2166, %v2165
        %v2178 = vpack.c.b16 %v2168, %v2167
        %v2179 = vpack.c.b16 %v2170, %v2169
        %v2180 = vpack.c.b16 %v2172, %v2171
        %2189 = vmatprep.subr.bf16.mxu0 0
        %2190 = vmatpush1.bf16.msra.mxu0 %v2173
        %2191 = vmatprep.subr.bf16.mxu0 0
        %2192 = vmatpush1.bf16.msra.mxu0 %v2174
        %2193 = vmatprep.subr.bf16.mxu0 0
        %2194 = vmatpush1.bf16.msra.mxu0 %v2175
        %2195 = vmatprep.subr.bf16.mxu0 0
        %2196 = vmatpush1.bf16.msra.mxu0 %v2176
        %2197 = vmatprep.subr.bf16.mxu0 0
        %2198 = vmatpush1.bf16.msra.mxu0 %v2177
        %2199 = vmatprep.subr.bf16.mxu0 0
        %2200 = vmatpush1.bf16.msra.mxu0 %v2178
        %2201 = vmatprep.subr.bf16.mxu0 0
        %2202 = vmatpush1.bf16.msra.mxu0 %v2179
        %2203 = vmatprep.subr.bf16.mxu0 0
        %2204 = vmatpush1.bf16.msra.mxu0 %v2180
        %2205 = vmatprep.subr.bf16.mxu0 0
        %2206 = vmatpush1.bf16.msra.mxu0 0
        %2207 = vmatprep.subr.bf16.mxu0 0
        %2208 = vmatpush1.bf16.msra.mxu0 0
        %2209 = vmatprep.subr.bf16.mxu0 0
        %2210 = vmatpush1.bf16.msra.mxu0 0
        %2211 = vmatprep.subr.bf16.mxu0 0
        %2212 = vmatpush1.bf16.msra.mxu0 0
        %2213 = vmatprep.subr.bf16.mxu0 0
        %2214 = vmatpush1.bf16.msra.mxu0 0
        %2215 = vmatprep.subr.bf16.mxu0 0
        %2216 = vmatpush1.bf16.msra.mxu0 0
        %2217 = vmatprep.subr.bf16.mxu0 0
        %2218 = vmatpush1.bf16.msra.mxu0 0
        %2219 = vmatprep.subr.bf16.mxu0 0
        %2220 = vmatpush1.bf16.msra.mxu0 0
        %2221 = vmatprep.mubr.bf16.mxu0 0
        %2222 = vmatmul.mubr.bf16.gmra.mrb[0].mxu0 %v2140
        %v2223 = vpop.f32.mrb[0].mxu0
        %v2224 = vadd.f32 0.0, %v2223
        %v2225 = vpop.f32.mrb[0].mxu0
        %v2226 = vpop.f32.mrb[0].mxu0
        %v2227 = vpop.f32.mrb[0].mxu0
        %2228 = vdwg.mxu0
        %v2229 = vadd.f32 %v2118, %v2224
        %v2230 = vld [vmem:[%s6 + $0x11] sm:$0x1]
        %v2231 = vadd.f32 %v2229, %v2230
        %v2232 = vmax.f32 %v2231, 0.0
        %s2233 = scalar_lea.vmem %s5, 768
        %v2234 = vld [vmem:[%s2233] sm:$0xf]
        %v2235 = vld [vmem:[%s2233 + $0x4] sm:$0xf]
        %v2236 = vld [vmem:[%s2233 + $0x8] sm:$0xf]
        %v2237 = vld [vmem:[%s2233 + $0xc] sm:$0xf]
        %v2238 = vld [vmem:[%s2233 + $0x10] sm:$0xf]
        %v2239 = vld [vmem:[%s2233 + $0x14] sm:$0xf]
        %v2240 = vld [vmem:[%s2233 + $0x18] sm:$0xf]
        %v2241 = vld [vmem:[%s2233 + $0x1c] sm:$0xf]
        %v2242 = vld [vmem:[%s2233 + $0x20] sm:$0xf]
        %v2243 = vld [vmem:[%s2233 + $0x24] sm:$0xf]
        %v2244 = vld [vmem:[%s2233 + $0x28] sm:$0xf]
        %v2245 = vld [vmem:[%s2233 + $0x2c] sm:$0xf]
        %v2246 = vld [vmem:[%s2233 + $0x30] sm:$0xf]
        %v2247 = vld [vmem:[%s2233 + $0x34] sm:$0xf]
        %v2248 = vld [vmem:[%s2233 + $0x38] sm:$0xf]
        %v2249 = vld [vmem:[%s2233 + $0x3c] sm:$0xf]
        %s2250 = scalar_lea.vmem %s5, 896
        %v2251 = vld [vmem:[%s2250] sm:$0xf]
        %v2252 = vld [vmem:[%s2250 + $0x4] sm:$0xf]
        %v2253 = vld [vmem:[%s2250 + $0x8] sm:$0xf]
        %v2254 = vld [vmem:[%s2250 + $0xc] sm:$0xf]
        %v2255 = vld [vmem:[%s2250 + $0x10] sm:$0xf]
        %v2256 = vld [vmem:[%s2250 + $0x14] sm:$0xf]
        %v2257 = vld [vmem:[%s2250 + $0x18] sm:$0xf]
        %v2258 = vld [vmem:[%s2250 + $0x1c] sm:$0xf]
        %v2259 = vld [vmem:[%s2250 + $0x20] sm:$0xf]
        %v2260 = vld [vmem:[%s2250 + $0x24] sm:$0xf]
        %v2261 = vld [vmem:[%s2250 + $0x28] sm:$0xf]
        %v2262 = vld [vmem:[%s2250 + $0x2c] sm:$0xf]
        %v2263 = vld [vmem:[%s2250 + $0x30] sm:$0xf]
        %v2264 = vld [vmem:[%s2250 + $0x34] sm:$0xf]
        %v2265 = vld [vmem:[%s2250 + $0x38] sm:$0xf]
        %v2266 = vld [vmem:[%s2250 + $0x3c] sm:$0xf]
        %v2283 = vunpack.c.l.b16 %v2251
        %v2284 = vunpack.c.l.b16 %v2252
        %v2285 = vunpack.c.l.b16 %v2253
        %v2286 = vunpack.c.l.b16 %v2254
        %v2287 = vunpack.c.l.b16 %v2255
        %v2288 = vunpack.c.l.b16 %v2256
        %v2289 = vunpack.c.l.b16 %v2257
        %v2290 = vunpack.c.l.b16 %v2258
        %v2291 = vunpack.c.l.b16 %v2259
        %v2292 = vunpack.c.l.b16 %v2260
        %v2293 = vunpack.c.l.b16 %v2261
        %v2294 = vunpack.c.l.b16 %v2262
        %v2295 = vunpack.c.l.b16 %v2263
        %v2296 = vunpack.c.l.b16 %v2264
        %v2297 = vunpack.c.l.b16 %v2265
        %v2298 = vunpack.c.l.b16 %v2266
        %v2299 = vpack.c.b16 %v2284, %v2283
        %v2300 = vpack.c.b16 %v2286, %v2285
        %v2301 = vpack.c.b16 %v2288, %v2287
        %v2302 = vpack.c.b16 %v2290, %v2289
        %v2303 = vpack.c.b16 %v2292, %v2291
        %v2304 = vpack.c.b16 %v2294, %v2293
        %v2305 = vpack.c.b16 %v2296, %v2295
        %v2306 = vpack.c.b16 %v2298, %v2297
        %2315 = vmatprep.subr.bf16.mxu0 0
        %2316 = vmatpush1.bf16.msra.mxu0 %v2299
        %2317 = vmatprep.subr.bf16.mxu0 0
        %2318 = vmatpush1.bf16.msra.mxu0 %v2300
        %2319 = vmatprep.subr.bf16.mxu0 0
        %2320 = vmatpush1.bf16.msra.mxu0 %v2301
        %2321 = vmatprep.subr.bf16.mxu0 0
        %2322 = vmatpush1.bf16.msra.mxu0 %v2302
        %2323 = vmatprep.subr.bf16.mxu0 0
        %2324 = vmatpush1.bf16.msra.mxu0 %v2303
        %2325 = vmatprep.subr.bf16.mxu0 0
        %2326 = vmatpush1.bf16.msra.mxu0 %v2304
        %2327 = vmatprep.subr.bf16.mxu0 0
        %2328 = vmatpush1.bf16.msra.mxu0 %v2305
        %2329 = vmatprep.subr.bf16.mxu0 0
        %2330 = vmatpush1.bf16.msra.mxu0 %v2306
        %2331 = vmatprep.subr.bf16.mxu0 0
        %2332 = vmatpush1.bf16.msra.mxu0 0
        %2333 = vmatprep.subr.bf16.mxu0 0
        %2334 = vmatpush1.bf16.msra.mxu0 0
        %2335 = vmatprep.subr.bf16.mxu0 0
        %2336 = vmatpush1.bf16.msra.mxu0 0
        %2337 = vmatprep.subr.bf16.mxu0 0
        %2338 = vmatpush1.bf16.msra.mxu0 0
        %2339 = vmatprep.subr.bf16.mxu0 0
        %2340 = vmatpush1.bf16.msra.mxu0 0
        %2341 = vmatprep.subr.bf16.mxu0 0
        %2342 = vmatpush1.bf16.msra.mxu0 0
        %2343 = vmatprep.subr.bf16.mxu0 0
        %2344 = vmatpush1.bf16.msra.mxu0 0
        %2345 = vmatprep.subr.bf16.mxu0 0
        %2346 = vmatpush1.bf16.msra.mxu0 0
        %2347 = vmatprep.mubr.bf16.mxu0 0
        %2348 = vmatmul.mubr.bf16.gmra.mrb[0].mxu0 %v1946
        %v2349 = vpop.f32.mrb[0].mxu0
        %v2350 = vadd.f32 0.0, %v2349
        %v2351 = vpop.f32.mrb[0].mxu0
        %v2352 = vpop.f32.mrb[0].mxu0
        %v2353 = vpop.f32.mrb[0].mxu0
        %2354 = vdwg.mxu0
        %v2371 = vunpack.c.l.b16 %v2234
        %v2372 = vunpack.c.l.b16 %v2235
        %v2373 = vunpack.c.l.b16 %v2236
        %v2374 = vunpack.c.l.b16 %v2237
        %v2375 = vunpack.c.l.b16 %v2238
        %v2376 = vunpack.c.l.b16 %v2239
        %v2377 = vunpack.c.l.b16 %v2240
        %v2378 = vunpack.c.l.b16 %v2241
        %v2379 = vunpack.c.l.b16 %v2242
        %v2380 = vunpack.c.l.b16 %v2243
        %v2381 = vunpack.c.l.b16 %v2244
        %v2382 = vunpack.c.l.b16 %v2245
        %v2383 = vunpack.c.l.b16 %v2246
        %v2384 = vunpack.c.l.b16 %v2247
        %v2385 = vunpack.c.l.b16 %v2248
        %v2386 = vunpack.c.l.b16 %v2249
        %v2387 = vpack.c.b16 %v2372, %v2371
        %v2388 = vpack.c.b16 %v2374, %v2373
        %v2389 = vpack.c.b16 %v2376, %v2375
        %v2390 = vpack.c.b16 %v2378, %v2377
        %v2391 = vpack.c.b16 %v2380, %v2379
        %v2392 = vpack.c.b16 %v2382, %v2381
        %v2393 = vpack.c.b16 %v2384, %v2383
        %v2394 = vpack.c.b16 %v2386, %v2385
        %2403 = vmatprep.subr.bf16.mxu0 0
        %2404 = vmatpush1.bf16.msra.mxu0 %v2387
        %2405 = vmatprep.subr.bf16.mxu0 0
        %2406 = vmatpush1.bf16.msra.mxu0 %v2388
        %2407 = vmatprep.subr.bf16.mxu0 0
        %2408 = vmatpush1.bf16.msra.mxu0 %v2389
        %2409 = vmatprep.subr.bf16.mxu0 0
        %2410 = vmatpush1.bf16.msra.mxu0 %v2390
        %2411 = vmatprep.subr.bf16.mxu0 0
        %2412 = vmatpush1.bf16.msra.mxu0 %v2391
        %2413 = vmatprep.subr.bf16.mxu0 0
        %2414 = vmatpush1.bf16.msra.mxu0 %v2392
        %2415 = vmatprep.subr.bf16.mxu0 0
        %2416 = vmatpush1.bf16.msra.mxu0 %v2393
        %2417 = vmatprep.subr.bf16.mxu0 0
        %2418 = vmatpush1.bf16.msra.mxu0 %v2394
        %2419 = vmatprep.subr.bf16.mxu0 0
        %2420 = vmatpush1.bf16.msra.mxu0 0
        %2421 = vmatprep.subr.bf16.mxu0 0
        %2422 = vmatpush1.bf16.msra.mxu0 0
        %2423 = vmatprep.subr.bf16.mxu0 0
        %2424 = vmatpush1.bf16.msra.mxu0 0
        %2425 = vmatprep.subr.bf16.mxu0 0
        %2426 = vmatpush1.bf16.msra.mxu0 0
        %2427 = vmatprep.subr.bf16.mxu0 0
        %2428 = vmatpush1.bf16.msra.mxu0 0
        %2429 = vmatprep.subr.bf16.mxu0 0
        %2430 = vmatpush1.bf16.msra.mxu0 0
        %2431 = vmatprep.subr.bf16.mxu0 0
        %2432 = vmatpush1.bf16.msra.mxu0 0
        %2433 = vmatprep.subr.bf16.mxu0 0
        %2434 = vmatpush1.bf16.msra.mxu0 0
        %2435 = vmatprep.mubr.bf16.mxu0 0
        %2436 = vmatmul.mubr.bf16.gmra.mrb[0].mxu0 %v1928
        %v2437 = vpop.f32.mrb[0].mxu0
        %v2438 = vadd.f32 %v2350, %v2437
        %v2439 = vpop.f32.mrb[0].mxu0
        %v2440 = vpop.f32.mrb[0].mxu0
        %v2441 = vpop.f32.mrb[0].mxu0
        %2442 = vdwg.mxu0
        %s2443 = scalar_lea.vmem %s5, 1024
        %v2444 = vld [vmem:[%s2443] sm:$0xf]
        %v2445 = vld [vmem:[%s2443 + $0x4] sm:$0xf]
        %v2446 = vld [vmem:[%s2443 + $0x8] sm:$0xf]
        %v2447 = vld [vmem:[%s2443 + $0xc] sm:$0xf]
        %v2448 = vld [vmem:[%s2443 + $0x10] sm:$0xf]
        %v2449 = vld [vmem:[%s2443 + $0x14] sm:$0xf]
        %v2450 = vld [vmem:[%s2443 + $0x18] sm:$0xf]
        %v2451 = vld [vmem:[%s2443 + $0x1c] sm:$0xf]
        %v2452 = vld [vmem:[%s2443 + $0x20] sm:$0xf]
        %v2453 = vld [vmem:[%s2443 + $0x24] sm:$0xf]
        %v2454 = vld [vmem:[%s2443 + $0x28] sm:$0xf]
        %v2455 = vld [vmem:[%s2443 + $0x2c] sm:$0xf]
        %v2456 = vld [vmem:[%s2443 + $0x30] sm:$0xf]
        %v2457 = vld [vmem:[%s2443 + $0x34] sm:$0xf]
        %v2458 = vld [vmem:[%s2443 + $0x38] sm:$0xf]
        %v2459 = vld [vmem:[%s2443 + $0x3c] sm:$0xf]
        %v2476 = vunpack.c.l.b16 %v2444
        %v2477 = vunpack.c.l.b16 %v2445
        %v2478 = vunpack.c.l.b16 %v2446
        %v2479 = vunpack.c.l.b16 %v2447
        %v2480 = vunpack.c.l.b16 %v2448
        %v2481 = vunpack.c.l.b16 %v2449
        %v2482 = vunpack.c.l.b16 %v2450
        %v2483 = vunpack.c.l.b16 %v2451
        %v2484 = vunpack.c.l.b16 %v2452
        %v2485 = vunpack.c.l.b16 %v2453
        %v2486 = vunpack.c.l.b16 %v2454
        %v2487 = vunpack.c.l.b16 %v2455
        %v2488 = vunpack.c.l.b16 %v2456
        %v2489 = vunpack.c.l.b16 %v2457
        %v2490 = vunpack.c.l.b16 %v2458
        %v2491 = vunpack.c.l.b16 %v2459
        %v2492 = vpack.c.b16 %v2477, %v2476
        %v2493 = vpack.c.b16 %v2479, %v2478
        %v2494 = vpack.c.b16 %v2481, %v2480
        %v2495 = vpack.c.b16 %v2483, %v2482
        %v2496 = vpack.c.b16 %v2485, %v2484
        %v2497 = vpack.c.b16 %v2487, %v2486
        %v2498 = vpack.c.b16 %v2489, %v2488
        %v2499 = vpack.c.b16 %v2491, %v2490
        %2508 = vmatprep.subr.bf16.mxu0 0
        %2509 = vmatpush1.bf16.msra.mxu0 %v2492
        %2510 = vmatprep.subr.bf16.mxu0 0
        %2511 = vmatpush1.bf16.msra.mxu0 %v2493
        %2512 = vmatprep.subr.bf16.mxu0 0
        %2513 = vmatpush1.bf16.msra.mxu0 %v2494
        %2514 = vmatprep.subr.bf16.mxu0 0
        %2515 = vmatpush1.bf16.msra.mxu0 %v2495
        %2516 = vmatprep.subr.bf16.mxu0 0
        %2517 = vmatpush1.bf16.msra.mxu0 %v2496
        %2518 = vmatprep.subr.bf16.mxu0 0
        %2519 = vmatpush1.bf16.msra.mxu0 %v2497
        %2520 = vmatprep.subr.bf16.mxu0 0
        %2521 = vmatpush1.bf16.msra.mxu0 %v2498
        %2522 = vmatprep.subr.bf16.mxu0 0
        %2523 = vmatpush1.bf16.msra.mxu0 %v2499
        %2524 = vmatprep.subr.bf16.mxu0 0
        %2525 = vmatpush1.bf16.msra.mxu0 0
        %2526 = vmatprep.subr.bf16.mxu0 0
        %2527 = vmatpush1.bf16.msra.mxu0 0
        %2528 = vmatprep.subr.bf16.mxu0 0
        %2529 = vmatpush1.bf16.msra.mxu0 0
        %2530 = vmatprep.subr.bf16.mxu0 0
        %2531 = vmatpush1.bf16.msra.mxu0 0
        %2532 = vmatprep.subr.bf16.mxu0 0
        %2533 = vmatpush1.bf16.msra.mxu0 0
        %2534 = vmatprep.subr.bf16.mxu0 0
        %2535 = vmatpush1.bf16.msra.mxu0 0
        %2536 = vmatprep.subr.bf16.mxu0 0
        %2537 = vmatpush1.bf16.msra.mxu0 0
        %2538 = vmatprep.subr.bf16.mxu0 0
        %2539 = vmatpush1.bf16.msra.mxu0 0
        %2540 = vmatprep.mubr.bf16.mxu0 0
        %2541 = vmatmul.mubr.bf16.gmra.mrb[0].mxu0 %v2140
        %v2542 = vpop.f32.mrb[0].mxu0
        %v2543 = vadd.f32 0.0, %v2542
        %v2544 = vpop.f32.mrb[0].mxu0
        %v2545 = vpop.f32.mrb[0].mxu0
        %v2546 = vpop.f32.mrb[0].mxu0
        %2547 = vdwg.mxu0
        %v2548 = vadd.f32 %v2438, %v2543
        %v2549 = vld [vmem:[%s6 + $0x12] sm:$0x1]
        %v2550 = vadd.f32 %v2548, %v2549
        %v2551 = vmax.f32 %v2550, 0.0
        %s2552 = scalar_lea.vmem %s5, 1088
        %v2553 = vld [vmem:[%s2552] sm:$0xf]
        %v2554 = vld [vmem:[%s2552 + $0x4] sm:$0xf]
        %v2555 = vld [vmem:[%s2552 + $0x8] sm:$0xf]
        %v2556 = vld [vmem:[%s2552 + $0xc] sm:$0xf]
        %v2557 = vld [vmem:[%s2552 + $0x10] sm:$0xf]
        %v2558 = vld [vmem:[%s2552 + $0x14] sm:$0xf]
        %v2559 = vld [vmem:[%s2552 + $0x18] sm:$0xf]
        %v2560 = vld [vmem:[%s2552 + $0x1c] sm:$0xf]
        %v2561 = vld [vmem:[%s2552 + $0x20] sm:$0xf]
        %v2562 = vld [vmem:[%s2552 + $0x24] sm:$0xf]
        %v2563 = vld [vmem:[%s2552 + $0x28] sm:$0xf]
        %v2564 = vld [vmem:[%s2552 + $0x2c] sm:$0xf]
        %v2565 = vld [vmem:[%s2552 + $0x30] sm:$0xf]
        %v2566 = vld [vmem:[%s2552 + $0x34] sm:$0xf]
        %v2567 = vld [vmem:[%s2552 + $0x38] sm:$0xf]
        %v2568 = vld [vmem:[%s2552 + $0x3c] sm:$0xf]
        %v2569 = vpack.c.bf16 %v2232, %v2232
        %s2570 = scalar_lea.vmem %s5, 1152
        %v2571 = vld [vmem:[%s2570] sm:$0xf]
        %v2572 = vld [vmem:[%s2570 + $0x4] sm:$0xf]
        %v2573 = vld [vmem:[%s2570 + $0x8] sm:$0xf]
        %v2574 = vld [vmem:[%s2570 + $0xc] sm:$0xf]
        %v2575 = vld [vmem:[%s2570 + $0x10] sm:$0xf]
        %v2576 = vld [vmem:[%s2570 + $0x14] sm:$0xf]
        %v2577 = vld [vmem:[%s2570 + $0x18] sm:$0xf]
        %v2578 = vld [vmem:[%s2570 + $0x1c] sm:$0xf]
        %v2579 = vld [vmem:[%s2570 + $0x20] sm:$0xf]
        %v2580 = vld [vmem:[%s2570 + $0x24] sm:$0xf]
        %v2581 = vld [vmem:[%s2570 + $0x28] sm:$0xf]
        %v2582 = vld [vmem:[%s2570 + $0x2c] sm:$0xf]
        %v2583 = vld [vmem:[%s2570 + $0x30] sm:$0xf]
        %v2584 = vld [vmem:[%s2570 + $0x34] sm:$0xf]
        %v2585 = vld [vmem:[%s2570 + $0x38] sm:$0xf]
        %v2586 = vld [vmem:[%s2570 + $0x3c] sm:$0xf]
        %v2587 = vpack.c.bf16 %v2551, %v2551
        %v2604 = vunpack.c.l.b16 %v2571
        %v2605 = vunpack.c.l.b16 %v2572
        %v2606 = vunpack.c.l.b16 %v2573
        %v2607 = vunpack.c.l.b16 %v2574
        %v2608 = vunpack.c.l.b16 %v2575
        %v2609 = vunpack.c.l.b16 %v2576
        %v2610 = vunpack.c.l.b16 %v2577
        %v2611 = vunpack.c.l.b16 %v2578
        %v2612 = vunpack.c.l.b16 %v2579
        %v2613 = vunpack.c.l.b16 %v2580
        %v2614 = vunpack.c.l.b16 %v2581
        %v2615 = vunpack.c.l.b16 %v2582
        %v2616 = vunpack.c.l.b16 %v2583
        %v2617 = vunpack.c.l.b16 %v2584
        %v2618 = vunpack.c.l.b16 %v2585
        %v2619 = vunpack.c.l.b16 %v2586
        %v2620 = vpack.c.b16 %v2605, %v2604
        %v2621 = vpack.c.b16 %v2607, %v2606
        %v2622 = vpack.c.b16 %v2609, %v2608
        %v2623 = vpack.c.b16 %v2611, %v2610
        %v2624 = vpack.c.b16 %v2613, %v2612
        %v2625 = vpack.c.b16 %v2615, %v2614
        %v2626 = vpack.c.b16 %v2617, %v2616
        %v2627 = vpack.c.b16 %v2619, %v2618
        %2636 = vmatprep.subr.bf16.mxu0 0
        %2637 = vmatpush1.bf16.msra.mxu0 %v2620
        %2638 = vmatprep.subr.bf16.mxu0 0
        %2639 = vmatpush1.bf16.msra.mxu0 %v2621
        %2640 = vmatprep.subr.bf16.mxu0 0
        %2641 = vmatpush1.bf16.msra.mxu0 %v2622
        %2642 = vmatprep.subr.bf16.mxu0 0
        %2643 = vmatpush1.bf16.msra.mxu0 %v2623
        %2644 = vmatprep.subr.bf16.mxu0 0
        %2645 = vmatpush1.bf16.msra.mxu0 %v2624
        %2646 = vmatprep.subr.bf16.mxu0 0
        %2647 = vmatpush1.bf16.msra.mxu0 %v2625
        %2648 = vmatprep.subr.bf16.mxu0 0
        %2649 = vmatpush1.bf16.msra.mxu0 %v2626
        %2650 = vmatprep.subr.bf16.mxu0 0
        %2651 = vmatpush1.bf16.msra.mxu0 %v2627
        %2652 = vmatprep.subr.bf16.mxu0 0
        %2653 = vmatpush1.bf16.msra.mxu0 0
        %2654 = vmatprep.subr.bf16.mxu0 0
        %2655 = vmatpush1.bf16.msra.mxu0 0
        %2656 = vmatprep.subr.bf16.mxu0 0
        %2657 = vmatpush1.bf16.msra.mxu0 0
        %2658 = vmatprep.subr.bf16.mxu0 0
        %2659 = vmatpush1.bf16.msra.mxu0 0
        %2660 = vmatprep.subr.bf16.mxu0 0
        %2661 = vmatpush1.bf16.msra.mxu0 0
        %2662 = vmatprep.subr.bf16.mxu0 0
        %2663 = vmatpush1.bf16.msra.mxu0 0
        %2664 = vmatprep.subr.bf16.mxu0 0
        %2665 = vmatpush1.bf16.msra.mxu0 0
        %2666 = vmatprep.subr.bf16.mxu0 0
        %2667 = vmatpush1.bf16.msra.mxu0 0
        %2668 = vmatprep.mubr.bf16.mxu0 0
        %2669 = vmatmul.mubr.bf16.gmra.mrb[0].mxu0 %v2587
        %v2670 = vpop.f32.mrb[0].mxu0
        %v2671 = vadd.f32 0.0, %v2670
        %v2672 = vpop.f32.mrb[0].mxu0
        %v2673 = vpop.f32.mrb[0].mxu0
        %v2674 = vpop.f32.mrb[0].mxu0
        %2675 = vdwg.mxu0
        %v2692 = vunpack.c.l.b16 %v2553
        %v2693 = vunpack.c.l.b16 %v2554
        %v2694 = vunpack.c.l.b16 %v2555
        %v2695 = vunpack.c.l.b16 %v2556
        %v2696 = vunpack.c.l.b16 %v2557
        %v2697 = vunpack.c.l.b16 %v2558
        %v2698 = vunpack.c.l.b16 %v2559
        %v2699 = vunpack.c.l.b16 %v2560
        %v2700 = vunpack.c.l.b16 %v2561
        %v2701 = vunpack.c.l.b16 %v2562
        %v2702 = vunpack.c.l.b16 %v2563
        %v2703 = vunpack.c.l.b16 %v2564
        %v2704 = vunpack.c.l.b16 %v2565
        %v2705 = vunpack.c.l.b16 %v2566
        %v2706 = vunpack.c.l.b16 %v2567
        %v2707 = vunpack.c.l.b16 %v2568
        %v2708 = vpack.c.b16 %v2693, %v2692
        %v2709 = vpack.c.b16 %v2695, %v2694
        %v2710 = vpack.c.b16 %v2697, %v2696
        %v2711 = vpack.c.b16 %v2699, %v2698
        %v2712 = vpack.c.b16 %v2701, %v2700
        %v2713 = vpack.c.b16 %v2703, %v2702
        %v2714 = vpack.c.b16 %v2705, %v2704
        %v2715 = vpack.c.b16 %v2707, %v2706
        %2724 = vmatprep.subr.bf16.mxu0 0
        %2725 = vmatpush1.bf16.msra.mxu0 %v2708
        %2726 = vmatprep.subr.bf16.mxu0 0
        %2727 = vmatpush1.bf16.msra.mxu0 %v2709
        %2728 = vmatprep.subr.bf16.mxu0 0
        %2729 = vmatpush1.bf16.msra.mxu0 %v2710
        %2730 = vmatprep.subr.bf16.mxu0 0
        %2731 = vmatpush1.bf16.msra.mxu0 %v2711
        %2732 = vmatprep.subr.bf16.mxu0 0
        %2733 = vmatpush1.bf16.msra.mxu0 %v2712
        %2734 = vmatprep.subr.bf16.mxu0 0
        %2735 = vmatpush1.bf16.msra.mxu0 %v2713
        %2736 = vmatprep.subr.bf16.mxu0 0
        %2737 = vmatpush1.bf16.msra.mxu0 %v2714
        %2738 = vmatprep.subr.bf16.mxu0 0
        %2739 = vmatpush1.bf16.msra.mxu0 %v2715
        %2740 = vmatprep.subr.bf16.mxu0 0
        %2741 = vmatpush1.bf16.msra.mxu0 0
        %2742 = vmatprep.subr.bf16.mxu0 0
        %2743 = vmatpush1.bf16.msra.mxu0 0
        %2744 = vmatprep.subr.bf16.mxu0 0
        %2745 = vmatpush1.bf16.msra.mxu0 0
        %2746 = vmatprep.subr.bf16.mxu0 0
        %2747 = vmatpush1.bf16.msra.mxu0 0
        %2748 = vmatprep.subr.bf16.mxu0 0
        %2749 = vmatpush1.bf16.msra.mxu0 0
        %2750 = vmatprep.subr.bf16.mxu0 0
        %2751 = vmatpush1.bf16.msra.mxu0 0
        %2752 = vmatprep.subr.bf16.mxu0 0
        %2753 = vmatpush1.bf16.msra.mxu0 0
        %2754 = vmatprep.subr.bf16.mxu0 0
        %2755 = vmatpush1.bf16.msra.mxu0 0
        %2756 = vmatprep.mubr.bf16.mxu0 0
        %2757 = vmatmul.mubr.bf16.gmra.mrb[0].mxu0 %v2569
        %v2758 = vpop.f32.mrb[0].mxu0
        %v2759 = vadd.f32 %v2671, %v2758
        %v2760 = vpop.f32.mrb[0].mxu0
        %v2761 = vpop.f32.mrb[0].mxu0
        %v2762 = vpop.f32.mrb[0].mxu0
        %2763 = vdwg.mxu0
        %v2764 = vld [vmem:[%s6 + $0x13] sm:$0x1]
        %v2765 = vadd.f32 %v2759, %v2764
        %v2766 = vmax.f32 %v2765, 0.0
        %s2767 = scalar_lea.vmem %s5, 1216
        %v2768 = vld [vmem:[%s2767] sm:$0xf]
        %v2769 = vld [vmem:[%s2767 + $0x4] sm:$0xf]
        %v2770 = vld [vmem:[%s2767 + $0x8] sm:$0xf]
        %v2771 = vld [vmem:[%s2767 + $0xc] sm:$0xf]
        %v2772 = vld [vmem:[%s2767 + $0x10] sm:$0xf]
        %v2773 = vld [vmem:[%s2767 + $0x14] sm:$0xf]
        %v2774 = vld [vmem:[%s2767 + $0x18] sm:$0xf]
        %v2775 = vld [vmem:[%s2767 + $0x1c] sm:$0xf]
        %v2776 = vld [vmem:[%s2767 + $0x20] sm:$0xf]
        %v2777 = vld [vmem:[%s2767 + $0x24] sm:$0xf]
        %v2778 = vld [vmem:[%s2767 + $0x28] sm:$0xf]
        %v2779 = vld [vmem:[%s2767 + $0x2c] sm:$0xf]
        %v2780 = vld [vmem:[%s2767 + $0x30] sm:$0xf]
        %v2781 = vld [vmem:[%s2767 + $0x34] sm:$0xf]
        %v2782 = vld [vmem:[%s2767 + $0x38] sm:$0xf]
        %v2783 = vld [vmem:[%s2767 + $0x3c] sm:$0xf]
        %v2784 = vpack.c.bf16 %v2766, %v2766
        %v2785 = vld [vmem:[%s6 + $0x14] sm:$0x1]
        %v2802 = vunpack.c.l.b16 %v2768
        %v2803 = vunpack.c.l.b16 %v2769
        %v2804 = vunpack.c.l.b16 %v2770
        %v2805 = vunpack.c.l.b16 %v2771
        %v2806 = vunpack.c.l.b16 %v2772
        %v2807 = vunpack.c.l.b16 %v2773
        %v2808 = vunpack.c.l.b16 %v2774
        %v2809 = vunpack.c.l.b16 %v2775
        %v2810 = vunpack.c.l.b16 %v2776
        %v2811 = vunpack.c.l.b16 %v2777
        %v2812 = vunpack.c.l.b16 %v2778
        %v2813 = vunpack.c.l.b16 %v2779
        %v2814 = vunpack.c.l.b16 %v2780
        %v2815 = vunpack.c.l.b16 %v2781
        %v2816 = vunpack.c.l.b16 %v2782
        %v2817 = vunpack.c.l.b16 %v2783
        %v2818 = vpack.c.b16 %v2803, %v2802
        %v2819 = vpack.c.b16 %v2805, %v2804
        %v2820 = vpack.c.b16 %v2807, %v2806
        %v2821 = vpack.c.b16 %v2809, %v2808
        %v2822 = vpack.c.b16 %v2811, %v2810
        %v2823 = vpack.c.b16 %v2813, %v2812
        %v2824 = vpack.c.b16 %v2815, %v2814
        %v2825 = vpack.c.b16 %v2817, %v2816
        %2834 = vmatprep.subr.bf16.mxu0 0
        %2835 = vmatpush1.bf16.msra.mxu0 %v2818
        %2836 = vmatprep.subr.bf16.mxu0 0
        %2837 = vmatpush1.bf16.msra.mxu0 %v2819
        %2838 = vmatprep.subr.bf16.mxu0 0
        %2839 = vmatpush1.bf16.msra.mxu0 %v2820
        %2840 = vmatprep.subr.bf16.mxu0 0
        %2841 = vmatpush1.bf16.msra.mxu0 %v2821
        %2842 = vmatprep.subr.bf16.mxu0 0
        %2843 = vmatpush1.bf16.msra.mxu0 %v2822
        %2844 = vmatprep.subr.bf16.mxu0 0
        %2845 = vmatpush1.bf16.msra.mxu0 %v2823
        %2846 = vmatprep.subr.bf16.mxu0 0
        %2847 = vmatpush1.bf16.msra.mxu0 %v2824
        %2848 = vmatprep.subr.bf16.mxu0 0
        %2849 = vmatpush1.bf16.msra.mxu0 %v2825
        %2850 = vmatprep.subr.bf16.mxu0 0
        %2851 = vmatpush1.bf16.msra.mxu0 0
        %2852 = vmatprep.subr.bf16.mxu0 0
        %2853 = vmatpush1.bf16.msra.mxu0 0
        %2854 = vmatprep.subr.bf16.mxu0 0
        %2855 = vmatpush1.bf16.msra.mxu0 0
        %2856 = vmatprep.subr.bf16.mxu0 0
        %2857 = vmatpush1.bf16.msra.mxu0 0
        %2858 = vmatprep.subr.bf16.mxu0 0
        %2859 = vmatpush1.bf16.msra.mxu0 0
        %2860 = vmatprep.subr.bf16.mxu0 0
        %2861 = vmatpush1.bf16.msra.mxu0 0
        %2862 = vmatprep.subr.bf16.mxu0 0
        %2863 = vmatpush1.bf16.msra.mxu0 0
        %2864 = vmatprep.subr.bf16.mxu0 0
        %2865 = vmatpush1.bf16.msra.mxu0 0
        %2866 = vmatprep.mubr.bf16.mxu0 0
        %2867 = vmatmul.mubr.bf16.gmra.mrb[0].mxu0 %v2784
        %v2868 = vpop.f32.mrb[0].mxu0
        %v2869 = vadd.f32 %v2785, %v2868
        %v2870 = vpop.f32.mrb[0].mxu0
        %v2871 = vpop.f32.mrb[0].mxu0
        %v2872 = vpop.f32.mrb[0].mxu0
        %2873 = vdwg.mxu0
        %2874 = vst [vmem:[%s359] sm:$0x1] %v2869
        %p2875 = scmp.lt.s32.totalorder %s21, 1
        %s2876 = scalar_select %p2875, %s21, 1
        %s2877 = scalar_lea.vmem %s7, %s2876
        // Predicated region
        $region53: #{a2hnet_forward.1} parent=47 // pred_check
          %p2878 = pneg %p211
        $region54: #{a2hnet_forward.1} parent=47 // pred_check_branch
          %2880 = sbr.rel (%p2878) target = $region56
        $region55: #{a2hnet_forward.1} parent=47 // pred_region
          _
        $region56: #{a2hnet_forward.1} parent=47 // pred_fallthru
          _
      $region48: #{a2hnet_forward.1} parent=5 // pred_fallthru
        _
      %p2881 = scmp.le.s32.totalorder 2, %s16
      // Predicated region
      $region57: #{a2hnet_forward.1} parent=5 // pred_check
        %p2882 = pneg %p2881
      $region58: #{a2hnet_forward.1} parent=5 // pred_check_branch
        %2884 = sbr.rel (%p2882) target = $region60
      $region59: #{a2hnet_forward.1} parent=5 // pred_region
        %s2885 = ssub.s32 %s16, 2
        // Predicated region
        $region61: #{a2hnet_forward.1} parent=59 // pred_check
          %p2886 = pneg %p217
        $region62: #{a2hnet_forward.1} parent=59 // pred_check_branch
          %2888 = sbr.rel (%p2886) target = $region64
        $region63: #{a2hnet_forward.1} parent=59 // pred_region
          %p2889 = scmp.lt.s32.totalorder %s22, 1
          %s2890 = scalar_select %p2889, %s22, 1
          %s2891 = scalar_lea.vmem %s7, %s2890
        $region64: #{a2hnet_forward.1} parent=59 // pred_fallthru
          _
      $region60: #{a2hnet_forward.1} parent=5 // pred_fallthru
        _
    $region6: #{a2hnet_forward.1} parent=1 // loop_footer
      %s20 = sadd.s32 1, %s16
    $region7: #{a2hnet_forward.1} parent=1 // loop_footer_branch
      %15 = sbr.rel target = $region3
    $region8: #{a2hnet_forward.1} parent=1 // loop_exit
      _
    %2892 = vsyncpa [#allocation3], 1
    %s2893 = scalar_lea.sflag [#allocation3], 1
    %2894 = vsyncpa %s2893, 1

</llo_original>
